<compile_context>
chip_gen: v7x
topology: tpu7x:2x2x1
jax: 0.10.0
libtpu: 0.0.40
codegen_flags: <defaults>
</compile_context>

<pallas_src>
import functools

import jax
import jax.numpy as jnp
from jax.experimental import pallas as pl
from jax.experimental.pallas import tpu as pltpu

EPS = 1e-5


def adaptive_block_kernel(x_ref, w1k_ref, t1_ref, w2_ref, t2_ref, o_ref,
                          xpad_ref):
    """One grid step processes `NB` batch elements.

    x_ref   : (NB, H, W, C)     bf16  unpadded NHWC input tile
    w1k_ref : (9, C, Ch)        bf16  per-tap folded weights,
                                      w1k[3*ky+kx] = dw[ky,kx,:,None] * (w1*s1)
    t1_ref  : (1, Ch)           f32   shift: be1 + (b1-m1)*s1 + dw_b @ (w1*s1)
    w2_ref  : (Ch, C)           bf16  1x1 conv Ch->C weights, BN2 scale folded
    t2_ref  : (1, C)            f32   shift: be2 + (b2-m2)*s2
    o_ref   : (NB, H, W, C)     f32   output tile
    xpad_ref: (NB, H+2, W+2, C) bf16  VMEM scratch for the zero-padded input
    """
    NB, H, W, C = x_ref.shape
    Ch = w1k_ref.shape[2]
    M = NB * H * W

    # --- in-kernel zero pad (replaces the wrapper-side jnp.pad HBM pass).
    # Re-zeroed every step: it is ~30 KB of bf16 and keeps the halo correct
    # even when the "parallel" grid axis is sharded across TensorCores (each
    # core has its own scratch instance).
    xpad_ref[...] = jnp.zeros_like(xpad_ref)
    xpad_ref[:, 1:H + 1, 1:W + 1, :] = x_ref[...]

    # --- depthwise 3x3 + 1x1 conv (C -> Ch) fused as 9 shifted MXU matmuls
    # sharing one f32 accumulator.  kx shifts the sublane (W) axis -> read each
    # kx-shifted window once and reuse it across the 3 ky taps (ky slices a
    # non-minor dim: cheap).
    acc = jnp.zeros((M, Ch), jnp.float32)
    for kx in range(3):
        col = xpad_ref[:, :, kx:kx + W, :]                 # (NB, H+2, W, C)
        for ky in range(3):
            xs = col[:, ky:ky + H, :, :].reshape(M, C)     # (M, C) bf16
            acc = acc + jnp.dot(xs, w1k_ref[3 * ky + kx],
                                preferred_element_type=jnp.float32)

    # --- folded BN1 + ReLU.
    h = jnp.maximum(acc + t1_ref[...], 0.0)

    # TODO(synk): Dropout2d is identity in eval mode; training-mode channel
    # dropout (pltpu.prng_*) is not implemented here.

    # --- 1x1 conv Ch -> C on the MXU, folded BN2 + ReLU.
    y = jnp.dot(h.astype(jnp.bfloat16), w2_ref[...],
                preferred_element_type=jnp.float32)
    y = jnp.maximum(y + t2_ref[...], 0.0)

    o_ref[...] = y.reshape(NB, H, W, C).astype(o_ref.dtype)


def adaptive_feature_block(x_nchw, params, *, batch_block=1):
    """Wrapper: NCHW in / NCHW out (PyTorch layout), internal NHWC Pallas kernel.

    batch_block: batch elements per grid step.  Default 1 -> grid=(N,), a
    "parallel" axis so v7x's 2 TensorCores both get work; on single-TC
    v5e/v6e the extra steps only add ~0.35 us each and restore DMA/compute
    overlap.
    """
    w1k, t1, w2, t2 = params
    N, C, H, W = x_nchw.shape
    Ch = w1k.shape[2]
    assert w1k.shape == (9, C, Ch), w1k.shape
    assert N % batch_block == 0, (N, batch_block)
    grid = (N // batch_block,)

    # NCHW -> NHWC transpose (channels-on-lanes layout) fused with the bf16
    # cast into a single XLA pass; no separate zero-pad pass (done in-kernel).
    x = jnp.transpose(x_nchw, (0, 2, 3, 1)).astype(jnp.bfloat16)

    out_nhwc = pl.pallas_call(
        adaptive_block_kernel,
        out_shape=jax.ShapeDtypeStruct((N, H, W, C), jnp.float32),
        grid_spec=pltpu.PrefetchScalarGridSpec(
            num_scalar_prefetch=0,
            grid=grid,
            in_specs=[
                pl.BlockSpec((batch_block, H, W, C), lambda n: (n, 0, 0, 0)),
                pl.BlockSpec((9, C, Ch), lambda n: (0, 0, 0)),
                pl.BlockSpec((1, Ch), lambda n: (0, 0)),
                pl.BlockSpec((Ch, C), lambda n: (0, 0)),
                pl.BlockSpec((1, C), lambda n: (0, 0)),
            ],
            out_specs=pl.BlockSpec((batch_block, H, W, C),
                                   lambda n: (n, 0, 0, 0)),
            scratch_shapes=[
                pltpu.VMEM((batch_block, H + 2, W + 2, C), jnp.bfloat16),
            ],
        ),
        compiler_params=pltpu.CompilerParams(
            dimension_semantics=("parallel",)),
    )(x, w1k, t1, w2, t2)

    return jnp.transpose(out_nhwc, (0, 3, 1, 2))


def init_raw_params(key, C, Ch):
    """Deterministic synthetic parameters matching the PyTorch module's shapes."""
    ks = jax.random.split(key, 16)
    raw = dict(
        # depthwise Conv2d(C, C, 3, padding=1, groups=C): torch weight (C,1,3,3)
        # stored here as (3,3,C): dw_w[ky,kx,c] == torch_w[c,0,ky,kx]
        dw_w=0.1 * jax.random.normal(ks[0], (3, 3, C), jnp.float32),
        dw_b=0.1 * jax.random.normal(ks[1], (C,), jnp.float32),
        # Conv2d(C, Ch, 1): torch weight (Ch, C, 1, 1) stored as (C, Ch)
        w1=0.1 * jax.random.normal(ks[2], (C, Ch), jnp.float32),
        b1=0.1 * jax.random.normal(ks[3], (Ch,), jnp.float32),
        g1=1.0 + 0.1 * jax.random.normal(ks[4], (Ch,), jnp.float32),
        be1=0.1 * jax.random.normal(ks[5], (Ch,), jnp.float32),
        m1=0.1 * jax.random.normal(ks[6], (Ch,), jnp.float32),
        v1=jax.random.uniform(ks[7], (Ch,), jnp.float32, 0.5, 1.5),
        # Conv2d(Ch, C, 1): torch weight (C, Ch, 1, 1) stored as (Ch, C)
        w2=0.1 * jax.random.normal(ks[8], (Ch, C), jnp.float32),
        b2=0.1 * jax.random.normal(ks[9], (C,), jnp.float32),
        g2=1.0 + 0.1 * jax.random.normal(ks[10], (C,), jnp.float32),
        be2=0.1 * jax.random.normal(ks[11], (C,), jnp.float32),
        m2=0.1 * jax.random.normal(ks[12], (C,), jnp.float32),
        v2=jax.random.uniform(ks[13], (C,), jnp.float32, 0.5, 1.5),
    )
    return raw


def fold_params(raw):
    """Fold depthwise conv, conv biases and eval-mode BN into matmul weights/shifts.

    dwconv(x)[..., c] = sum_k x_shift_k[..., c] * dw[k, c]            (+ dw_b)
    h = relu( (dwconv(x) + dw_b) @ (w1 * s1) + t1 )
      = relu( sum_k x_shift_k @ (dw[k][:, None] * w1 * s1) + t1' )
    y = relu( h @ (w2 * s2) + t2' )
    """
    C = raw["dw_b"].shape[0]
    Ch = raw["b1"].shape[0]
    s1 = raw["g1"] / jnp.sqrt(raw["v1"] + EPS)                  # (Ch,)
    s2 = raw["g2"] / jnp.sqrt(raw["v2"] + EPS)                  # (C,)
    w1s = raw["w1"] * s1[None, :]                               # (C, Ch) f32
    w2s = raw["w2"] * s2[None, :]                               # (Ch, C) f32
    dw = raw["dw_w"].reshape(9, C)                              # row k = (ky,kx)=(k//3,k%3)
    w1k = dw[:, :, None] * w1s[None, :, :]                      # (9, C, Ch)
    t1 = raw["be1"] + (raw["b1"] - raw["m1"]) * s1 + raw["dw_b"] @ w1s
    t2 = raw["be2"] + (raw["b2"] - raw["m2"]) * s2
    return (
        w1k.astype(jnp.bfloat16),                               # MXU operands: bf16
        t1.reshape(1, Ch).astype(jnp.float32),
        w2s.astype(jnp.bfloat16),
        t2.reshape(1, C).astype(jnp.float32),
    )


def reference(x_nchw, raw):
    """Pure-JAX (XLA) reference of the PyTorch forward (eval mode), full f32."""
    C = raw["dw_b"].shape[0]
    x = jnp.transpose(x_nchw, (0, 2, 3, 1))                     # NHWC
    dw_hwio = raw["dw_w"][:, :, None, :]                        # (3,3,1,C)
    y = jax.lax.conv_general_dilated(
        x, dw_hwio, (1, 1), "SAME",
        dimension_numbers=("NHWC", "HWIO", "NHWC"),
        feature_group_count=C) + raw["dw_b"]
    h = jnp.einsum("nhwc,cf->nhwf", y, raw["w1"],
                   precision=jax.lax.Precision.HIGHEST) + raw["b1"]
    h = (h - raw["m1"]) / jnp.sqrt(raw["v1"] + EPS) * raw["g1"] + raw["be1"]
    h = jnp.maximum(h, 0.0)
    o = jnp.einsum("nhwf,fc->nhwc", h, raw["w2"],
                   precision=jax.lax.Precision.HIGHEST) + raw["b2"]
    o = (o - raw["m2"]) / jnp.sqrt(raw["v2"] + EPS) * raw["g2"] + raw["be2"]
    o = jnp.maximum(o, 0.0)
    return jnp.transpose(o, (0, 3, 1, 2))                       # NCHW


if __name__ == "__main__":
    C, Ch = 48, 96          # module defaults (in_channels, hidden_channels)
    N, H, W = 2, 16, 16

    key = jax.random.PRNGKey(0)
    k_x, k_p = jax.random.split(key)
    x = jax.random.normal(k_x, (N, C, H, W), jnp.float32)       # NCHW like PyTorch

    raw = init_raw_params(k_p, C, Ch)
    params = fold_params(raw)

    fn = jax.jit(functools.partial(adaptive_feature_block, params=params))
    out = jax.block_until_ready(fn(x))

    ref = jax.block_until_ready(reference(x, raw))
    max_err = float(jnp.max(jnp.abs(out - ref)))
    assert out.shape == (N, C, H, W), out.shape
    # bf16 input + bf16-folded MXU weights vs full-f32 reference -> relaxed tol.
    assert max_err < 5e-2, f"mismatch vs reference: max abs err {max_err}"

    print("KERNEL_OK")
</pallas_src>

<mosaic_0001>
module attributes {stable_mosaic.version = 11 : i64} {
  func.func @adaptive_block_kernel(%arg0: i32, %arg1: memref<1x16x16x48xbf16, #tpu.memory_space<vmem>>, %arg2: memref<9x48x96xbf16, #tpu.memory_space<vmem>>, %arg3: memref<1x96xf32, #tpu.memory_space<vmem>>, %arg4: memref<96x48xbf16, #tpu.memory_space<vmem>>, %arg5: memref<1x48xf32, #tpu.memory_space<vmem>>, %arg6: memref<1x16x16x48xf32, #tpu.memory_space<vmem>>, %arg7: memref<1x18x18x48xbf16, #tpu.memory_space<vmem>>) attributes {dimension_semantics = [#tpu.dimension_semantics<parallel>], iteration_bounds = array<i64: 2>, scalar_prefetch = 0 : i64, scratch_operands = 1 : i64, tpu.core_type = #tpu.core_type<tc>, window_params = [{transform_indices = @transform_0, window_bounds = array<i64: 1, 16, 16, 48>}, {pipeline_mode = #tpu.pipeline_mode<synchronous>, transform_indices = @transform_1, window_bounds = array<i64: 9, 48, 96>}, {pipeline_mode = #tpu.pipeline_mode<synchronous>, transform_indices = @transform_2, window_bounds = array<i64: 1, 96>}, {pipeline_mode = #tpu.pipeline_mode<synchronous>, transform_indices = @transform_3, window_bounds = array<i64: 96, 48>}, {pipeline_mode = #tpu.pipeline_mode<synchronous>, transform_indices = @transform_4, window_bounds = array<i64: 1, 48>}, {transform_indices = @transform_5, window_bounds = array<i64: 1, 16, 16, 48>}]} {
    %cst = arith.constant 0.000000e+00 : bf16
    %0 = vector.broadcast %cst : bf16 to vector<1x18x18x48xbf16>
    %c0 = arith.constant 0 : index
    %c0_0 = arith.constant 0 : index
    %c0_1 = arith.constant 0 : index
    %c0_2 = arith.constant 0 : index
    %1 = vector.load %arg7[%c0, %c0_0, %c0_1, %c0_2] : memref<1x18x18x48xbf16, #tpu.memory_space<vmem>>, vector<1x18x18x48xbf16>
    tpu.vector_store %arg7[%c0, %c0_0, %c0_1, %c0_2], %0 {strides = array<i32>} : memref<1x18x18x48xbf16, #tpu.memory_space<vmem>>, vector<1x18x18x48xbf16>,
    %c0_3 = arith.constant 0 : index
    %c0_4 = arith.constant 0 : index
    %c0_5 = arith.constant 0 : index
    %c0_6 = arith.constant 0 : index
    %2 = vector.load %arg1[%c0_3, %c0_4, %c0_5, %c0_6] : memref<1x16x16x48xbf16, #tpu.memory_space<vmem>>, vector<1x16x16x48xbf16>
    %c0_7 = arith.constant 0 : index
    %c1 = arith.constant 1 : index
    %c1_8 = arith.constant 1 : index
    %c0_9 = arith.constant 0 : index
    %3 = vector.load %arg7[%c0_7, %c1, %c1_8, %c0_9] : memref<1x18x18x48xbf16, #tpu.memory_space<vmem>>, vector<1x16x16x48xbf16>
    tpu.vector_store %arg7[%c0_7, %c1, %c1_8, %c0_9], %2 {strides = array<i32>} : memref<1x18x18x48xbf16, #tpu.memory_space<vmem>>, vector<1x16x16x48xbf16>,
    %cst_10 = arith.constant 0.000000e+00 : f32
    %4 = vector.broadcast %cst_10 : f32 to vector<256x96xf32>
    %c0_11 = arith.constant 0 : index
    %c0_12 = arith.constant 0 : index
    %c0_13 = arith.constant 0 : index
    %c0_14 = arith.constant 0 : index
    %5 = vector.load %arg7[%c0_11, %c0_12, %c0_13, %c0_14] : memref<1x18x18x48xbf16, #tpu.memory_space<vmem>>, vector<1x18x16x48xbf16>
    %6 = vector.extract_strided_slice %5 {offsets = [0, 0, 0, 0], sizes = [1, 16, 16, 48], strides = [1, 1, 1, 1]} : vector<1x18x16x48xbf16> to vector<1x16x16x48xbf16>
    %7 = vector.shape_cast %6 : vector<1x16x16x48xbf16> to vector<256x48xbf16>
    %c0_15 = arith.constant 0 : index
    %c0_16 = arith.constant 0 : index
    %c0_17 = arith.constant 0 : index
    %8 = vector.load %arg2[%c0_15, %c0_16, %c0_17] : memref<9x48x96xbf16, #tpu.memory_space<vmem>>, vector<1x48x96xbf16>
    %9 = vector.shape_cast %8 : vector<1x48x96xbf16> to vector<48x96xbf16>
    %cst_18 = arith.constant dense<0.000000e+00> : vector<256x96xf32>
    %10 = tpu.matmul %7, %9, %cst_18 {dimension_numbers = #tpu.dot_dimension_numbers<[1], [0], [0], [1], [0, 0, 1, 1], [], []>} : vector<256x48xbf16>, vector<48x96xbf16>, vector<256x96xf32> -> vector<256x96xf32>
    %11 = arith.addf %4, %10 : vector<256x96xf32>
    %12 = vector.extract_strided_slice %5 {offsets = [0, 1, 0, 0], sizes = [1, 16, 16, 48], strides = [1, 1, 1, 1]} : vector<1x18x16x48xbf16> to vector<1x16x16x48xbf16>
    %13 = vector.shape_cast %12 : vector<1x16x16x48xbf16> to vector<256x48xbf16>
    %c3 = arith.constant 3 : index
    %c0_19 = arith.constant 0 : index
    %c0_20 = arith.constant 0 : index
    %14 = vector.load %arg2[%c3, %c0_19, %c0_20] : memref<9x48x96xbf16, #tpu.memory_space<vmem>>, vector<1x48x96xbf16>
    %15 = vector.shape_cast %14 : vector<1x48x96xbf16> to vector<48x96xbf16>
    %cst_21 = arith.constant dense<0.000000e+00> : vector<256x96xf32>
    %16 = tpu.matmul %13, %15, %cst_21 {dimension_numbers = #tpu.dot_dimension_numbers<[1], [0], [0], [1], [0, 0, 1, 1], [], []>} : vector<256x48xbf16>, vector<48x96xbf16>, vector<256x96xf32> -> vector<256x96xf32>
    %17 = arith.addf %11, %16 : vector<256x96xf32>
    %18 = vector.extract_strided_slice %5 {offsets = [0, 2, 0, 0], sizes = [1, 16, 16, 48], strides = [1, 1, 1, 1]} : vector<1x18x16x48xbf16> to vector<1x16x16x48xbf16>
    %19 = vector.shape_cast %18 : vector<1x16x16x48xbf16> to vector<256x48xbf16>
    %c6 = arith.constant 6 : index
    %c0_22 = arith.constant 0 : index
    %c0_23 = arith.constant 0 : index
    %20 = vector.load %arg2[%c6, %c0_22, %c0_23] : memref<9x48x96xbf16, #tpu.memory_space<vmem>>, vector<1x48x96xbf16>
    %21 = vector.shape_cast %20 : vector<1x48x96xbf16> to vector<48x96xbf16>
    %cst_24 = arith.constant dense<0.000000e+00> : vector<256x96xf32>
    %22 = tpu.matmul %19, %21, %cst_24 {dimension_numbers = #tpu.dot_dimension_numbers<[1], [0], [0], [1], [0, 0, 1, 1], [], []>} : vector<256x48xbf16>, vector<48x96xbf16>, vector<256x96xf32> -> vector<256x96xf32>
    %23 = arith.addf %17, %22 : vector<256x96xf32>
    %c0_25 = arith.constant 0 : index
    %c0_26 = arith.constant 0 : index
    %c1_27 = arith.constant 1 : index
    %c0_28 = arith.constant 0 : index
    %24 = vector.load %arg7[%c0_25, %c0_26, %c1_27, %c0_28] : memref<1x18x18x48xbf16, #tpu.memory_space<vmem>>, vector<1x18x16x48xbf16>
    %25 = vector.extract_strided_slice %24 {offsets = [0, 0, 0, 0], sizes = [1, 16, 16, 48], strides = [1, 1, 1, 1]} : vector<1x18x16x48xbf16> to vector<1x16x16x48xbf16>
    %26 = vector.shape_cast %25 : vector<1x16x16x48xbf16> to vector<256x48xbf16>
    %c1_29 = arith.constant 1 : index
    %c0_30 = arith.constant 0 : index
    %c0_31 = arith.constant 0 : index
    %27 = vector.load %arg2[%c1_29, %c0_30, %c0_31] : memref<9x48x96xbf16, #tpu.memory_space<vmem>>, vector<1x48x96xbf16>
    %28 = vector.shape_cast %27 : vector<1x48x96xbf16> to vector<48x96xbf16>
    %cst_32 = arith.constant dense<0.000000e+00> : vector<256x96xf32>
    %29 = tpu.matmul %26, %28, %cst_32 {dimension_numbers = #tpu.dot_dimension_numbers<[1], [0], [0], [1], [0, 0, 1, 1], [], []>} : vector<256x48xbf16>, vector<48x96xbf16>, vector<256x96xf32> -> vector<256x96xf32>
    %30 = arith.addf %23, %29 : vector<256x96xf32>
    %31 = vector.extract_strided_slice %24 {offsets = [0, 1, 0, 0], sizes = [1, 16, 16, 48], strides = [1, 1, 1, 1]} : vector<1x18x16x48xbf16> to vector<1x16x16x48xbf16>
    %32 = vector.shape_cast %31 : vector<1x16x16x48xbf16> to vector<256x48xbf16>
    %c4 = arith.constant 4 : index
    %c0_33 = arith.constant 0 : index
    %c0_34 = arith.constant 0 : index
    %33 = vector.load %arg2[%c4, %c0_33, %c0_34] : memref<9x48x96xbf16, #tpu.memory_space<vmem>>, vector<1x48x96xbf16>
    %34 = vector.shape_cast %33 : vector<1x48x96xbf16> to vector<48x96xbf16>
    %cst_35 = arith.constant dense<0.000000e+00> : vector<256x96xf32>
    %35 = tpu.matmul %32, %34, %cst_35 {dimension_numbers = #tpu.dot_dimension_numbers<[1], [0], [0], [1], [0, 0, 1, 1], [], []>} : vector<256x48xbf16>, vector<48x96xbf16>, vector<256x96xf32> -> vector<256x96xf32>
    %36 = arith.addf %30, %35 : vector<256x96xf32>
    %37 = vector.extract_strided_slice %24 {offsets = [0, 2, 0, 0], sizes = [1, 16, 16, 48], strides = [1, 1, 1, 1]} : vector<1x18x16x48xbf16> to vector<1x16x16x48xbf16>
    %38 = vector.shape_cast %37 : vector<1x16x16x48xbf16> to vector<256x48xbf16>
    %c7 = arith.constant 7 : index
    %c0_36 = arith.constant 0 : index
    %c0_37 = arith.constant 0 : index
    %39 = vector.load %arg2[%c7, %c0_36, %c0_37] : memref<9x48x96xbf16, #tpu.memory_space<vmem>>, vector<1x48x96xbf16>
    %40 = vector.shape_cast %39 : vector<1x48x96xbf16> to vector<48x96xbf16>
    %cst_38 = arith.constant dense<0.000000e+00> : vector<256x96xf32>
    %41 = tpu.matmul %38, %40, %cst_38 {dimension_numbers = #tpu.dot_dimension_numbers<[1], [0], [0], [1], [0, 0, 1, 1], [], []>} : vector<256x48xbf16>, vector<48x96xbf16>, vector<256x96xf32> -> vector<256x96xf32>
    %42 = arith.addf %36, %41 : vector<256x96xf32>
    %c0_39 = arith.constant 0 : index
    %c0_40 = arith.constant 0 : index
    %c2 = arith.constant 2 : index
    %c0_41 = arith.constant 0 : index
    %43 = vector.load %arg7[%c0_39, %c0_40, %c2, %c0_41] : memref<1x18x18x48xbf16, #tpu.memory_space<vmem>>, vector<1x18x16x48xbf16>
    %44 = vector.extract_strided_slice %43 {offsets = [0, 0, 0, 0], sizes = [1, 16, 16, 48], strides = [1, 1, 1, 1]} : vector<1x18x16x48xbf16> to vector<1x16x16x48xbf16>
    %45 = vector.shape_cast %44 : vector<1x16x16x48xbf16> to vector<256x48xbf16>
    %c2_42 = arith.constant 2 : index
    %c0_43 = arith.constant 0 : index
    %c0_44 = arith.constant 0 : index
    %46 = vector.load %arg2[%c2_42, %c0_43, %c0_44] : memref<9x48x96xbf16, #tpu.memory_space<vmem>>, vector<1x48x96xbf16>
    %47 = vector.shape_cast %46 : vector<1x48x96xbf16> to vector<48x96xbf16>
    %cst_45 = arith.constant dense<0.000000e+00> : vector<256x96xf32>
    %48 = tpu.matmul %45, %47, %cst_45 {dimension_numbers = #tpu.dot_dimension_numbers<[1], [0], [0], [1], [0, 0, 1, 1], [], []>} : vector<256x48xbf16>, vector<48x96xbf16>, vector<256x96xf32> -> vector<256x96xf32>
    %49 = arith.addf %42, %48 : vector<256x96xf32>
    %50 = vector.extract_strided_slice %43 {offsets = [0, 1, 0, 0], sizes = [1, 16, 16, 48], strides = [1, 1, 1, 1]} : vector<1x18x16x48xbf16> to vector<1x16x16x48xbf16>
    %51 = vector.shape_cast %50 : vector<1x16x16x48xbf16> to vector<256x48xbf16>
    %c5 = arith.constant 5 : index
    %c0_46 = arith.constant 0 : index
    %c0_47 = arith.constant 0 : index
    %52 = vector.load %arg2[%c5, %c0_46, %c0_47] : memref<9x48x96xbf16, #tpu.memory_space<vmem>>, vector<1x48x96xbf16>
    %53 = vector.shape_cast %52 : vector<1x48x96xbf16> to vector<48x96xbf16>
    %cst_48 = arith.constant dense<0.000000e+00> : vector<256x96xf32>
    %54 = tpu.matmul %51, %53, %cst_48 {dimension_numbers = #tpu.dot_dimension_numbers<[1], [0], [0], [1], [0, 0, 1, 1], [], []>} : vector<256x48xbf16>, vector<48x96xbf16>, vector<256x96xf32> -> vector<256x96xf32>
    %55 = arith.addf %49, %54 : vector<256x96xf32>
    %56 = vector.extract_strided_slice %43 {offsets = [0, 2, 0, 0], sizes = [1, 16, 16, 48], strides = [1, 1, 1, 1]} : vector<1x18x16x48xbf16> to vector<1x16x16x48xbf16>
    %57 = vector.shape_cast %56 : vector<1x16x16x48xbf16> to vector<256x48xbf16>
    %c8 = arith.constant 8 : index
    %c0_49 = arith.constant 0 : index
    %c0_50 = arith.constant 0 : index
    %58 = vector.load %arg2[%c8, %c0_49, %c0_50] : memref<9x48x96xbf16, #tpu.memory_space<vmem>>, vector<1x48x96xbf16>
    %59 = vector.shape_cast %58 : vector<1x48x96xbf16> to vector<48x96xbf16>
    %cst_51 = arith.constant dense<0.000000e+00> : vector<256x96xf32>
    %60 = tpu.matmul %57, %59, %cst_51 {dimension_numbers = #tpu.dot_dimension_numbers<[1], [0], [0], [1], [0, 0, 1, 1], [], []>} : vector<256x48xbf16>, vector<48x96xbf16>, vector<256x96xf32> -> vector<256x96xf32>
    %61 = arith.addf %55, %60 : vector<256x96xf32>
    %c0_52 = arith.constant 0 : index
    %c0_53 = arith.constant 0 : index
    %62 = vector.load %arg3[%c0_52, %c0_53] : memref<1x96xf32, #tpu.memory_space<vmem>>, vector<1x96xf32>
    %63 = vector.broadcast %62 : vector<1x96xf32> to vector<256x96xf32>
    %64 = arith.addf %61, %63 : vector<256x96xf32>
    %cst_54 = arith.constant 0.000000e+00 : f32
    %65 = vector.broadcast %cst_54 : f32 to vector<256x96xf32>
    %66 = arith.maximumf %64, %65 : vector<256x96xf32>
    %67 = arith.truncf %66 : vector<256x96xf32> to vector<256x96xbf16>
    %c0_55 = arith.constant 0 : index
    %c0_56 = arith.constant 0 : index
    %68 = vector.load %arg4[%c0_55, %c0_56] : memref<96x48xbf16, #tpu.memory_space<vmem>>, vector<96x48xbf16>
    %cst_57 = arith.constant dense<0.000000e+00> : vector<256x48xf32>
    %69 = tpu.matmul %67, %68, %cst_57 {dimension_numbers = #tpu.dot_dimension_numbers<[1], [0], [0], [1], [0, 0, 1, 1], [], []>} : vector<256x96xbf16>, vector<96x48xbf16>, vector<256x48xf32> -> vector<256x48xf32>
    %c0_58 = arith.constant 0 : index
    %c0_59 = arith.constant 0 : index
    %70 = vector.load %arg5[%c0_58, %c0_59] : memref<1x48xf32, #tpu.memory_space<vmem>>, vector<1x48xf32>
    %71 = vector.broadcast %70 : vector<1x48xf32> to vector<256x48xf32>
    %72 = arith.addf %69, %71 : vector<256x48xf32>
    %cst_60 = arith.constant 0.000000e+00 : f32
    %73 = vector.broadcast %cst_60 : f32 to vector<256x48xf32>
    %74 = arith.maximumf %72, %73 : vector<256x48xf32>
    %75 = vector.shape_cast %74 : vector<256x48xf32> to vector<1x16x16x48xf32>
    %c0_61 = arith.constant 0 : index
    %c0_62 = arith.constant 0 : index
    %c0_63 = arith.constant 0 : index
    %c0_64 = arith.constant 0 : index
    %76 = vector.load %arg6[%c0_61, %c0_62, %c0_63, %c0_64] : memref<1x16x16x48xf32, #tpu.memory_space<vmem>>, vector<1x16x16x48xf32>
    tpu.vector_store %arg6[%c0_61, %c0_62, %c0_63, %c0_64], %75 {strides = array<i32>} : memref<1x16x16x48xf32, #tpu.memory_space<vmem>>, vector<1x16x16x48xf32>,
    return
  }
  func.func @transform_0(%arg0: i32) -> (i32, i32, i32, i32) {
    %c0_i32 = arith.constant 0 : i32
    %c0_i32_0 = arith.constant 0 : i32
    %c0_i32_1 = arith.constant 0 : i32
    %c0_i32_2 = arith.constant 0 : i32
    return %arg0, %c0_i32, %c0_i32_0, %c0_i32_1 : i32, i32, i32, i32
  }
  func.func @transform_1(%arg0: i32) -> (i32, i32, i32) {
    %c0_i32 = arith.constant 0 : i32
    %c0_i32_0 = arith.constant 0 : i32
    %c0_i32_1 = arith.constant 0 : i32
    %c0_i32_2 = arith.constant 0 : i32
    return %c0_i32, %c0_i32_0, %c0_i32_1 : i32, i32, i32
  }
  func.func @transform_2(%arg0: i32) -> (i32, i32) {
    %c0_i32 = arith.constant 0 : i32
    %c0_i32_0 = arith.constant 0 : i32
    %c0_i32_1 = arith.constant 0 : i32
    return %c0_i32, %c0_i32_0 : i32, i32
  }
  func.func @transform_3(%arg0: i32) -> (i32, i32) {
    %c0_i32 = arith.constant 0 : i32
    %c0_i32_0 = arith.constant 0 : i32
    %c0_i32_1 = arith.constant 0 : i32
    return %c0_i32, %c0_i32_0 : i32, i32
  }
  func.func @transform_4(%arg0: i32) -> (i32, i32) {
    %c0_i32 = arith.constant 0 : i32
    %c0_i32_0 = arith.constant 0 : i32
    %c0_i32_1 = arith.constant 0 : i32
    return %c0_i32, %c0_i32_0 : i32, i32
  }
  func.func @transform_5(%arg0: i32) -> (i32, i32, i32, i32) {
    %c0_i32 = arith.constant 0 : i32
    %c0_i32_0 = arith.constant 0 : i32
    %c0_i32_1 = arith.constant 0 : i32
    %c0_i32_2 = arith.constant 0 : i32
    return %arg0, %c0_i32, %c0_i32_0, %c0_i32_1 : i32, i32, i32, i32
  }
}

</mosaic_0001>

<llo_original>
// kernel: adaptive_feature_block.1
$region0: #{adaptive_feature_block.1}
  #allocation0 [shape = 'u32[]', space=smem, size = 0x4, offset = 0x4, fixed_abs, tag = 'smem constant byte address 0x4 - core index']
  #allocation1 [shape = 'u32[144,128]{1,0:T(1,128)}', space=vmem, size = 0x12000, scoped, tag = 'internal scratch']
  #allocation2 [shape = 'bf16[1,18,18,48]{3,2,1,0:T(8,128)(2,1)}', space=vmem, size = 0x1b000, scoped, tag = 'scratch operand']
  %s0 = inlined_call_operand.vmem [shape: bf16[2,16,16,48], index: 0, kind: input, shape index: {}]
  %s1 = inlined_call_operand.vmem [shape: bf16[9,48,96], index: 1, kind: input, shape index: {}]
  %s2 = inlined_call_operand.vmem [shape: f32[1,96], index: 2, kind: input, shape index: {}]
  %s3 = inlined_call_operand.vmem [shape: bf16[96,48], index: 3, kind: input, shape index: {}]
  %s4 = inlined_call_operand.vmem [shape: f32[1,48], index: 4, kind: input, shape index: {}]
  %s5 = inlined_call_operand.hbm [shape: f32[2,16,16,48], index: 5, kind: output, shape index: {}]
  %s6 = sld [smem:[#allocation0]]
  $region53: #{adaptive_feature_block.1} parent=0
    _
  %s8 = ssub.s32 1, %s6
  %s9 = scalar_select 0, %s8, %s6
  $region1: #{adaptive_feature_block.1} parent=0
    #allocation3 [shape = 'u8[262144]{0}', space=vmem, size = 0x40000, scoped, tag = 'output window, operand 0']
    #allocation4 [shape = 's32[2]{0}', space=sflag, size = 0x8, scoped, tag = 'scoped memory for adaptive_feature_block.1']
    %10 = vsyncpa [#allocation4], 0
    %s11 = scalar_lea.sflag [#allocation4], 1
    %12 = vsyncpa %s11, 0
    loop: start=0, step=1, limit=4
    $region2: #{adaptive_feature_block.1} parent=1 // loop_pre_header
      _
    $region3: #{adaptive_feature_block.1} parent=1 // loop_header
      %s14 = sphi 0, %s18
      %p15 = scmp.ge.s32.totalorder %s14, 4
      %s24 = sphi 0, %s26
      %s27 = sphi 0, %s24
      %s28 = sphi 0, %s27
      %s44 = sphi 0, %s28
      %s48 = sphi 0, %s48
      %s50 = sphi 0, %s48
      %s51 = sphi 0, %s50
      %s65 = sphi 0, %s51
      %s69 = sphi 0, %s69
      %s71 = sphi 0, %s69
      %s72 = sphi 0, %s71
      %s86 = sphi 0, %s72
      %s90 = sphi 0, %s90
      %s92 = sphi 0, %s90
      %s93 = sphi 0, %s92
      %s107 = sphi 0, %s93
      %s111 = sphi 0, %s111
      %s113 = sphi 0, %s111
      %s114 = sphi 0, %s113
      %s128 = sphi 0, %s114
      %s134 = sphi 0, %s136
      %s137 = sphi 0, %s134
      %s138 = sphi 0, %s137
      %s154 = sphi 0, %s138
    $region4: #{adaptive_feature_block.1} parent=1 // loop_header_branch
      %17 = sbr.rel (%p15) target = $region8
    $region5: #{adaptive_feature_block.1} parent=1 // loop_body
      %s19 = ssub.s32 %s14, 1
      %s20 = ssub.s32 %s14, 2
      %s21 = sadd.s32 %s14, 1
      %s22 = ssub.s32 %s14, %s21
      %p23 = scmp.eq.s32.totalorder %s22, 0
      %s25 = sadd.s32 %s24, 1
      %s26 = scalar_select %p23, %s24, %s25
      %p29 = pneg %p23
      %p30 = scmp.eq.s32.totalorder %s14, 1
      %p31 = por %p29, %p30
      %p32 = scmp.ne.s32.totalorder %s24, %s27
      %p33 = scmp.eq.s32.totalorder %s14, 0
      %p34 = por %p32, %p33
      %p35 = scmp.ne.s32.totalorder %s24, %s27
      %p36 = scmp.eq.s32.totalorder %s19, 1
      %p37 = por %p35, %p36
      %p38 = scmp.ne.s32.totalorder %s27, %s28
      %p39 = scmp.eq.s32.totalorder %s19, 0
      %p40 = por %p38, %p39
      %p41 = scmp.ne.s32.totalorder %s27, %s28
      %p42 = scmp.eq.s32.totalorder %s20, 1
      %p43 = por %p41, %p42
      %p45 = scmp.ne.s32.totalorder %s28, %s44
      %p46 = scmp.eq.s32.totalorder %s20, 0
      %p47 = por %p45, %p46
      %s49 = sadd.s32 %s48, 1
      %p52 = scmp.eq.s32.totalorder %s14, 1
      %p53 = scmp.ne.s32.totalorder %s48, %s50
      %p54 = scmp.eq.s32.totalorder %s14, 0
      %p55 = por %p53, %p54
      %p56 = scmp.ne.s32.totalorder %s48, %s50
      %p57 = scmp.eq.s32.totalorder %s19, 1
      %p58 = por %p56, %p57
      %p59 = scmp.ne.s32.totalorder %s50, %s51
      %p60 = scmp.eq.s32.totalorder %s19, 0
      %p61 = por %p59, %p60
      %p62 = scmp.ne.s32.totalorder %s50, %s51
      %p63 = scmp.eq.s32.totalorder %s20, 1
      %p64 = por %p62, %p63
      %p66 = scmp.ne.s32.totalorder %s51, %s65
      %p67 = scmp.eq.s32.totalorder %s20, 0
      %p68 = por %p66, %p67
      %s70 = sadd.s32 %s69, 1
      %p73 = scmp.eq.s32.totalorder %s14, 1
      %p74 = scmp.ne.s32.totalorder %s69, %s71
      %p75 = scmp.eq.s32.totalorder %s14, 0
      %p76 = por %p74, %p75
      %p77 = scmp.ne.s32.totalorder %s69, %s71
      %p78 = scmp.eq.s32.totalorder %s19, 1
      %p79 = por %p77, %p78
      %p80 = scmp.ne.s32.totalorder %s71, %s72
      %p81 = scmp.eq.s32.totalorder %s19, 0
      %p82 = por %p80, %p81
      %p83 = scmp.ne.s32.totalorder %s71, %s72
      %p84 = scmp.eq.s32.totalorder %s20, 1
      %p85 = por %p83, %p84
      %p87 = scmp.ne.s32.totalorder %s72, %s86
      %p88 = scmp.eq.s32.totalorder %s20, 0
      %p89 = por %p87, %p88
      %s91 = sadd.s32 %s90, 1
      %p94 = scmp.eq.s32.totalorder %s14, 1
      %p95 = scmp.ne.s32.totalorder %s90, %s92
      %p96 = scmp.eq.s32.totalorder %s14, 0
      %p97 = por %p95, %p96
      %p98 = scmp.ne.s32.totalorder %s90, %s92
      %p99 = scmp.eq.s32.totalorder %s19, 1
      %p100 = por %p98, %p99
      %p101 = scmp.ne.s32.totalorder %s92, %s93
      %p102 = scmp.eq.s32.totalorder %s19, 0
      %p103 = por %p101, %p102
      %p104 = scmp.ne.s32.totalorder %s92, %s93
      %p105 = scmp.eq.s32.totalorder %s20, 1
      %p106 = por %p104, %p105
      %p108 = scmp.ne.s32.totalorder %s93, %s107
      %p109 = scmp.eq.s32.totalorder %s20, 0
      %p110 = por %p108, %p109
      %s112 = sadd.s32 %s111, 1
      %p115 = scmp.eq.s32.totalorder %s14, 1
      %p116 = scmp.ne.s32.totalorder %s111, %s113
      %p117 = scmp.eq.s32.totalorder %s14, 0
      %p118 = por %p116, %p117
      %p119 = scmp.ne.s32.totalorder %s111, %s113
      %p120 = scmp.eq.s32.totalorder %s19, 1
      %p121 = por %p119, %p120
      %p122 = scmp.ne.s32.totalorder %s113, %s114
      %p123 = scmp.eq.s32.totalorder %s19, 0
      %p124 = por %p122, %p123
      %p125 = scmp.ne.s32.totalorder %s113, %s114
      %p126 = scmp.eq.s32.totalorder %s20, 1
      %p127 = por %p125, %p126
      %p129 = scmp.ne.s32.totalorder %s114, %s128
      %p130 = scmp.eq.s32.totalorder %s20, 0
      %p131 = por %p129, %p130
      %s132 = ssub.s32 %s14, %s21
      %p133 = scmp.eq.s32.totalorder %s132, 0
      %s135 = sadd.s32 %s134, 1
      %s136 = scalar_select %p133, %s134, %s135
      %p139 = pneg %p133
      %p140 = scmp.eq.s32.totalorder %s14, 1
      %p141 = por %p139, %p140
      %p142 = scmp.ne.s32.totalorder %s134, %s137
      %p143 = scmp.eq.s32.totalorder %s14, 0
      %p144 = por %p142, %p143
      %p145 = scmp.ne.s32.totalorder %s134, %s137
      %p146 = scmp.eq.s32.totalorder %s19, 1
      %p147 = por %p145, %p146
      %p148 = scmp.ne.s32.totalorder %s137, %s138
      %p149 = scmp.eq.s32.totalorder %s19, 0
      %p150 = por %p148, %p149
      %p151 = scmp.ne.s32.totalorder %s137, %s138
      %p152 = scmp.eq.s32.totalorder %s20, 1
      %p153 = por %p151, %p152
      %p155 = scmp.ne.s32.totalorder %s138, %s154
      %p156 = scmp.eq.s32.totalorder %s20, 0
      %p157 = por %p155, %p156
      %p158 = scmp.le.s32.totalorder 1, %s14
      %p159 = scmp.lt.s32.totalorder %s14, 3
      %p160 = pnand %p158, %p159
      %p161 = pneg %p160
      // Predicated region
      $region9: #{adaptive_feature_block.1} parent=5 // pred_check
        _
      $region10: #{adaptive_feature_block.1} parent=5 // pred_check_branch
        %163 = sbr.rel (%p160) target = $region12
      $region11: #{adaptive_feature_block.1} parent=5 // pred_region
        %s164 = ssub.s32 %s14, 1
        // Predicated region
        $region13: #{adaptive_feature_block.1} parent=11 // pred_check
          %p165 = pneg %p61
        $region14: #{adaptive_feature_block.1} parent=11 // pred_check_branch
          %167 = sbr.rel (%p165) target = $region16
        $region15: #{adaptive_feature_block.1} parent=11 // pred_region
          _
        $region16: #{adaptive_feature_block.1} parent=11 // pred_fallthru
          _
        // Predicated region
        $region17: #{adaptive_feature_block.1} parent=11 // pred_check
          %p168 = pneg %p82
        $region18: #{adaptive_feature_block.1} parent=11 // pred_check_branch
          %170 = sbr.rel (%p168) target = $region20
        $region19: #{adaptive_feature_block.1} parent=11 // pred_region
          _
        $region20: #{adaptive_feature_block.1} parent=11 // pred_fallthru
          _
        // Predicated region
        $region21: #{adaptive_feature_block.1} parent=11 // pred_check
          %p171 = pneg %p103
        $region22: #{adaptive_feature_block.1} parent=11 // pred_check_branch
          %173 = sbr.rel (%p171) target = $region24
        $region23: #{adaptive_feature_block.1} parent=11 // pred_region
          _
        $region24: #{adaptive_feature_block.1} parent=11 // pred_fallthru
          _
        // Predicated region
        $region25: #{adaptive_feature_block.1} parent=11 // pred_check
          %p174 = pneg %p124
        $region26: #{adaptive_feature_block.1} parent=11 // pred_check_branch
          %176 = sbr.rel (%p174) target = $region28
        $region27: #{adaptive_feature_block.1} parent=11 // pred_region
          _
        $region28: #{adaptive_feature_block.1} parent=11 // pred_fallthru
          _
      $region12: #{adaptive_feature_block.1} parent=5 // pred_fallthru
        _
      %p177 = scmp.lt.s32.totalorder %s14, 2
      // Predicated region
      $region29: #{adaptive_feature_block.1} parent=5 // pred_check
        %p178 = pneg %p177
      $region30: #{adaptive_feature_block.1} parent=5 // pred_check_branch
        %180 = sbr.rel (%p178) target = $region32
      $region31: #{adaptive_feature_block.1} parent=5 // pred_region
        // Predicated region
        $region33: #{adaptive_feature_block.1} parent=31 // pred_check
          %p181 = pneg %p34
        $region34: #{adaptive_feature_block.1} parent=31 // pred_check_branch
          %183 = sbr.rel (%p181) target = $region36
        $region35: #{adaptive_feature_block.1} parent=31 // pred_region
          %p184 = scmp.lt.s32.totalorder %s14, 1
          %s185 = scalar_select %p184, %s14, 1
          %s186 = smul.addr %s185, 32
          %s187 = smul.addr %s186, 4
          %s188 = scalar_lea.vmem %s0, %s187
        $region36: #{adaptive_feature_block.1} parent=31 // pred_fallthru
          _
      $region32: #{adaptive_feature_block.1} parent=5 // pred_fallthru
        _
      %p189 = scmp.le.s32.totalorder 1, %s14
      %p190 = scmp.lt.s32.totalorder %s14, 3
      %p191 = pnand %p189, %p190
      %p192 = pneg %p191
      // Predicated region
      $region37: #{adaptive_feature_block.1} parent=5 // pred_check
        _
      $region38: #{adaptive_feature_block.1} parent=5 // pred_check_branch
        %194 = sbr.rel (%p191) target = $region40
      $region39: #{adaptive_feature_block.1} parent=5 // pred_region
        %s195 = ssub.s32 %s14, 1
        %p196 = scmp.lt.s32.totalorder %s19, 1
        %s197 = scalar_select %p196, %s19, 1
        %s198 = smul.addr %s197, 32
        %s199 = smul.addr %s198, 4
        %s200 = scalar_lea.vmem %s0, %s199
        %p201 = pneg %p40
        %p202 = pneg %p37
        %p203 = pneg %p61
        %p204 = pneg %p58
        %p205 = pneg %p82
        %p206 = pneg %p79
        %p207 = pneg %p103
        %p208 = pneg %p100
        %p209 = pneg %p124
        %p210 = pneg %p121
        %p211 = pneg %p150
        %p212 = pneg %p147
        %s213 = sand.u32 %s137, 1
        %s214 = scalar_lea.sflag [#allocation4], %s213
        %s215 = sand.u32 %s137, 1
        %s216 = smul.addr %s215, 256
        %s217 = scalar_lea.vmem [#allocation3], %s216
        %p218 = scmp.lt.s32.totalorder %s19, 1
        %s219 = scalar_select %p218, %s19, 1
        %s220 = smul.addr %s219, 32
        %s221 = smul.addr %s220, 4
        %s222 = scalar_lea.vmem %s0, %s221
        %vm224 = vcmask 388096
        %225 = vst.msk [vmem:[#allocation2] sm:$0xf] %vm224, 0
        %226 = vst.msk [vmem:[#allocation2 + $0x4] sm:$0xf] %vm224, 0
        %vm227 = vcmask 385024
        %228 = vst.msk [vmem:[#allocation2 + $0x8] sm:$0x1] %vm227, 0
        %229 = vst.msk [vmem:[#allocation2 + $0xc] sm:$0xf] %vm224, 0
        %230 = vst.msk [vmem:[#allocation2 + $0x10] sm:$0xf] %vm224, 0
        %231 = vst.msk [vmem:[#allocation2 + $0x14] sm:$0x1] %vm227, 0
        %232 = vst.msk [vmem:[#allocation2 + $0x18] sm:$0xf] %vm224, 0
        %233 = vst.msk [vmem:[#allocation2 + $0x1c] sm:$0xf] %vm224, 0
        %234 = vst.msk [vmem:[#allocation2 + $0x20] sm:$0x1] %vm227, 0
        %235 = vst.msk [vmem:[#allocation2 + $0x24] sm:$0xf] %vm224, 0
        %236 = vst.msk [vmem:[#allocation2 + $0x28] sm:$0xf] %vm224, 0
        %237 = vst.msk [vmem:[#allocation2 + $0x2c] sm:$0x1] %vm227, 0
        %238 = vst.msk [vmem:[#allocation2 + $0x30] sm:$0xf] %vm224, 0
        %239 = vst.msk [vmem:[#allocation2 + $0x34] sm:$0xf] %vm224, 0
        %240 = vst.msk [vmem:[#allocation2 + $0x38] sm:$0x1] %vm227, 0
        %241 = vst.msk [vmem:[#allocation2 + $0x3c] sm:$0xf] %vm224, 0
        %242 = vst.msk [vmem:[#allocation2 + $0x40] sm:$0xf] %vm224, 0
        %243 = vst.msk [vmem:[#allocation2 + $0x44] sm:$0x1] %vm227, 0
        %244 = vst.msk [vmem:[#allocation2 + $0x48] sm:$0xf] %vm224, 0
        %245 = vst.msk [vmem:[#allocation2 + $0x4c] sm:$0xf] %vm224, 0
        %246 = vst.msk [vmem:[#allocation2 + $0x50] sm:$0x1] %vm227, 0
        %247 = vst.msk [vmem:[#allocation2 + $0x54] sm:$0xf] %vm224, 0
        %248 = vst.msk [vmem:[#allocation2 + $0x58] sm:$0xf] %vm224, 0
        %249 = vst.msk [vmem:[#allocation2 + $0x5c] sm:$0x1] %vm227, 0
        %250 = vst.msk [vmem:[#allocation2 + $0x60] sm:$0xf] %vm224, 0
        %251 = vst.msk [vmem:[#allocation2 + $0x64] sm:$0xf] %vm224, 0
        %252 = vst.msk [vmem:[#allocation2 + $0x68] sm:$0x1] %vm227, 0
        %253 = vst.msk [vmem:[#allocation2 + $0x6c] sm:$0xf] %vm224, 0
        %254 = vst.msk [vmem:[#allocation2 + $0x70] sm:$0xf] %vm224, 0
        %255 = vst.msk [vmem:[#allocation2 + $0x74] sm:$0x1] %vm227, 0
        %256 = vst.msk [vmem:[#allocation2 + $0x78] sm:$0xf] %vm224, 0
        %257 = vst.msk [vmem:[#allocation2 + $0x7c] sm:$0xf] %vm224, 0
        %258 = vst.msk [vmem:[#allocation2 + $0x80] sm:$0x1] %vm227, 0
        %259 = vst.msk [vmem:[#allocation2 + $0x84] sm:$0xf] %vm224, 0
        %260 = vst.msk [vmem:[#allocation2 + $0x88] sm:$0xf] %vm224, 0
        %261 = vst.msk [vmem:[#allocation2 + $0x8c] sm:$0x1] %vm227, 0
        %262 = vst.msk [vmem:[#allocation2 + $0x90] sm:$0xf] %vm224, 0
        %263 = vst.msk [vmem:[#allocation2 + $0x94] sm:$0xf] %vm224, 0
        %264 = vst.msk [vmem:[#allocation2 + $0x98] sm:$0x1] %vm227, 0
        %265 = vst.msk [vmem:[#allocation2 + $0x9c] sm:$0xf] %vm224, 0
        %266 = vst.msk [vmem:[#allocation2 + $0xa0] sm:$0xf] %vm224, 0
        %267 = vst.msk [vmem:[#allocation2 + $0xa4] sm:$0x1] %vm227, 0
        %268 = vst.msk [vmem:[#allocation2 + $0xa8] sm:$0xf] %vm224, 0
        %269 = vst.msk [vmem:[#allocation2 + $0xac] sm:$0xf] %vm224, 0
        %270 = vst.msk [vmem:[#allocation2 + $0xb0] sm:$0x1] %vm227, 0
        %271 = vst.msk [vmem:[#allocation2 + $0xb4] sm:$0xf] %vm224, 0
        %272 = vst.msk [vmem:[#allocation2 + $0xb8] sm:$0xf] %vm224, 0
        %273 = vst.msk [vmem:[#allocation2 + $0xbc] sm:$0x1] %vm227, 0
        %274 = vst.msk [vmem:[#allocation2 + $0xc0] sm:$0xf] %vm224, 0
        %275 = vst.msk [vmem:[#allocation2 + $0xc4] sm:$0xf] %vm224, 0
        %276 = vst.msk [vmem:[#allocation2 + $0xc8] sm:$0x1] %vm227, 0
        %277 = vst.msk [vmem:[#allocation2 + $0xcc] sm:$0xf] %vm224, 0
        %278 = vst.msk [vmem:[#allocation2 + $0xd0] sm:$0xf] %vm224, 0
        %279 = vst.msk [vmem:[#allocation2 + $0xd4] sm:$0x1] %vm227, 0
        %v280 = vld [vmem:[%s222] sm:$0xf]
        %v281 = vld [vmem:[%s222 + $0x4] sm:$0xf]
        %v282 = vld [vmem:[%s222 + $0x8] sm:$0xf]
        %v283 = vld [vmem:[%s222 + $0xc] sm:$0xf]
        %v284 = vld [vmem:[%s222 + $0x10] sm:$0xf]
        %v285 = vld [vmem:[%s222 + $0x14] sm:$0xf]
        %v286 = vld [vmem:[%s222 + $0x18] sm:$0xf]
        %v287 = vld [vmem:[%s222 + $0x1c] sm:$0xf]
        %v288 = vld [vmem:[%s222 + $0x20] sm:$0xf]
        %v289 = vld [vmem:[%s222 + $0x24] sm:$0xf]
        %v290 = vld [vmem:[%s222 + $0x28] sm:$0xf]
        %v291 = vld [vmem:[%s222 + $0x2c] sm:$0xf]
        %v292 = vld [vmem:[%s222 + $0x30] sm:$0xf]
        %v293 = vld [vmem:[%s222 + $0x34] sm:$0xf]
        %v294 = vld [vmem:[%s222 + $0x38] sm:$0xf]
        %v295 = vld [vmem:[%s222 + $0x3c] sm:$0xf]
        %v296 = vld [vmem:[%s222 + $0x40] sm:$0xf]
        %v297 = vld [vmem:[%s222 + $0x44] sm:$0xf]
        %v298 = vld [vmem:[%s222 + $0x48] sm:$0xf]
        %v299 = vld [vmem:[%s222 + $0x4c] sm:$0xf]
        %v300 = vld [vmem:[%s222 + $0x50] sm:$0xf]
        %v301 = vld [vmem:[%s222 + $0x54] sm:$0xf]
        %v302 = vld [vmem:[%s222 + $0x58] sm:$0xf]
        %v303 = vld [vmem:[%s222 + $0x5c] sm:$0xf]
        %v304 = vld [vmem:[%s222 + $0x60] sm:$0xf]
        %v305 = vld [vmem:[%s222 + $0x64] sm:$0xf]
        %v306 = vld [vmem:[%s222 + $0x68] sm:$0xf]
        %v307 = vld [vmem:[%s222 + $0x6c] sm:$0xf]
        %v308 = vld [vmem:[%s222 + $0x70] sm:$0xf]
        %v309 = vld [vmem:[%s222 + $0x74] sm:$0xf]
        %v310 = vld [vmem:[%s222 + $0x78] sm:$0xf]
        %v311 = vld [vmem:[%s222 + $0x7c] sm:$0xf]
        %vm312 = vsmask.f32 256
        %vm313 = vsmask.f32 4368
        %vm314 = vmor %vm312, %vm313
        %v316 = vshrl.u32 %v280, 16
        %v318 = vrot.slane %v316, 7
        %v319 = vshll.u32 %v280, 16
        %v321 = vor.u32 %v318, %v319
        %v322 = vrot.slane %v318, 4
        %v324 = vshrl.u32 %v281, 16
        %v326 = vrot.slane %v324, 7
        %v327 = vshll.u32 %v281, 16
        %v329 = vor.u32 %v326, %v327
        %v330 = vsel %vm314, %v322, %v329
        %v331 = vrot.slane %v326, 4
        %v333 = vshrl.u32 %v282, 16
        %v335 = vrot.slane %v333, 7
        %v336 = vshll.u32 %v282, 16
        %v338 = vor.u32 %v335, %v336
        %v339 = vrot.slane %v335, 4
        %v341 = vshrl.u32 %v283, 16
        %v343 = vrot.slane %v341, 7
        %v344 = vshll.u32 %v283, 16
        %v346 = vor.u32 %v343, %v344
        %v347 = vsel %vm314, %v339, %v346
        %v348 = vrot.slane %v343, 4
        %v350 = vshrl.u32 %v284, 16
        %v352 = vrot.slane %v350, 7
        %v353 = vshll.u32 %v284, 16
        %v355 = vor.u32 %v352, %v353
        %v356 = vrot.slane %v352, 4
        %v358 = vshrl.u32 %v285, 16
        %v360 = vrot.slane %v358, 7
        %v361 = vshll.u32 %v285, 16
        %v363 = vor.u32 %v360, %v361
        %v364 = vsel %vm314, %v356, %v363
        %v365 = vrot.slane %v360, 4
        %v367 = vshrl.u32 %v286, 16
        %v369 = vrot.slane %v367, 7
        %v370 = vshll.u32 %v286, 16
        %v372 = vor.u32 %v369, %v370
        %v373 = vrot.slane %v369, 4
        %v375 = vshrl.u32 %v287, 16
        %v377 = vrot.slane %v375, 7
        %v378 = vshll.u32 %v287, 16
        %v380 = vor.u32 %v377, %v378
        %v381 = vsel %vm314, %v373, %v380
        %v382 = vrot.slane %v377, 4
        %v384 = vshrl.u32 %v288, 16
        %v386 = vrot.slane %v384, 7
        %v387 = vshll.u32 %v288, 16
        %v389 = vor.u32 %v386, %v387
        %v390 = vrot.slane %v386, 4
        %v392 = vshrl.u32 %v289, 16
        %v394 = vrot.slane %v392, 7
        %v395 = vshll.u32 %v289, 16
        %v397 = vor.u32 %v394, %v395
        %v398 = vsel %vm314, %v390, %v397
        %v399 = vrot.slane %v394, 4
        %v401 = vshrl.u32 %v290, 16
        %v403 = vrot.slane %v401, 7
        %v404 = vshll.u32 %v290, 16
        %v406 = vor.u32 %v403, %v404
        %v407 = vrot.slane %v403, 4
        %v409 = vshrl.u32 %v291, 16
        %v411 = vrot.slane %v409, 7
        %v412 = vshll.u32 %v291, 16
        %v414 = vor.u32 %v411, %v412
        %v415 = vsel %vm314, %v407, %v414
        %v416 = vrot.slane %v411, 4
        %v418 = vshrl.u32 %v292, 16
        %v420 = vrot.slane %v418, 7
        %v421 = vshll.u32 %v292, 16
        %v423 = vor.u32 %v420, %v421
        %v424 = vrot.slane %v420, 4
        %v426 = vshrl.u32 %v293, 16
        %v428 = vrot.slane %v426, 7
        %v429 = vshll.u32 %v293, 16
        %v431 = vor.u32 %v428, %v429
        %v432 = vsel %vm314, %v424, %v431
        %v433 = vrot.slane %v428, 4
        %v435 = vshrl.u32 %v294, 16
        %v437 = vrot.slane %v435, 7
        %v438 = vshll.u32 %v294, 16
        %v440 = vor.u32 %v437, %v438
        %v441 = vrot.slane %v437, 4
        %v443 = vshrl.u32 %v295, 16
        %v445 = vrot.slane %v443, 7
        %v446 = vshll.u32 %v295, 16
        %v448 = vor.u32 %v445, %v446
        %v449 = vsel %vm314, %v441, %v448
        %v450 = vrot.slane %v445, 4
        %v452 = vshrl.u32 %v296, 16
        %v454 = vrot.slane %v452, 7
        %v455 = vshll.u32 %v296, 16
        %v457 = vor.u32 %v454, %v455
        %v458 = vrot.slane %v454, 4
        %v460 = vshrl.u32 %v297, 16
        %v462 = vrot.slane %v460, 7
        %v463 = vshll.u32 %v297, 16
        %v465 = vor.u32 %v462, %v463
        %v466 = vsel %vm314, %v458, %v465
        %v467 = vrot.slane %v462, 4
        %v469 = vshrl.u32 %v298, 16
        %v471 = vrot.slane %v469, 7
        %v472 = vshll.u32 %v298, 16
        %v474 = vor.u32 %v471, %v472
        %v475 = vrot.slane %v471, 4
        %v477 = vshrl.u32 %v299, 16
        %v479 = vrot.slane %v477, 7
        %v480 = vshll.u32 %v299, 16
        %v482 = vor.u32 %v479, %v480
        %v483 = vsel %vm314, %v475, %v482
        %v484 = vrot.slane %v479, 4
        %v486 = vshrl.u32 %v300, 16
        %v488 = vrot.slane %v486, 7
        %v489 = vshll.u32 %v300, 16
        %v491 = vor.u32 %v488, %v489
        %v492 = vrot.slane %v488, 4
        %v494 = vshrl.u32 %v301, 16
        %v496 = vrot.slane %v494, 7
        %v497 = vshll.u32 %v301, 16
        %v499 = vor.u32 %v496, %v497
        %v500 = vsel %vm314, %v492, %v499
        %v501 = vrot.slane %v496, 4
        %v503 = vshrl.u32 %v302, 16
        %v505 = vrot.slane %v503, 7
        %v506 = vshll.u32 %v302, 16
        %v508 = vor.u32 %v505, %v506
        %v509 = vrot.slane %v505, 4
        %v511 = vshrl.u32 %v303, 16
        %v513 = vrot.slane %v511, 7
        %v514 = vshll.u32 %v303, 16
        %v516 = vor.u32 %v513, %v514
        %v517 = vsel %vm314, %v509, %v516
        %v518 = vrot.slane %v513, 4
        %v520 = vshrl.u32 %v304, 16
        %v522 = vrot.slane %v520, 7
        %v523 = vshll.u32 %v304, 16
        %v525 = vor.u32 %v522, %v523
        %v526 = vrot.slane %v522, 4
        %v528 = vshrl.u32 %v305, 16
        %v530 = vrot.slane %v528, 7
        %v531 = vshll.u32 %v305, 16
        %v533 = vor.u32 %v530, %v531
        %v534 = vsel %vm314, %v526, %v533
        %v535 = vrot.slane %v530, 4
        %v537 = vshrl.u32 %v306, 16
        %v539 = vrot.slane %v537, 7
        %v540 = vshll.u32 %v306, 16
        %v542 = vor.u32 %v539, %v540
        %v543 = vrot.slane %v539, 4
        %v545 = vshrl.u32 %v307, 16
        %v547 = vrot.slane %v545, 7
        %v548 = vshll.u32 %v307, 16
        %v550 = vor.u32 %v547, %v548
        %v551 = vsel %vm314, %v543, %v550
        %v552 = vrot.slane %v547, 4
        %v554 = vshrl.u32 %v308, 16
        %v556 = vrot.slane %v554, 7
        %v557 = vshll.u32 %v308, 16
        %v559 = vor.u32 %v556, %v557
        %v560 = vrot.slane %v556, 4
        %v562 = vshrl.u32 %v309, 16
        %v564 = vrot.slane %v562, 7
        %v565 = vshll.u32 %v309, 16
        %v567 = vor.u32 %v564, %v565
        %v568 = vsel %vm314, %v560, %v567
        %v569 = vrot.slane %v564, 4
        %v571 = vshrl.u32 %v310, 16
        %v573 = vrot.slane %v571, 7
        %v574 = vshll.u32 %v310, 16
        %v576 = vor.u32 %v573, %v574
        %v577 = vrot.slane %v573, 4
        %v579 = vshrl.u32 %v311, 16
        %v581 = vrot.slane %v579, 7
        %v582 = vshll.u32 %v311, 16
        %v584 = vor.u32 %v581, %v582
        %v585 = vsel %vm314, %v577, %v584
        %v586 = vrot.slane %v581, 4
        %s635 = scalar_lea.vmem [#allocation2], 12
        %vm636 = vcmask 388096
        %vm637 = vsmask.f32 7938
        %vm638 = vmand %vm636, %vm637
        %v639 = vld [vmem:[%s635] sm:$0xf]
        %v640 = vsel %vm638, %v321, %v639
        %641 = vst [vmem:[%s635] sm:$0xf] %v640
        %642 = vst.msk [vmem:[%s635 + $0x4] sm:$0xf] %vm224, %v330
        %vm643 = vcmask 385024
        %vm644 = vmand %vm643, %vm312
        %v645 = vld [vmem:[%s635 + $0x8] sm:$0x1]
        %v646 = vsel %vm644, %v331, %v645
        %647 = vst [vmem:[%s635 + $0x8] sm:$0x1] %v646
        %v648 = vld [vmem:[%s635 + $0xc] sm:$0xf]
        %v649 = vsel %vm638, %v338, %v648
        %650 = vst [vmem:[%s635 + $0xc] sm:$0xf] %v649
        %651 = vst.msk [vmem:[%s635 + $0x10] sm:$0xf] %vm224, %v347
        %v652 = vld [vmem:[%s635 + $0x14] sm:$0x1]
        %v653 = vsel %vm644, %v348, %v652
        %654 = vst [vmem:[%s635 + $0x14] sm:$0x1] %v653
        %v655 = vld [vmem:[%s635 + $0x18] sm:$0xf]
        %v656 = vsel %vm638, %v355, %v655
        %657 = vst [vmem:[%s635 + $0x18] sm:$0xf] %v656
        %658 = vst.msk [vmem:[%s635 + $0x1c] sm:$0xf] %vm224, %v364
        %v659 = vld [vmem:[%s635 + $0x20] sm:$0x1]
        %v660 = vsel %vm644, %v365, %v659
        %661 = vst [vmem:[%s635 + $0x20] sm:$0x1] %v660
        %v662 = vld [vmem:[%s635 + $0x24] sm:$0xf]
        %v663 = vsel %vm638, %v372, %v662
        %664 = vst [vmem:[%s635 + $0x24] sm:$0xf] %v663
        %665 = vst.msk [vmem:[%s635 + $0x28] sm:$0xf] %vm224, %v381
        %v666 = vld [vmem:[%s635 + $0x2c] sm:$0x1]
        %v667 = vsel %vm644, %v382, %v666
        %668 = vst [vmem:[%s635 + $0x2c] sm:$0x1] %v667
        %v669 = vld [vmem:[%s635 + $0x30] sm:$0xf]
        %v670 = vsel %vm638, %v389, %v669
        %671 = vst [vmem:[%s635 + $0x30] sm:$0xf] %v670
        %672 = vst.msk [vmem:[%s635 + $0x34] sm:$0xf] %vm224, %v398
        %v673 = vld [vmem:[%s635 + $0x38] sm:$0x1]
        %v674 = vsel %vm644, %v399, %v673
        %675 = vst [vmem:[%s635 + $0x38] sm:$0x1] %v674
        %v676 = vld [vmem:[%s635 + $0x3c] sm:$0xf]
        %v677 = vsel %vm638, %v406, %v676
        %678 = vst [vmem:[%s635 + $0x3c] sm:$0xf] %v677
        %679 = vst.msk [vmem:[%s635 + $0x40] sm:$0xf] %vm224, %v415
        %v680 = vld [vmem:[%s635 + $0x44] sm:$0x1]
        %v681 = vsel %vm644, %v416, %v680
        %682 = vst [vmem:[%s635 + $0x44] sm:$0x1] %v681
        %v683 = vld [vmem:[%s635 + $0x48] sm:$0xf]
        %v684 = vsel %vm638, %v423, %v683
        %685 = vst [vmem:[%s635 + $0x48] sm:$0xf] %v684
        %686 = vst.msk [vmem:[%s635 + $0x4c] sm:$0xf] %vm224, %v432
        %v687 = vld [vmem:[%s635 + $0x50] sm:$0x1]
        %v688 = vsel %vm644, %v433, %v687
        %689 = vst [vmem:[%s635 + $0x50] sm:$0x1] %v688
        %v690 = vld [vmem:[%s635 + $0x54] sm:$0xf]
        %v691 = vsel %vm638, %v440, %v690
        %692 = vst [vmem:[%s635 + $0x54] sm:$0xf] %v691
        %693 = vst.msk [vmem:[%s635 + $0x58] sm:$0xf] %vm224, %v449
        %v694 = vld [vmem:[%s635 + $0x5c] sm:$0x1]
        %v695 = vsel %vm644, %v450, %v694
        %696 = vst [vmem:[%s635 + $0x5c] sm:$0x1] %v695
        %v697 = vld [vmem:[%s635 + $0x60] sm:$0xf]
        %v698 = vsel %vm638, %v457, %v697
        %699 = vst [vmem:[%s635 + $0x60] sm:$0xf] %v698
        %700 = vst.msk [vmem:[%s635 + $0x64] sm:$0xf] %vm224, %v466
        %v701 = vld [vmem:[%s635 + $0x68] sm:$0x1]
        %v702 = vsel %vm644, %v467, %v701
        %703 = vst [vmem:[%s635 + $0x68] sm:$0x1] %v702
        %v704 = vld [vmem:[%s635 + $0x6c] sm:$0xf]
        %v705 = vsel %vm638, %v474, %v704
        %706 = vst [vmem:[%s635 + $0x6c] sm:$0xf] %v705
        %707 = vst.msk [vmem:[%s635 + $0x70] sm:$0xf] %vm224, %v483
        %v708 = vld [vmem:[%s635 + $0x74] sm:$0x1]
        %v709 = vsel %vm644, %v484, %v708
        %710 = vst [vmem:[%s635 + $0x74] sm:$0x1] %v709
        %v711 = vld [vmem:[%s635 + $0x78] sm:$0xf]
        %v712 = vsel %vm638, %v491, %v711
        %713 = vst [vmem:[%s635 + $0x78] sm:$0xf] %v712
        %714 = vst.msk [vmem:[%s635 + $0x7c] sm:$0xf] %vm224, %v500
        %v715 = vld [vmem:[%s635 + $0x80] sm:$0x1]
        %v716 = vsel %vm644, %v501, %v715
        %717 = vst [vmem:[%s635 + $0x80] sm:$0x1] %v716
        %v718 = vld [vmem:[%s635 + $0x84] sm:$0xf]
        %v719 = vsel %vm638, %v508, %v718
        %720 = vst [vmem:[%s635 + $0x84] sm:$0xf] %v719
        %721 = vst.msk [vmem:[%s635 + $0x88] sm:$0xf] %vm224, %v517
        %v722 = vld [vmem:[%s635 + $0x8c] sm:$0x1]
        %v723 = vsel %vm644, %v518, %v722
        %724 = vst [vmem:[%s635 + $0x8c] sm:$0x1] %v723
        %v725 = vld [vmem:[%s635 + $0x90] sm:$0xf]
        %v726 = vsel %vm638, %v525, %v725
        %727 = vst [vmem:[%s635 + $0x90] sm:$0xf] %v726
        %728 = vst.msk [vmem:[%s635 + $0x94] sm:$0xf] %vm224, %v534
        %v729 = vld [vmem:[%s635 + $0x98] sm:$0x1]
        %v730 = vsel %vm644, %v535, %v729
        %731 = vst [vmem:[%s635 + $0x98] sm:$0x1] %v730
        %v732 = vld [vmem:[%s635 + $0x9c] sm:$0xf]
        %v733 = vsel %vm638, %v542, %v732
        %734 = vst [vmem:[%s635 + $0x9c] sm:$0xf] %v733
        %735 = vst.msk [vmem:[%s635 + $0xa0] sm:$0xf] %vm224, %v551
        %v736 = vld [vmem:[%s635 + $0xa4] sm:$0x1]
        %v737 = vsel %vm644, %v552, %v736
        %738 = vst [vmem:[%s635 + $0xa4] sm:$0x1] %v737
        %v739 = vld [vmem:[%s635 + $0xa8] sm:$0xf]
        %v740 = vsel %vm638, %v559, %v739
        %741 = vst [vmem:[%s635 + $0xa8] sm:$0xf] %v740
        %742 = vst.msk [vmem:[%s635 + $0xac] sm:$0xf] %vm224, %v568
        %v743 = vld [vmem:[%s635 + $0xb0] sm:$0x1]
        %v744 = vsel %vm644, %v569, %v743
        %745 = vst [vmem:[%s635 + $0xb0] sm:$0x1] %v744
        %v746 = vld [vmem:[%s635 + $0xb4] sm:$0xf]
        %v747 = vsel %vm638, %v576, %v746
        %748 = vst [vmem:[%s635 + $0xb4] sm:$0xf] %v747
        %749 = vst.msk [vmem:[%s635 + $0xb8] sm:$0xf] %vm224, %v585
        %v750 = vld [vmem:[%s635 + $0xbc] sm:$0x1]
        %v751 = vsel %vm644, %v586, %v750
        %752 = vst [vmem:[%s635 + $0xbc] sm:$0x1] %v751
        %v753 = vld [vmem:[#allocation2] sm:$0xf]
        %v754 = vld [vmem:[#allocation2 + $0x4] sm:$0xf]
        %v755 = vld [vmem:[#allocation2 + $0xc] sm:$0xf]
        %v756 = vld [vmem:[#allocation2 + $0x10] sm:$0xf]
        %v757 = vld [vmem:[#allocation2 + $0x18] sm:$0xf]
        %v758 = vld [vmem:[#allocation2 + $0x1c] sm:$0xf]
        %v759 = vld [vmem:[#allocation2 + $0x24] sm:$0xf]
        %v760 = vld [vmem:[#allocation2 + $0x28] sm:$0xf]
        %v761 = vld [vmem:[#allocation2 + $0x30] sm:$0xf]
        %v762 = vld [vmem:[#allocation2 + $0x34] sm:$0xf]
        %v763 = vld [vmem:[#allocation2 + $0x3c] sm:$0xf]
        %v764 = vld [vmem:[#allocation2 + $0x40] sm:$0xf]
        %v765 = vld [vmem:[#allocation2 + $0x48] sm:$0xf]
        %v766 = vld [vmem:[#allocation2 + $0x4c] sm:$0xf]
        %v767 = vld [vmem:[#allocation2 + $0x54] sm:$0xf]
        %v768 = vld [vmem:[#allocation2 + $0x58] sm:$0xf]
        %v769 = vld [vmem:[#allocation2 + $0x60] sm:$0xf]
        %v770 = vld [vmem:[#allocation2 + $0x64] sm:$0xf]
        %v771 = vld [vmem:[#allocation2 + $0x6c] sm:$0xf]
        %v772 = vld [vmem:[#allocation2 + $0x70] sm:$0xf]
        %v773 = vld [vmem:[#allocation2 + $0x78] sm:$0xf]
        %v774 = vld [vmem:[#allocation2 + $0x7c] sm:$0xf]
        %v775 = vld [vmem:[#allocation2 + $0x84] sm:$0xf]
        %v776 = vld [vmem:[#allocation2 + $0x88] sm:$0xf]
        %v777 = vld [vmem:[#allocation2 + $0x90] sm:$0xf]
        %v778 = vld [vmem:[#allocation2 + $0x94] sm:$0xf]
        %v779 = vld [vmem:[#allocation2 + $0x9c] sm:$0xf]
        %v780 = vld [vmem:[#allocation2 + $0xa0] sm:$0xf]
        %v781 = vld [vmem:[#allocation2 + $0xa8] sm:$0xf]
        %v782 = vld [vmem:[#allocation2 + $0xac] sm:$0xf]
        %v783 = vld [vmem:[#allocation2 + $0xb4] sm:$0xf]
        %v784 = vld [vmem:[#allocation2 + $0xb8] sm:$0xf]
        %v785 = vld [vmem:[#allocation2 + $0xc0] sm:$0xf]
        %v786 = vld [vmem:[#allocation2 + $0xc4] sm:$0xf]
        %v787 = vld [vmem:[#allocation2 + $0xcc] sm:$0xf]
        %v788 = vld [vmem:[#allocation2 + $0xd0] sm:$0xf]
        %v789 = vld [vmem:[%s1] sm:$0xf]
        %v790 = vld [vmem:[%s1 + $0x4] sm:$0xf]
        %v791 = vld [vmem:[%s1 + $0x8] sm:$0xf]
        %v792 = vld [vmem:[%s1 + $0xc] sm:$0xf]
        %v793 = vld [vmem:[%s1 + $0x10] sm:$0xf]
        %v794 = vld [vmem:[%s1 + $0x14] sm:$0xf]
        %s795 = scalar_lea.vmem %s1, 72
        %v796 = vld [vmem:[%s795] sm:$0xf]
        %v797 = vld [vmem:[%s795 + $0x4] sm:$0xf]
        %v798 = vld [vmem:[%s795 + $0x8] sm:$0xf]
        %v799 = vld [vmem:[%s795 + $0xc] sm:$0xf]
        %v800 = vld [vmem:[%s795 + $0x10] sm:$0xf]
        %v801 = vld [vmem:[%s795 + $0x14] sm:$0xf]
        %v834 = vunpack.c.l.b16 %v755
        %v835 = vunpack.c.l.b16 %v756
        %v836 = vunpack.c.l.b16 %v757
        %v837 = vunpack.c.l.b16 %v758
        %v838 = vunpack.c.l.b16 %v759
        %v839 = vunpack.c.l.b16 %v760
        %v840 = vunpack.c.l.b16 %v761
        %v841 = vunpack.c.l.b16 %v762
        %v842 = vunpack.c.l.b16 %v763
        %v843 = vunpack.c.l.b16 %v764
        %v844 = vunpack.c.l.b16 %v765
        %v845 = vunpack.c.l.b16 %v766
        %v846 = vunpack.c.l.b16 %v767
        %v847 = vunpack.c.l.b16 %v768
        %v848 = vunpack.c.l.b16 %v769
        %v849 = vunpack.c.l.b16 %v770
        %v850 = vunpack.c.l.b16 %v771
        %v851 = vunpack.c.l.b16 %v772
        %v852 = vunpack.c.l.b16 %v773
        %v853 = vunpack.c.l.b16 %v774
        %v854 = vunpack.c.l.b16 %v775
        %v855 = vunpack.c.l.b16 %v776
        %v856 = vunpack.c.l.b16 %v777
        %v857 = vunpack.c.l.b16 %v778
        %v858 = vunpack.c.l.b16 %v779
        %v859 = vunpack.c.l.b16 %v780
        %v860 = vunpack.c.l.b16 %v781
        %v861 = vunpack.c.l.b16 %v782
        %v862 = vunpack.c.l.b16 %v783
        %v863 = vunpack.c.l.b16 %v784
        %v864 = vunpack.c.l.b16 %v785
        %v865 = vunpack.c.l.b16 %v786
        %v866 = vpack.c.b16 %v835, %v834
        %v867 = vpack.c.b16 %v837, %v836
        %v868 = vpack.c.b16 %v839, %v838
        %v869 = vpack.c.b16 %v841, %v840
        %v870 = vpack.c.b16 %v843, %v842
        %v871 = vpack.c.b16 %v845, %v844
        %v872 = vpack.c.b16 %v847, %v846
        %v873 = vpack.c.b16 %v849, %v848
        %v874 = vpack.c.b16 %v851, %v850
        %v875 = vpack.c.b16 %v853, %v852
        %v876 = vpack.c.b16 %v855, %v854
        %v877 = vpack.c.b16 %v857, %v856
        %v878 = vpack.c.b16 %v859, %v858
        %v879 = vpack.c.b16 %v861, %v860
        %v880 = vpack.c.b16 %v863, %v862
        %v881 = vpack.c.b16 %v865, %v864
        %v888 = vunpack.c.l.b16 %v796
        %v889 = vunpack.c.l.b16 %v797
        %v890 = vunpack.c.l.b16 %v798
        %v891 = vunpack.c.l.b16 %v799
        %v892 = vunpack.c.l.b16 %v800
        %v893 = vunpack.c.l.b16 %v801
        %v894 = vpack.c.b16 %v889, %v888
        %v895 = vpack.c.b16 %v891, %v890
        %v896 = vpack.c.b16 %v893, %v892
        %vm900 = vcmask 392192
        %v902 = vsel %vm900, %v866, 0
        %v905 = vsel %vm900, %v867, 0
        %v908 = vsel %vm900, %v868, 0
        %v911 = vsel %vm900, %v869, 0
        %v914 = vsel %vm900, %v870, 0
        %v917 = vsel %vm900, %v871, 0
        %v920 = vsel %vm900, %v872, 0
        %v923 = vsel %vm900, %v873, 0
        %v926 = vsel %vm900, %v874, 0
        %v929 = vsel %vm900, %v875, 0
        %v932 = vsel %vm900, %v876, 0
        %v935 = vsel %vm900, %v877, 0
        %v938 = vsel %vm900, %v878, 0
        %v941 = vsel %vm900, %v879, 0
        %v944 = vsel %vm900, %v880, 0
        %v947 = vsel %vm900, %v881, 0
        %949 = vmatprep.subr.bf16.mxu0 0
        %950 = vmatpush1.bf16.msra.mxu0 %v894
        %951 = vmatprep.subr.bf16.mxu0 0
        %952 = vmatpush1.bf16.msra.mxu0 %v895
        %953 = vmatprep.subr.bf16.mxu0 0
        %954 = vmatpush1.bf16.msra.mxu0 %v896
        %955 = vmatprep.subr.bf16.mxu0 0
        %956 = vmatpush1.bf16.msra.mxu0 0
        %957 = vmatprep.subr.bf16.mxu0 0
        %958 = vmatpush1.bf16.msra.mxu0 0
        %959 = vmatprep.subr.bf16.mxu0 0
        %960 = vmatpush1.bf16.msra.mxu0 0
        %961 = vmatprep.subr.bf16.mxu0 0
        %962 = vmatpush1.bf16.msra.mxu0 0
        %963 = vmatprep.subr.bf16.mxu0 0
        %964 = vmatpush1.bf16.msra.mxu0 0
        %965 = vmatprep.subr.bf16.mxu0 0
        %966 = vmatpush1.bf16.msra.mxu0 0
        %967 = vmatprep.subr.bf16.mxu0 0
        %968 = vmatpush1.bf16.msra.mxu0 0
        %969 = vmatprep.subr.bf16.mxu0 0
        %970 = vmatpush1.bf16.msra.mxu0 0
        %971 = vmatprep.subr.bf16.mxu0 0
        %972 = vmatpush1.bf16.msra.mxu0 0
        %973 = vmatprep.subr.bf16.mxu0 0
        %974 = vmatpush1.bf16.msra.mxu0 0
        %975 = vmatprep.subr.bf16.mxu0 0
        %976 = vmatpush1.bf16.msra.mxu0 0
        %977 = vmatprep.subr.bf16.mxu0 0
        %978 = vmatpush1.bf16.msra.mxu0 0
        %979 = vmatprep.subr.bf16.mxu0 0
        %980 = vmatpush1.bf16.msra.mxu0 0
        %981 = vmatprep.mubr.bf16.mxu0 0
        %982 = vmatmul.mubr.bf16.gmra.mrb[0].mxu0 %v902
        %v983 = vpop.f32.mrb[0].mxu0
        %v984 = vadd.f32 0.0, %v983
        %v985 = vpop.f32.mrb[0].mxu0
        %v986 = vpop.f32.mrb[0].mxu0
        %v987 = vadd.f32 0.0, %v986
        %v988 = vpop.f32.mrb[0].mxu0
        %989 = vmatprep.mubr.bf16.mxu0 0
        %990 = vmatmul.mubr.bf16.gmra.mrb[0].mxu0 %v905
        %v991 = vpop.f32.mrb[0].mxu0
        %v992 = vadd.f32 0.0, %v991
        %v993 = vpop.f32.mrb[0].mxu0
        %v994 = vpop.f32.mrb[0].mxu0
        %v995 = vadd.f32 0.0, %v994
        %v996 = vpop.f32.mrb[0].mxu0
        %997 = vmatprep.mubr.bf16.mxu0 0
        %998 = vmatmul.mubr.bf16.gmra.mrb[0].mxu0 %v908
        %v999 = vpop.f32.mrb[0].mxu0
        %v1000 = vadd.f32 0.0, %v999
        %v1001 = vpop.f32.mrb[0].mxu0
        %v1002 = vpop.f32.mrb[0].mxu0
        %v1003 = vadd.f32 0.0, %v1002
        %v1004 = vpop.f32.mrb[0].mxu0
        %1005 = vmatprep.mubr.bf16.mxu0 0
        %1006 = vmatmul.mubr.bf16.gmra.mrb[0].mxu0 %v911
        %v1007 = vpop.f32.mrb[0].mxu0
        %v1008 = vadd.f32 0.0, %v1007
        %v1009 = vpop.f32.mrb[0].mxu0
        %v1010 = vpop.f32.mrb[0].mxu0
        %v1011 = vadd.f32 0.0, %v1010
        %v1012 = vpop.f32.mrb[0].mxu0
        %1013 = vmatprep.mubr.bf16.mxu0 0
        %1014 = vmatmul.mubr.bf16.gmra.mrb[0].mxu0 %v914
        %v1015 = vpop.f32.mrb[0].mxu0
        %v1016 = vadd.f32 0.0, %v1015
        %v1017 = vpop.f32.mrb[0].mxu0
        %v1018 = vpop.f32.mrb[0].mxu0
        %v1019 = vadd.f32 0.0, %v1018
        %v1020 = vpop.f32.mrb[0].mxu0
        %1021 = vmatprep.mubr.bf16.mxu0 0
        %1022 = vmatmul.mubr.bf16.gmra.mrb[0].mxu0 %v917
        %v1023 = vpop.f32.mrb[0].mxu0
        %v1024 = vadd.f32 0.0, %v1023
        %v1025 = vpop.f32.mrb[0].mxu0
        %v1026 = vpop.f32.mrb[0].mxu0
        %v1027 = vadd.f32 0.0, %v1026
        %v1028 = vpop.f32.mrb[0].mxu0
        %1029 = vmatprep.mubr.bf16.mxu0 0
        %1030 = vmatmul.mubr.bf16.gmra.mrb[0].mxu0 %v920
        %v1031 = vpop.f32.mrb[0].mxu0
        %v1032 = vadd.f32 0.0, %v1031
        %v1033 = vpop.f32.mrb[0].mxu0
        %v1034 = vpop.f32.mrb[0].mxu0
        %v1035 = vadd.f32 0.0, %v1034
        %v1036 = vpop.f32.mrb[0].mxu0
        %1037 = vmatprep.mubr.bf16.mxu0 0
        %1038 = vmatmul.mubr.bf16.gmra.mrb[0].mxu0 %v923
        %v1039 = vpop.f32.mrb[0].mxu0
        %v1040 = vadd.f32 0.0, %v1039
        %v1041 = vpop.f32.mrb[0].mxu0
        %v1042 = vpop.f32.mrb[0].mxu0
        %v1043 = vadd.f32 0.0, %v1042
        %v1044 = vpop.f32.mrb[0].mxu0
        %1045 = vmatprep.mubr.bf16.mxu0 0
        %1046 = vmatmul.mubr.bf16.gmra.mrb[0].mxu0 %v926
        %v1047 = vpop.f32.mrb[0].mxu0
        %v1048 = vadd.f32 0.0, %v1047
        %v1049 = vpop.f32.mrb[0].mxu0
        %v1050 = vpop.f32.mrb[0].mxu0
        %v1051 = vadd.f32 0.0, %v1050
        %v1052 = vpop.f32.mrb[0].mxu0
        %1053 = vmatprep.mubr.bf16.mxu0 0
        %1054 = vmatmul.mubr.bf16.gmra.mrb[0].mxu0 %v929
        %v1055 = vpop.f32.mrb[0].mxu0
        %v1056 = vadd.f32 0.0, %v1055
        %v1057 = vpop.f32.mrb[0].mxu0
        %v1058 = vpop.f32.mrb[0].mxu0
        %v1059 = vadd.f32 0.0, %v1058
        %v1060 = vpop.f32.mrb[0].mxu0
        %1061 = vmatprep.mubr.bf16.mxu0 0
        %1062 = vmatmul.mubr.bf16.gmra.mrb[0].mxu0 %v932
        %v1063 = vpop.f32.mrb[0].mxu0
        %v1064 = vadd.f32 0.0, %v1063
        %v1065 = vpop.f32.mrb[0].mxu0
        %v1066 = vpop.f32.mrb[0].mxu0
        %v1067 = vadd.f32 0.0, %v1066
        %v1068 = vpop.f32.mrb[0].mxu0
        %1069 = vmatprep.mubr.bf16.mxu0 0
        %1070 = vmatmul.mubr.bf16.gmra.mrb[0].mxu0 %v935
        %v1071 = vpop.f32.mrb[0].mxu0
        %v1072 = vadd.f32 0.0, %v1071
        %v1073 = vpop.f32.mrb[0].mxu0
        %v1074 = vpop.f32.mrb[0].mxu0
        %v1075 = vadd.f32 0.0, %v1074
        %v1076 = vpop.f32.mrb[0].mxu0
        %1077 = vmatprep.mubr.bf16.mxu0 0
        %1078 = vmatmul.mubr.bf16.gmra.mrb[0].mxu0 %v938
        %v1079 = vpop.f32.mrb[0].mxu0
        %v1080 = vadd.f32 0.0, %v1079
        %v1081 = vpop.f32.mrb[0].mxu0
        %v1082 = vpop.f32.mrb[0].mxu0
        %v1083 = vadd.f32 0.0, %v1082
        %v1084 = vpop.f32.mrb[0].mxu0
        %1085 = vmatprep.mubr.bf16.mxu0 0
        %1086 = vmatmul.mubr.bf16.gmra.mrb[0].mxu0 %v941
        %v1087 = vpop.f32.mrb[0].mxu0
        %v1088 = vadd.f32 0.0, %v1087
        %v1089 = vpop.f32.mrb[0].mxu0
        %v1090 = vpop.f32.mrb[0].mxu0
        %v1091 = vadd.f32 0.0, %v1090
        %v1092 = vpop.f32.mrb[0].mxu0
        %1093 = vmatprep.mubr.bf16.mxu0 0
        %1094 = vmatmul.mubr.bf16.gmra.mrb[0].mxu0 %v944
        %v1095 = vpop.f32.mrb[0].mxu0
        %v1096 = vadd.f32 0.0, %v1095
        %v1097 = vpop.f32.mrb[0].mxu0
        %v1098 = vpop.f32.mrb[0].mxu0
        %v1099 = vadd.f32 0.0, %v1098
        %v1100 = vpop.f32.mrb[0].mxu0
        %1101 = vmatprep.mubr.bf16.mxu0 0
        %1102 = vmatmul.mubr.bf16.gmra.mrb[0].mxu0 %v947
        %v1103 = vpop.f32.mrb[0].mxu0
        %v1104 = vadd.f32 0.0, %v1103
        %v1105 = vpop.f32.mrb[0].mxu0
        %v1106 = vpop.f32.mrb[0].mxu0
        %v1107 = vadd.f32 0.0, %v1106
        %v1108 = vpop.f32.mrb[0].mxu0
        %1109 = vdwg.mxu0
        %v1112 = vunpack.c.l.b16 %v753
        %v1113 = vunpack.c.l.b16 %v754
        %v1114 = vpack.c.b16 %v1113, %v1112
        %v1121 = vunpack.c.l.b16 %v789
        %v1122 = vunpack.c.l.b16 %v790
        %v1123 = vunpack.c.l.b16 %v791
        %v1124 = vunpack.c.l.b16 %v792
        %v1125 = vunpack.c.l.b16 %v793
        %v1126 = vunpack.c.l.b16 %v794
        %v1127 = vpack.c.b16 %v1122, %v1121
        %v1128 = vpack.c.b16 %v1124, %v1123
        %v1129 = vpack.c.b16 %v1126, %v1125
        %v1134 = vsel %vm900, %v1114, 0
        %1136 = vmatprep.subr.bf16.mxu0 0
        %1137 = vmatpush1.bf16.msra.mxu0 %v1127
        %1138 = vmatprep.subr.bf16.mxu0 0
        %1139 = vmatpush1.bf16.msra.mxu0 %v1128
        %1140 = vmatprep.subr.bf16.mxu0 0
        %1141 = vmatpush1.bf16.msra.mxu0 %v1129
        %1142 = vmatprep.subr.bf16.mxu0 0
        %1143 = vmatpush1.bf16.msra.mxu0 0
        %1144 = vmatprep.subr.bf16.mxu0 0
        %1145 = vmatpush1.bf16.msra.mxu0 0
        %1146 = vmatprep.subr.bf16.mxu0 0
        %1147 = vmatpush1.bf16.msra.mxu0 0
        %1148 = vmatprep.subr.bf16.mxu0 0
        %1149 = vmatpush1.bf16.msra.mxu0 0
        %1150 = vmatprep.subr.bf16.mxu0 0
        %1151 = vmatpush1.bf16.msra.mxu0 0
        %1152 = vmatprep.subr.bf16.mxu0 0
        %1153 = vmatpush1.bf16.msra.mxu0 0
        %1154 = vmatprep.subr.bf16.mxu0 0
        %1155 = vmatpush1.bf16.msra.mxu0 0
        %1156 = vmatprep.subr.bf16.mxu0 0
        %1157 = vmatpush1.bf16.msra.mxu0 0
        %1158 = vmatprep.subr.bf16.mxu0 0
        %1159 = vmatpush1.bf16.msra.mxu0 0
        %1160 = vmatprep.subr.bf16.mxu0 0
        %1161 = vmatpush1.bf16.msra.mxu0 0
        %1162 = vmatprep.subr.bf16.mxu0 0
        %1163 = vmatpush1.bf16.msra.mxu0 0
        %1164 = vmatprep.subr.bf16.mxu0 0
        %1165 = vmatpush1.bf16.msra.mxu0 0
        %1166 = vmatprep.subr.bf16.mxu0 0
        %1167 = vmatpush1.bf16.msra.mxu0 0
        %1168 = vmatprep.mubr.bf16.mxu0 0
        %1169 = vmatmul.mubr.bf16.gmra.mrb[0].mxu0 %v1134
        %v1170 = vpop.f32.mrb[0].mxu0
        %v1171 = vadd.f32 %v984, %v1170
        %v1172 = vpop.f32.mrb[0].mxu0
        %v1173 = vpop.f32.mrb[0].mxu0
        %v1174 = vadd.f32 %v987, %v1173
        %v1175 = vpop.f32.mrb[0].mxu0
        %1176 = vmatprep.mubr.bf16.mxu0 0
        %1177 = vmatmul.mubr.bf16.gmra.mrb[0].mxu0 %v902
        %v1178 = vpop.f32.mrb[0].mxu0
        %v1179 = vadd.f32 %v992, %v1178
        %v1180 = vpop.f32.mrb[0].mxu0
        %v1181 = vpop.f32.mrb[0].mxu0
        %v1182 = vadd.f32 %v995, %v1181
        %v1183 = vpop.f32.mrb[0].mxu0
        %1184 = vmatprep.mubr.bf16.mxu0 0
        %1185 = vmatmul.mubr.bf16.gmra.mrb[0].mxu0 %v905
        %v1186 = vpop.f32.mrb[0].mxu0
        %v1187 = vadd.f32 %v1000, %v1186
        %v1188 = vpop.f32.mrb[0].mxu0
        %v1189 = vpop.f32.mrb[0].mxu0
        %v1190 = vadd.f32 %v1003, %v1189
        %v1191 = vpop.f32.mrb[0].mxu0
        %1192 = vmatprep.mubr.bf16.mxu0 0
        %1193 = vmatmul.mubr.bf16.gmra.mrb[0].mxu0 %v908
        %v1194 = vpop.f32.mrb[0].mxu0
        %v1195 = vadd.f32 %v1008, %v1194
        %v1196 = vpop.f32.mrb[0].mxu0
        %v1197 = vpop.f32.mrb[0].mxu0
        %v1198 = vadd.f32 %v1011, %v1197
        %v1199 = vpop.f32.mrb[0].mxu0
        %1200 = vmatprep.mubr.bf16.mxu0 0
        %1201 = vmatmul.mubr.bf16.gmra.mrb[0].mxu0 %v911
        %v1202 = vpop.f32.mrb[0].mxu0
        %v1203 = vadd.f32 %v1016, %v1202
        %v1204 = vpop.f32.mrb[0].mxu0
        %v1205 = vpop.f32.mrb[0].mxu0
        %v1206 = vadd.f32 %v1019, %v1205
        %v1207 = vpop.f32.mrb[0].mxu0
        %1208 = vmatprep.mubr.bf16.mxu0 0
        %1209 = vmatmul.mubr.bf16.gmra.mrb[0].mxu0 %v914
        %v1210 = vpop.f32.mrb[0].mxu0
        %v1211 = vadd.f32 %v1024, %v1210
        %v1212 = vpop.f32.mrb[0].mxu0
        %v1213 = vpop.f32.mrb[0].mxu0
        %v1214 = vadd.f32 %v1027, %v1213
        %v1215 = vpop.f32.mrb[0].mxu0
        %1216 = vmatprep.mubr.bf16.mxu0 0
        %1217 = vmatmul.mubr.bf16.gmra.mrb[0].mxu0 %v917
        %v1218 = vpop.f32.mrb[0].mxu0
        %v1219 = vadd.f32 %v1032, %v1218
        %v1220 = vpop.f32.mrb[0].mxu0
        %v1221 = vpop.f32.mrb[0].mxu0
        %v1222 = vadd.f32 %v1035, %v1221
        %v1223 = vpop.f32.mrb[0].mxu0
        %1224 = vmatprep.mubr.bf16.mxu0 0
        %1225 = vmatmul.mubr.bf16.gmra.mrb[0].mxu0 %v920
        %v1226 = vpop.f32.mrb[0].mxu0
        %v1227 = vadd.f32 %v1040, %v1226
        %v1228 = vpop.f32.mrb[0].mxu0
        %v1229 = vpop.f32.mrb[0].mxu0
        %v1230 = vadd.f32 %v1043, %v1229
        %v1231 = vpop.f32.mrb[0].mxu0
        %1232 = vmatprep.mubr.bf16.mxu0 0
        %1233 = vmatmul.mubr.bf16.gmra.mrb[0].mxu0 %v923
        %v1234 = vpop.f32.mrb[0].mxu0
        %v1235 = vadd.f32 %v1048, %v1234
        %v1236 = vpop.f32.mrb[0].mxu0
        %v1237 = vpop.f32.mrb[0].mxu0
        %v1238 = vadd.f32 %v1051, %v1237
        %v1239 = vpop.f32.mrb[0].mxu0
        %1240 = vmatprep.mubr.bf16.mxu0 0
        %1241 = vmatmul.mubr.bf16.gmra.mrb[0].mxu0 %v926
        %v1242 = vpop.f32.mrb[0].mxu0
        %v1243 = vadd.f32 %v1056, %v1242
        %v1244 = vpop.f32.mrb[0].mxu0
        %v1245 = vpop.f32.mrb[0].mxu0
        %v1246 = vadd.f32 %v1059, %v1245
        %v1247 = vpop.f32.mrb[0].mxu0
        %1248 = vmatprep.mubr.bf16.mxu0 0
        %1249 = vmatmul.mubr.bf16.gmra.mrb[0].mxu0 %v929
        %v1250 = vpop.f32.mrb[0].mxu0
        %v1251 = vadd.f32 %v1064, %v1250
        %v1252 = vpop.f32.mrb[0].mxu0
        %v1253 = vpop.f32.mrb[0].mxu0
        %v1254 = vadd.f32 %v1067, %v1253
        %v1255 = vpop.f32.mrb[0].mxu0
        %1256 = vmatprep.mubr.bf16.mxu0 0
        %1257 = vmatmul.mubr.bf16.gmra.mrb[0].mxu0 %v932
        %v1258 = vpop.f32.mrb[0].mxu0
        %v1259 = vadd.f32 %v1072, %v1258
        %v1260 = vpop.f32.mrb[0].mxu0
        %v1261 = vpop.f32.mrb[0].mxu0
        %v1262 = vadd.f32 %v1075, %v1261
        %v1263 = vpop.f32.mrb[0].mxu0
        %1264 = vmatprep.mubr.bf16.mxu0 0
        %1265 = vmatmul.mubr.bf16.gmra.mrb[0].mxu0 %v935
        %v1266 = vpop.f32.mrb[0].mxu0
        %v1267 = vadd.f32 %v1080, %v1266
        %v1268 = vpop.f32.mrb[0].mxu0
        %v1269 = vpop.f32.mrb[0].mxu0
        %v1270 = vadd.f32 %v1083, %v1269
        %v1271 = vpop.f32.mrb[0].mxu0
        %1272 = vmatprep.mubr.bf16.mxu0 0
        %1273 = vmatmul.mubr.bf16.gmra.mrb[0].mxu0 %v938
        %v1274 = vpop.f32.mrb[0].mxu0
        %v1275 = vadd.f32 %v1088, %v1274
        %v1276 = vpop.f32.mrb[0].mxu0
        %v1277 = vpop.f32.mrb[0].mxu0
        %v1278 = vadd.f32 %v1091, %v1277
        %v1279 = vpop.f32.mrb[0].mxu0
        %1280 = vmatprep.mubr.bf16.mxu0 0
        %1281 = vmatmul.mubr.bf16.gmra.mrb[0].mxu0 %v941
        %v1282 = vpop.f32.mrb[0].mxu0
        %v1283 = vadd.f32 %v1096, %v1282
        %v1284 = vpop.f32.mrb[0].mxu0
        %v1285 = vpop.f32.mrb[0].mxu0
        %v1286 = vadd.f32 %v1099, %v1285
        %v1287 = vpop.f32.mrb[0].mxu0
        %1288 = vmatprep.mubr.bf16.mxu0 0
        %1289 = vmatmul.mubr.bf16.gmra.mrb[0].mxu0 %v944
        %v1290 = vpop.f32.mrb[0].mxu0
        %v1291 = vadd.f32 %v1104, %v1290
        %v1292 = vpop.f32.mrb[0].mxu0
        %v1293 = vpop.f32.mrb[0].mxu0
        %v1294 = vadd.f32 %v1107, %v1293
        %v1295 = vpop.f32.mrb[0].mxu0
        %1296 = vdwg.mxu0
        %s1297 = scalar_lea.vmem %s1, 144
        %v1298 = vld [vmem:[%s1297] sm:$0xf]
        %v1299 = vld [vmem:[%s1297 + $0x4] sm:$0xf]
        %v1300 = vld [vmem:[%s1297 + $0x8] sm:$0xf]
        %v1301 = vld [vmem:[%s1297 + $0xc] sm:$0xf]
        %v1302 = vld [vmem:[%s1297 + $0x10] sm:$0xf]
        %v1303 = vld [vmem:[%s1297 + $0x14] sm:$0xf]
        %v1306 = vunpack.c.l.b16 %v787
        %v1307 = vunpack.c.l.b16 %v788
        %v1308 = vpack.c.b16 %v1307, %v1306
        %v1315 = vunpack.c.l.b16 %v1298
        %v1316 = vunpack.c.l.b16 %v1299
        %v1317 = vunpack.c.l.b16 %v1300
        %v1318 = vunpack.c.l.b16 %v1301
        %v1319 = vunpack.c.l.b16 %v1302
        %v1320 = vunpack.c.l.b16 %v1303
        %v1321 = vpack.c.b16 %v1316, %v1315
        %v1322 = vpack.c.b16 %v1318, %v1317
        %v1323 = vpack.c.b16 %v1320, %v1319
        %v1328 = vsel %vm900, %v1308, 0
        %1330 = vmatprep.subr.bf16.mxu0 0
        %1331 = vmatpush1.bf16.msra.mxu0 %v1321
        %1332 = vmatprep.subr.bf16.mxu0 0
        %1333 = vmatpush1.bf16.msra.mxu0 %v1322
        %1334 = vmatprep.subr.bf16.mxu0 0
        %1335 = vmatpush1.bf16.msra.mxu0 %v1323
        %1336 = vmatprep.subr.bf16.mxu0 0
        %1337 = vmatpush1.bf16.msra.mxu0 0
        %1338 = vmatprep.subr.bf16.mxu0 0
        %1339 = vmatpush1.bf16.msra.mxu0 0
        %1340 = vmatprep.subr.bf16.mxu0 0
        %1341 = vmatpush1.bf16.msra.mxu0 0
        %1342 = vmatprep.subr.bf16.mxu0 0
        %1343 = vmatpush1.bf16.msra.mxu0 0
        %1344 = vmatprep.subr.bf16.mxu0 0
        %1345 = vmatpush1.bf16.msra.mxu0 0
        %1346 = vmatprep.subr.bf16.mxu0 0
        %1347 = vmatpush1.bf16.msra.mxu0 0
        %1348 = vmatprep.subr.bf16.mxu0 0
        %1349 = vmatpush1.bf16.msra.mxu0 0
        %1350 = vmatprep.subr.bf16.mxu0 0
        %1351 = vmatpush1.bf16.msra.mxu0 0
        %1352 = vmatprep.subr.bf16.mxu0 0
        %1353 = vmatpush1.bf16.msra.mxu0 0
        %1354 = vmatprep.subr.bf16.mxu0 0
        %1355 = vmatpush1.bf16.msra.mxu0 0
        %1356 = vmatprep.subr.bf16.mxu0 0
        %1357 = vmatpush1.bf16.msra.mxu0 0
        %1358 = vmatprep.subr.bf16.mxu0 0
        %1359 = vmatpush1.bf16.msra.mxu0 0
        %1360 = vmatprep.subr.bf16.mxu0 0
        %1361 = vmatpush1.bf16.msra.mxu0 0
        %1362 = vmatprep.mubr.bf16.mxu0 0
        %1363 = vmatmul.mubr.bf16.gmra.mrb[0].mxu0 %v905
        %v1364 = vpop.f32.mrb[0].mxu0
        %v1365 = vadd.f32 0.0, %v1364
        %v1366 = vpop.f32.mrb[0].mxu0
        %v1367 = vpop.f32.mrb[0].mxu0
        %v1368 = vadd.f32 0.0, %v1367
        %v1369 = vpop.f32.mrb[0].mxu0
        %1370 = vmatprep.mubr.bf16.mxu0 0
        %1371 = vmatmul.mubr.bf16.gmra.mrb[0].mxu0 %v908
        %v1372 = vpop.f32.mrb[0].mxu0
        %v1373 = vadd.f32 0.0, %v1372
        %v1374 = vpop.f32.mrb[0].mxu0
        %v1375 = vpop.f32.mrb[0].mxu0
        %v1376 = vadd.f32 0.0, %v1375
        %v1377 = vpop.f32.mrb[0].mxu0
        %1378 = vmatprep.mubr.bf16.mxu0 0
        %1379 = vmatmul.mubr.bf16.gmra.mrb[0].mxu0 %v911
        %v1380 = vpop.f32.mrb[0].mxu0
        %v1381 = vadd.f32 0.0, %v1380
        %v1382 = vpop.f32.mrb[0].mxu0
        %v1383 = vpop.f32.mrb[0].mxu0
        %v1384 = vadd.f32 0.0, %v1383
        %v1385 = vpop.f32.mrb[0].mxu0
        %1386 = vmatprep.mubr.bf16.mxu0 0
        %1387 = vmatmul.mubr.bf16.gmra.mrb[0].mxu0 %v914
        %v1388 = vpop.f32.mrb[0].mxu0
        %v1389 = vadd.f32 0.0, %v1388
        %v1390 = vpop.f32.mrb[0].mxu0
        %v1391 = vpop.f32.mrb[0].mxu0
        %v1392 = vadd.f32 0.0, %v1391
        %v1393 = vpop.f32.mrb[0].mxu0
        %1394 = vmatprep.mubr.bf16.mxu0 0
        %1395 = vmatmul.mubr.bf16.gmra.mrb[0].mxu0 %v917
        %v1396 = vpop.f32.mrb[0].mxu0
        %v1397 = vadd.f32 0.0, %v1396
        %v1398 = vpop.f32.mrb[0].mxu0
        %v1399 = vpop.f32.mrb[0].mxu0
        %v1400 = vadd.f32 0.0, %v1399
        %v1401 = vpop.f32.mrb[0].mxu0
        %1402 = vmatprep.mubr.bf16.mxu0 0
        %1403 = vmatmul.mubr.bf16.gmra.mrb[0].mxu0 %v920
        %v1404 = vpop.f32.mrb[0].mxu0
        %v1405 = vadd.f32 0.0, %v1404
        %v1406 = vpop.f32.mrb[0].mxu0
        %v1407 = vpop.f32.mrb[0].mxu0
        %v1408 = vadd.f32 0.0, %v1407
        %v1409 = vpop.f32.mrb[0].mxu0
        %1410 = vmatprep.mubr.bf16.mxu0 0
        %1411 = vmatmul.mubr.bf16.gmra.mrb[0].mxu0 %v923
        %v1412 = vpop.f32.mrb[0].mxu0
        %v1413 = vadd.f32 0.0, %v1412
        %v1414 = vpop.f32.mrb[0].mxu0
        %v1415 = vpop.f32.mrb[0].mxu0
        %v1416 = vadd.f32 0.0, %v1415
        %v1417 = vpop.f32.mrb[0].mxu0
        %1418 = vmatprep.mubr.bf16.mxu0 0
        %1419 = vmatmul.mubr.bf16.gmra.mrb[0].mxu0 %v926
        %v1420 = vpop.f32.mrb[0].mxu0
        %v1421 = vadd.f32 0.0, %v1420
        %v1422 = vpop.f32.mrb[0].mxu0
        %v1423 = vpop.f32.mrb[0].mxu0
        %v1424 = vadd.f32 0.0, %v1423
        %v1425 = vpop.f32.mrb[0].mxu0
        %1426 = vmatprep.mubr.bf16.mxu0 0
        %1427 = vmatmul.mubr.bf16.gmra.mrb[0].mxu0 %v929
        %v1428 = vpop.f32.mrb[0].mxu0
        %v1429 = vadd.f32 0.0, %v1428
        %v1430 = vpop.f32.mrb[0].mxu0
        %v1431 = vpop.f32.mrb[0].mxu0
        %v1432 = vadd.f32 0.0, %v1431
        %v1433 = vpop.f32.mrb[0].mxu0
        %1434 = vmatprep.mubr.bf16.mxu0 0
        %1435 = vmatmul.mubr.bf16.gmra.mrb[0].mxu0 %v932
        %v1436 = vpop.f32.mrb[0].mxu0
        %v1437 = vadd.f32 0.0, %v1436
        %v1438 = vpop.f32.mrb[0].mxu0
        %v1439 = vpop.f32.mrb[0].mxu0
        %v1440 = vadd.f32 0.0, %v1439
        %v1441 = vpop.f32.mrb[0].mxu0
        %1442 = vmatprep.mubr.bf16.mxu0 0
        %1443 = vmatmul.mubr.bf16.gmra.mrb[0].mxu0 %v935
        %v1444 = vpop.f32.mrb[0].mxu0
        %v1445 = vadd.f32 0.0, %v1444
        %v1446 = vpop.f32.mrb[0].mxu0
        %v1447 = vpop.f32.mrb[0].mxu0
        %v1448 = vadd.f32 0.0, %v1447
        %v1449 = vpop.f32.mrb[0].mxu0
        %1450 = vmatprep.mubr.bf16.mxu0 0
        %1451 = vmatmul.mubr.bf16.gmra.mrb[0].mxu0 %v938
        %v1452 = vpop.f32.mrb[0].mxu0
        %v1453 = vadd.f32 0.0, %v1452
        %v1454 = vpop.f32.mrb[0].mxu0
        %v1455 = vpop.f32.mrb[0].mxu0
        %v1456 = vadd.f32 0.0, %v1455
        %v1457 = vpop.f32.mrb[0].mxu0
        %1458 = vmatprep.mubr.bf16.mxu0 0
        %1459 = vmatmul.mubr.bf16.gmra.mrb[0].mxu0 %v941
        %v1460 = vpop.f32.mrb[0].mxu0
        %v1461 = vadd.f32 0.0, %v1460
        %v1462 = vpop.f32.mrb[0].mxu0
        %v1463 = vpop.f32.mrb[0].mxu0
        %v1464 = vadd.f32 0.0, %v1463
        %v1465 = vpop.f32.mrb[0].mxu0
        %1466 = vmatprep.mubr.bf16.mxu0 0
        %1467 = vmatmul.mubr.bf16.gmra.mrb[0].mxu0 %v944
        %v1468 = vpop.f32.mrb[0].mxu0
        %v1469 = vadd.f32 0.0, %v1468
        %v1470 = vpop.f32.mrb[0].mxu0
        %v1471 = vpop.f32.mrb[0].mxu0
        %v1472 = vadd.f32 0.0, %v1471
        %v1473 = vpop.f32.mrb[0].mxu0
        %1474 = vmatprep.mubr.bf16.mxu0 0
        %1475 = vmatmul.mubr.bf16.gmra.mrb[0].mxu0 %v947
        %v1476 = vpop.f32.mrb[0].mxu0
        %v1477 = vadd.f32 0.0, %v1476
        %v1478 = vpop.f32.mrb[0].mxu0
        %v1479 = vpop.f32.mrb[0].mxu0
        %v1480 = vadd.f32 0.0, %v1479
        %v1481 = vpop.f32.mrb[0].mxu0
        %1482 = vmatprep.mubr.bf16.mxu0 0
        %1483 = vmatmul.mubr.bf16.gmra.mrb[0].mxu0 %v1328
        %v1484 = vpop.f32.mrb[0].mxu0
        %v1485 = vadd.f32 0.0, %v1484
        %v1486 = vpop.f32.mrb[0].mxu0
        %v1487 = vpop.f32.mrb[0].mxu0
        %v1488 = vadd.f32 0.0, %v1487
        %v1489 = vpop.f32.mrb[0].mxu0
        %1490 = vdwg.mxu0
        %v1491 = vadd.f32 %v1171, %v1365
        %v1492 = vadd.f32 %v1174, %v1368
        %v1493 = vadd.f32 %v1179, %v1373
        %v1494 = vadd.f32 %v1182, %v1376
        %v1495 = vadd.f32 %v1187, %v1381
        %v1496 = vadd.f32 %v1190, %v1384
        %v1497 = vadd.f32 %v1195, %v1389
        %v1498 = vadd.f32 %v1198, %v1392
        %v1499 = vadd.f32 %v1203, %v1397
        %v1500 = vadd.f32 %v1206, %v1400
        %v1501 = vadd.f32 %v1211, %v1405
        %v1502 = vadd.f32 %v1214, %v1408
        %v1503 = vadd.f32 %v1219, %v1413
        %v1504 = vadd.f32 %v1222, %v1416
        %v1505 = vadd.f32 %v1227, %v1421
        %v1506 = vadd.f32 %v1230, %v1424
        %v1507 = vadd.f32 %v1235, %v1429
        %v1508 = vadd.f32 %v1238, %v1432
        %v1509 = vadd.f32 %v1243, %v1437
        %v1510 = vadd.f32 %v1246, %v1440
        %v1511 = vadd.f32 %v1251, %v1445
        %v1512 = vadd.f32 %v1254, %v1448
        %v1513 = vadd.f32 %v1259, %v1453
        %v1514 = vadd.f32 %v1262, %v1456
        %v1515 = vadd.f32 %v1267, %v1461
        %v1516 = vadd.f32 %v1270, %v1464
        %v1517 = vadd.f32 %v1275, %v1469
        %v1518 = vadd.f32 %v1278, %v1472
        %v1519 = vadd.f32 %v1283, %v1477
        %v1520 = vadd.f32 %v1286, %v1480
        %v1521 = vadd.f32 %v1291, %v1485
        %v1522 = vadd.f32 %v1294, %v1488
        %v1523 = vld [vmem:[#allocation2] sm:$0xf]
        %v1524 = vld [vmem:[#allocation2 + $0x4] sm:$0xf]
        %v1525 = vld [vmem:[#allocation2 + $0x8] sm:$0x1]
        %v1526 = vld [vmem:[#allocation2 + $0xc] sm:$0xf]
        %v1527 = vld [vmem:[#allocation2 + $0x10] sm:$0xf]
        %v1528 = vld [vmem:[#allocation2 + $0x14] sm:$0x1]
        %v1529 = vld [vmem:[#allocation2 + $0x18] sm:$0xf]
        %v1530 = vld [vmem:[#allocation2 + $0x1c] sm:$0xf]
        %v1531 = vld [vmem:[#allocation2 + $0x20] sm:$0x1]
        %v1532 = vld [vmem:[#allocation2 + $0x24] sm:$0xf]
        %v1533 = vld [vmem:[#allocation2 + $0x28] sm:$0xf]
        %v1534 = vld [vmem:[#allocation2 + $0x2c] sm:$0x1]
        %v1535 = vld [vmem:[#allocation2 + $0x30] sm:$0xf]
        %v1536 = vld [vmem:[#allocation2 + $0x34] sm:$0xf]
        %v1537 = vld [vmem:[#allocation2 + $0x38] sm:$0x1]
        %v1538 = vld [vmem:[#allocation2 + $0x3c] sm:$0xf]
        %v1539 = vld [vmem:[#allocation2 + $0x40] sm:$0xf]
        %v1540 = vld [vmem:[#allocation2 + $0x44] sm:$0x1]
        %v1541 = vld [vmem:[#allocation2 + $0x48] sm:$0xf]
        %v1542 = vld [vmem:[#allocation2 + $0x4c] sm:$0xf]
        %v1543 = vld [vmem:[#allocation2 + $0x50] sm:$0x1]
        %v1544 = vld [vmem:[#allocation2 + $0x54] sm:$0xf]
        %v1545 = vld [vmem:[#allocation2 + $0x58] sm:$0xf]
        %v1546 = vld [vmem:[#allocation2 + $0x5c] sm:$0x1]
        %v1547 = vld [vmem:[#allocation2 + $0x60] sm:$0xf]
        %v1548 = vld [vmem:[#allocation2 + $0x64] sm:$0xf]
        %v1549 = vld [vmem:[#allocation2 + $0x68] sm:$0x1]
        %v1550 = vld [vmem:[#allocation2 + $0x6c] sm:$0xf]
        %v1551 = vld [vmem:[#allocation2 + $0x70] sm:$0xf]
        %v1552 = vld [vmem:[#allocation2 + $0x74] sm:$0x1]
        %v1553 = vld [vmem:[#allocation2 + $0x78] sm:$0xf]
        %v1554 = vld [vmem:[#allocation2 + $0x7c] sm:$0xf]
        %v1555 = vld [vmem:[#allocation2 + $0x80] sm:$0x1]
        %v1556 = vld [vmem:[#allocation2 + $0x84] sm:$0xf]
        %v1557 = vld [vmem:[#allocation2 + $0x88] sm:$0xf]
        %v1558 = vld [vmem:[#allocation2 + $0x8c] sm:$0x1]
        %v1559 = vld [vmem:[#allocation2 + $0x90] sm:$0xf]
        %v1560 = vld [vmem:[#allocation2 + $0x94] sm:$0xf]
        %v1561 = vld [vmem:[#allocation2 + $0x98] sm:$0x1]
        %v1562 = vld [vmem:[#allocation2 + $0x9c] sm:$0xf]
        %v1563 = vld [vmem:[#allocation2 + $0xa0] sm:$0xf]
        %v1564 = vld [vmem:[#allocation2 + $0xa4] sm:$0x1]
        %v1565 = vld [vmem:[#allocation2 + $0xa8] sm:$0xf]
        %v1566 = vld [vmem:[#allocation2 + $0xac] sm:$0xf]
        %v1567 = vld [vmem:[#allocation2 + $0xb0] sm:$0x1]
        %v1568 = vld [vmem:[#allocation2 + $0xb4] sm:$0xf]
        %v1569 = vld [vmem:[#allocation2 + $0xb8] sm:$0xf]
        %v1570 = vld [vmem:[#allocation2 + $0xbc] sm:$0x1]
        %v1571 = vld [vmem:[#allocation2 + $0xc0] sm:$0xf]
        %v1572 = vld [vmem:[#allocation2 + $0xc4] sm:$0xf]
        %v1573 = vld [vmem:[#allocation2 + $0xc8] sm:$0x1]
        %v1574 = vld [vmem:[#allocation2 + $0xcc] sm:$0xf]
        %v1575 = vld [vmem:[#allocation2 + $0xd0] sm:$0xf]
        %v1576 = vld [vmem:[#allocation2 + $0xd4] sm:$0x1]
        %vm1577 = vsmask.f32 3328
        %vm1578 = vsmask.f32 7440
        %vm1579 = vmor %vm1577, %vm1578
        %v1581 = vshrl.u32 %v1523, 16
        %v1583 = vrot.slane %v1581, 4
        %v1584 = vshll.u32 %v1523, 16
        %v1586 = vrot.slane %v1584, 5
        %v1587 = vor.u32 %v1583, %v1586
        %v1588 = vrot.slane %v1587, 4
        %v1590 = vshll.u32 %v1524, 16
        %v1592 = vrot.slane %v1590, 5
        %v1593 = vsel %vm1579, %v1588, %v1592
        %v1594 = vshrl.u32 %v1524, 16
        %v1596 = vrot.slane %v1594, 4
        %v1597 = vor.u32 %v1596, %v1592
        %v1598 = vrot.slane %v1597, 4
        %v1600 = vshll.u32 %v1525, 16
        %v1602 = vrot.slane %v1600, 5
        %v1603 = vsel %vm1579, %v1598, %v1602
        %v1605 = vshrl.u32 %v1526, 16
        %v1607 = vrot.slane %v1605, 4
        %v1608 = vshll.u32 %v1526, 16
        %v1610 = vrot.slane %v1608, 5
        %v1611 = vor.u32 %v1607, %v1610
        %v1612 = vrot.slane %v1611, 4
        %v1614 = vshll.u32 %v1527, 16
        %v1616 = vrot.slane %v1614, 5
        %v1617 = vsel %vm1579, %v1612, %v1616
        %v1618 = vshrl.u32 %v1527, 16
        %v1620 = vrot.slane %v1618, 4
        %v1621 = vor.u32 %v1620, %v1616
        %v1622 = vrot.slane %v1621, 4
        %v1624 = vshll.u32 %v1528, 16
        %v1626 = vrot.slane %v1624, 5
        %v1627 = vsel %vm1579, %v1622, %v1626
        %v1629 = vshrl.u32 %v1529, 16
        %v1631 = vrot.slane %v1629, 4
        %v1632 = vshll.u32 %v1529, 16
        %v1634 = vrot.slane %v1632, 5
        %v1635 = vor.u32 %v1631, %v1634
        %v1636 = vrot.slane %v1635, 4
        %v1638 = vshll.u32 %v1530, 16
        %v1640 = vrot.slane %v1638, 5
        %v1641 = vsel %vm1579, %v1636, %v1640
        %v1642 = vshrl.u32 %v1530, 16
        %v1644 = vrot.slane %v1642, 4
        %v1645 = vor.u32 %v1644, %v1640
        %v1646 = vrot.slane %v1645, 4
        %v1648 = vshll.u32 %v1531, 16
        %v1650 = vrot.slane %v1648, 5
        %v1651 = vsel %vm1579, %v1646, %v1650
        %v1653 = vshrl.u32 %v1532, 16
        %v1655 = vrot.slane %v1653, 4
        %v1656 = vshll.u32 %v1532, 16
        %v1658 = vrot.slane %v1656, 5
        %v1659 = vor.u32 %v1655, %v1658
        %v1660 = vrot.slane %v1659, 4
        %v1662 = vshll.u32 %v1533, 16
        %v1664 = vrot.slane %v1662, 5
        %v1665 = vsel %vm1579, %v1660, %v1664
        %v1666 = vshrl.u32 %v1533, 16
        %v1668 = vrot.slane %v1666, 4
        %v1669 = vor.u32 %v1668, %v1664
        %v1670 = vrot.slane %v1669, 4
        %v1672 = vshll.u32 %v1534, 16
        %v1674 = vrot.slane %v1672, 5
        %v1675 = vsel %vm1579, %v1670, %v1674
        %v1677 = vshrl.u32 %v1535, 16
        %v1679 = vrot.slane %v1677, 4
        %v1680 = vshll.u32 %v1535, 16
        %v1682 = vrot.slane %v1680, 5
        %v1683 = vor.u32 %v1679, %v1682
        %v1684 = vrot.slane %v1683, 4
        %v1686 = vshll.u32 %v1536, 16
        %v1688 = vrot.slane %v1686, 5
        %v1689 = vsel %vm1579, %v1684, %v1688
        %v1690 = vshrl.u32 %v1536, 16
        %v1692 = vrot.slane %v1690, 4
        %v1693 = vor.u32 %v1692, %v1688
        %v1694 = vrot.slane %v1693, 4
        %v1696 = vshll.u32 %v1537, 16
        %v1698 = vrot.slane %v1696, 5
        %v1699 = vsel %vm1579, %v1694, %v1698
        %v1701 = vshrl.u32 %v1538, 16
        %v1703 = vrot.slane %v1701, 4
        %v1704 = vshll.u32 %v1538, 16
        %v1706 = vrot.slane %v1704, 5
        %v1707 = vor.u32 %v1703, %v1706
        %v1708 = vrot.slane %v1707, 4
        %v1710 = vshll.u32 %v1539, 16
        %v1712 = vrot.slane %v1710, 5
        %v1713 = vsel %vm1579, %v1708, %v1712
        %v1714 = vshrl.u32 %v1539, 16
        %v1716 = vrot.slane %v1714, 4
        %v1717 = vor.u32 %v1716, %v1712
        %v1718 = vrot.slane %v1717, 4
        %v1720 = vshll.u32 %v1540, 16
        %v1722 = vrot.slane %v1720, 5
        %v1723 = vsel %vm1579, %v1718, %v1722
        %v1725 = vshrl.u32 %v1541, 16
        %v1727 = vrot.slane %v1725, 4
        %v1728 = vshll.u32 %v1541, 16
        %v1730 = vrot.slane %v1728, 5
        %v1731 = vor.u32 %v1727, %v1730
        %v1732 = vrot.slane %v1731, 4
        %v1734 = vshll.u32 %v1542, 16
        %v1736 = vrot.slane %v1734, 5
        %v1737 = vsel %vm1579, %v1732, %v1736
        %v1738 = vshrl.u32 %v1542, 16
        %v1740 = vrot.slane %v1738, 4
        %v1741 = vor.u32 %v1740, %v1736
        %v1742 = vrot.slane %v1741, 4
        %v1744 = vshll.u32 %v1543, 16
        %v1746 = vrot.slane %v1744, 5
        %v1747 = vsel %vm1579, %v1742, %v1746
        %v1749 = vshrl.u32 %v1544, 16
        %v1751 = vrot.slane %v1749, 4
        %v1752 = vshll.u32 %v1544, 16
        %v1754 = vrot.slane %v1752, 5
        %v1755 = vor.u32 %v1751, %v1754
        %v1756 = vrot.slane %v1755, 4
        %v1758 = vshll.u32 %v1545, 16
        %v1760 = vrot.slane %v1758, 5
        %v1761 = vsel %vm1579, %v1756, %v1760
        %v1762 = vshrl.u32 %v1545, 16
        %v1764 = vrot.slane %v1762, 4
        %v1765 = vor.u32 %v1764, %v1760
        %v1766 = vrot.slane %v1765, 4
        %v1768 = vshll.u32 %v1546, 16
        %v1770 = vrot.slane %v1768, 5
        %v1771 = vsel %vm1579, %v1766, %v1770
        %v1773 = vshrl.u32 %v1547, 16
        %v1775 = vrot.slane %v1773, 4
        %v1776 = vshll.u32 %v1547, 16
        %v1778 = vrot.slane %v1776, 5
        %v1779 = vor.u32 %v1775, %v1778
        %v1780 = vrot.slane %v1779, 4
        %v1782 = vshll.u32 %v1548, 16
        %v1784 = vrot.slane %v1782, 5
        %v1785 = vsel %vm1579, %v1780, %v1784
        %v1786 = vshrl.u32 %v1548, 16
        %v1788 = vrot.slane %v1786, 4
        %v1789 = vor.u32 %v1788, %v1784
        %v1790 = vrot.slane %v1789, 4
        %v1792 = vshll.u32 %v1549, 16
        %v1794 = vrot.slane %v1792, 5
        %v1795 = vsel %vm1579, %v1790, %v1794
        %v1797 = vshrl.u32 %v1550, 16
        %v1799 = vrot.slane %v1797, 4
        %v1800 = vshll.u32 %v1550, 16
        %v1802 = vrot.slane %v1800, 5
        %v1803 = vor.u32 %v1799, %v1802
        %v1804 = vrot.slane %v1803, 4
        %v1806 = vshll.u32 %v1551, 16
        %v1808 = vrot.slane %v1806, 5
        %v1809 = vsel %vm1579, %v1804, %v1808
        %v1810 = vshrl.u32 %v1551, 16
        %v1812 = vrot.slane %v1810, 4
        %v1813 = vor.u32 %v1812, %v1808
        %v1814 = vrot.slane %v1813, 4
        %v1816 = vshll.u32 %v1552, 16
        %v1818 = vrot.slane %v1816, 5
        %v1819 = vsel %vm1579, %v1814, %v1818
        %v1821 = vshrl.u32 %v1553, 16
        %v1823 = vrot.slane %v1821, 4
        %v1824 = vshll.u32 %v1553, 16
        %v1826 = vrot.slane %v1824, 5
        %v1827 = vor.u32 %v1823, %v1826
        %v1828 = vrot.slane %v1827, 4
        %v1830 = vshll.u32 %v1554, 16
        %v1832 = vrot.slane %v1830, 5
        %v1833 = vsel %vm1579, %v1828, %v1832
        %v1834 = vshrl.u32 %v1554, 16
        %v1836 = vrot.slane %v1834, 4
        %v1837 = vor.u32 %v1836, %v1832
        %v1838 = vrot.slane %v1837, 4
        %v1840 = vshll.u32 %v1555, 16
        %v1842 = vrot.slane %v1840, 5
        %v1843 = vsel %vm1579, %v1838, %v1842
        %v1845 = vshrl.u32 %v1556, 16
        %v1847 = vrot.slane %v1845, 4
        %v1848 = vshll.u32 %v1556, 16
        %v1850 = vrot.slane %v1848, 5
        %v1851 = vor.u32 %v1847, %v1850
        %v1852 = vrot.slane %v1851, 4
        %v1854 = vshll.u32 %v1557, 16
        %v1856 = vrot.slane %v1854, 5
        %v1857 = vsel %vm1579, %v1852, %v1856
        %v1858 = vshrl.u32 %v1557, 16
        %v1860 = vrot.slane %v1858, 4
        %v1861 = vor.u32 %v1860, %v1856
        %v1862 = vrot.slane %v1861, 4
        %v1864 = vshll.u32 %v1558, 16
        %v1866 = vrot.slane %v1864, 5
        %v1867 = vsel %vm1579, %v1862, %v1866
        %v1869 = vshrl.u32 %v1559, 16
        %v1871 = vrot.slane %v1869, 4
        %v1872 = vshll.u32 %v1559, 16
        %v1874 = vrot.slane %v1872, 5
        %v1875 = vor.u32 %v1871, %v1874
        %v1876 = vrot.slane %v1875, 4
        %v1878 = vshll.u32 %v1560, 16
        %v1880 = vrot.slane %v1878, 5
        %v1881 = vsel %vm1579, %v1876, %v1880
        %v1882 = vshrl.u32 %v1560, 16
        %v1884 = vrot.slane %v1882, 4
        %v1885 = vor.u32 %v1884, %v1880
        %v1886 = vrot.slane %v1885, 4
        %v1888 = vshll.u32 %v1561, 16
        %v1890 = vrot.slane %v1888, 5
        %v1891 = vsel %vm1579, %v1886, %v1890
        %v1893 = vshrl.u32 %v1562, 16
        %v1895 = vrot.slane %v1893, 4
        %v1896 = vshll.u32 %v1562, 16
        %v1898 = vrot.slane %v1896, 5
        %v1899 = vor.u32 %v1895, %v1898
        %v1900 = vrot.slane %v1899, 4
        %v1902 = vshll.u32 %v1563, 16
        %v1904 = vrot.slane %v1902, 5
        %v1905 = vsel %vm1579, %v1900, %v1904
        %v1906 = vshrl.u32 %v1563, 16
        %v1908 = vrot.slane %v1906, 4
        %v1909 = vor.u32 %v1908, %v1904
        %v1910 = vrot.slane %v1909, 4
        %v1912 = vshll.u32 %v1564, 16
        %v1914 = vrot.slane %v1912, 5
        %v1915 = vsel %vm1579, %v1910, %v1914
        %v1917 = vshrl.u32 %v1565, 16
        %v1919 = vrot.slane %v1917, 4
        %v1920 = vshll.u32 %v1565, 16
        %v1922 = vrot.slane %v1920, 5
        %v1923 = vor.u32 %v1919, %v1922
        %v1924 = vrot.slane %v1923, 4
        %v1926 = vshll.u32 %v1566, 16
        %v1928 = vrot.slane %v1926, 5
        %v1929 = vsel %vm1579, %v1924, %v1928
        %v1930 = vshrl.u32 %v1566, 16
        %v1932 = vrot.slane %v1930, 4
        %v1933 = vor.u32 %v1932, %v1928
        %v1934 = vrot.slane %v1933, 4
        %v1936 = vshll.u32 %v1567, 16
        %v1938 = vrot.slane %v1936, 5
        %v1939 = vsel %vm1579, %v1934, %v1938
        %v1941 = vshrl.u32 %v1568, 16
        %v1943 = vrot.slane %v1941, 4
        %v1944 = vshll.u32 %v1568, 16
        %v1946 = vrot.slane %v1944, 5
        %v1947 = vor.u32 %v1943, %v1946
        %v1948 = vrot.slane %v1947, 4
        %v1950 = vshll.u32 %v1569, 16
        %v1952 = vrot.slane %v1950, 5
        %v1953 = vsel %vm1579, %v1948, %v1952
        %v1954 = vshrl.u32 %v1569, 16
        %v1956 = vrot.slane %v1954, 4
        %v1957 = vor.u32 %v1956, %v1952
        %v1958 = vrot.slane %v1957, 4
        %v1960 = vshll.u32 %v1570, 16
        %v1962 = vrot.slane %v1960, 5
        %v1963 = vsel %vm1579, %v1958, %v1962
        %s1964 = scalar_lea.vmem %s1, 24
        %v1965 = vld [vmem:[%s1964] sm:$0xf]
        %v1966 = vld [vmem:[%s1964 + $0x4] sm:$0xf]
        %v1967 = vld [vmem:[%s1964 + $0x8] sm:$0xf]
        %v1968 = vld [vmem:[%s1964 + $0xc] sm:$0xf]
        %v1969 = vld [vmem:[%s1964 + $0x10] sm:$0xf]
        %v1970 = vld [vmem:[%s1964 + $0x14] sm:$0xf]
        %v1971 = vunpack.c.l.b16 %v1593
        %v1972 = vunpack.c.l.b16 %v1603
        %v1973 = vunpack.c.l.b16 %v1617
        %v1974 = vunpack.c.l.b16 %v1627
        %v1975 = vunpack.c.l.b16 %v1641
        %v1976 = vunpack.c.l.b16 %v1651
        %v1977 = vunpack.c.l.b16 %v1665
        %v1978 = vunpack.c.l.b16 %v1675
        %v1979 = vunpack.c.l.b16 %v1689
        %v1980 = vunpack.c.l.b16 %v1699
        %v1981 = vunpack.c.l.b16 %v1713
        %v1982 = vunpack.c.l.b16 %v1723
        %v1983 = vunpack.c.l.b16 %v1737
        %v1984 = vunpack.c.l.b16 %v1747
        %v1985 = vunpack.c.l.b16 %v1761
        %v1986 = vunpack.c.l.b16 %v1771
        %v1987 = vunpack.c.l.b16 %v1785
        %v1988 = vunpack.c.l.b16 %v1795
        %v1989 = vunpack.c.l.b16 %v1809
        %v1990 = vunpack.c.l.b16 %v1819
        %v1991 = vunpack.c.l.b16 %v1833
        %v1992 = vunpack.c.l.b16 %v1843
        %v1993 = vunpack.c.l.b16 %v1857
        %v1994 = vunpack.c.l.b16 %v1867
        %v1995 = vunpack.c.l.b16 %v1881
        %v1996 = vunpack.c.l.b16 %v1891
        %v1997 = vunpack.c.l.b16 %v1905
        %v1998 = vunpack.c.l.b16 %v1915
        %v1999 = vunpack.c.l.b16 %v1929
        %v2000 = vunpack.c.l.b16 %v1939
        %v2001 = vunpack.c.l.b16 %v1953
        %v2002 = vunpack.c.l.b16 %v1963
        %v2003 = vpack.c.b16 %v1972, %v1971
        %v2004 = vpack.c.b16 %v1974, %v1973
        %v2005 = vpack.c.b16 %v1976, %v1975
        %v2006 = vpack.c.b16 %v1978, %v1977
        %v2007 = vpack.c.b16 %v1980, %v1979
        %v2008 = vpack.c.b16 %v1982, %v1981
        %v2009 = vpack.c.b16 %v1984, %v1983
        %v2010 = vpack.c.b16 %v1986, %v1985
        %v2011 = vpack.c.b16 %v1988, %v1987
        %v2012 = vpack.c.b16 %v1990, %v1989
        %v2013 = vpack.c.b16 %v1992, %v1991
        %v2014 = vpack.c.b16 %v1994, %v1993
        %v2015 = vpack.c.b16 %v1996, %v1995
        %v2016 = vpack.c.b16 %v1998, %v1997
        %v2017 = vpack.c.b16 %v2000, %v1999
        %v2018 = vpack.c.b16 %v2002, %v2001
        %v2025 = vunpack.c.l.b16 %v1965
        %v2026 = vunpack.c.l.b16 %v1966
        %v2027 = vunpack.c.l.b16 %v1967
        %v2028 = vunpack.c.l.b16 %v1968
        %v2029 = vunpack.c.l.b16 %v1969
        %v2030 = vunpack.c.l.b16 %v1970
        %v2031 = vpack.c.b16 %v2026, %v2025
        %v2032 = vpack.c.b16 %v2028, %v2027
        %v2033 = vpack.c.b16 %v2030, %v2029
        %v2038 = vsel %vm900, %v2003, 0
        %v2041 = vsel %vm900, %v2004, 0
        %v2044 = vsel %vm900, %v2005, 0
        %v2047 = vsel %vm900, %v2006, 0
        %v2050 = vsel %vm900, %v2007, 0
        %v2053 = vsel %vm900, %v2008, 0
        %v2056 = vsel %vm900, %v2009, 0
        %v2059 = vsel %vm900, %v2010, 0
        %v2062 = vsel %vm900, %v2011, 0
        %v2065 = vsel %vm900, %v2012, 0
        %v2068 = vsel %vm900, %v2013, 0
        %v2071 = vsel %vm900, %v2014, 0
        %v2074 = vsel %vm900, %v2015, 0
        %v2077 = vsel %vm900, %v2016, 0
        %v2080 = vsel %vm900, %v2017, 0
        %v2083 = vsel %vm900, %v2018, 0
        %2085 = vmatprep.subr.bf16.mxu0 0
        %2086 = vmatpush1.bf16.msra.mxu0 %v2031
        %2087 = vmatprep.subr.bf16.mxu0 0
        %2088 = vmatpush1.bf16.msra.mxu0 %v2032
        %2089 = vmatprep.subr.bf16.mxu0 0
        %2090 = vmatpush1.bf16.msra.mxu0 %v2033
        %2091 = vmatprep.subr.bf16.mxu0 0
        %2092 = vmatpush1.bf16.msra.mxu0 0
        %2093 = vmatprep.subr.bf16.mxu0 0
        %2094 = vmatpush1.bf16.msra.mxu0 0
        %2095 = vmatprep.subr.bf16.mxu0 0
        %2096 = vmatpush1.bf16.msra.mxu0 0
        %2097 = vmatprep.subr.bf16.mxu0 0
        %2098 = vmatpush1.bf16.msra.mxu0 0
        %2099 = vmatprep.subr.bf16.mxu0 0
        %2100 = vmatpush1.bf16.msra.mxu0 0
        %2101 = vmatprep.subr.bf16.mxu0 0
        %2102 = vmatpush1.bf16.msra.mxu0 0
        %2103 = vmatprep.subr.bf16.mxu0 0
        %2104 = vmatpush1.bf16.msra.mxu0 0
        %2105 = vmatprep.subr.bf16.mxu0 0
        %2106 = vmatpush1.bf16.msra.mxu0 0
        %2107 = vmatprep.subr.bf16.mxu0 0
        %2108 = vmatpush1.bf16.msra.mxu0 0
        %2109 = vmatprep.subr.bf16.mxu0 0
        %2110 = vmatpush1.bf16.msra.mxu0 0
        %2111 = vmatprep.subr.bf16.mxu0 0
        %2112 = vmatpush1.bf16.msra.mxu0 0
        %2113 = vmatprep.subr.bf16.mxu0 0
        %2114 = vmatpush1.bf16.msra.mxu0 0
        %2115 = vmatprep.subr.bf16.mxu0 0
        %2116 = vmatpush1.bf16.msra.mxu0 0
        %2117 = vmatprep.mubr.bf16.mxu0 0
        %2118 = vmatmul.mubr.bf16.gmra.mrb[0].mxu0 %v2038
        %v2119 = vpop.f32.mrb[0].mxu0
        %v2120 = vadd.f32 0.0, %v2119
        %v2121 = vpop.f32.mrb[0].mxu0
        %v2122 = vpop.f32.mrb[0].mxu0
        %v2123 = vadd.f32 0.0, %v2122
        %v2124 = vpop.f32.mrb[0].mxu0
        %2125 = vmatprep.mubr.bf16.mxu0 0
        %2126 = vmatmul.mubr.bf16.gmra.mrb[0].mxu0 %v2041
        %v2127 = vpop.f32.mrb[0].mxu0
        %v2128 = vadd.f32 0.0, %v2127
        %v2129 = vpop.f32.mrb[0].mxu0
        %v2130 = vpop.f32.mrb[0].mxu0
        %v2131 = vadd.f32 0.0, %v2130
        %v2132 = vpop.f32.mrb[0].mxu0
        %2133 = vmatprep.mubr.bf16.mxu0 0
        %2134 = vmatmul.mubr.bf16.gmra.mrb[0].mxu0 %v2044
        %v2135 = vpop.f32.mrb[0].mxu0
        %v2136 = vadd.f32 0.0, %v2135
        %v2137 = vpop.f32.mrb[0].mxu0
        %v2138 = vpop.f32.mrb[0].mxu0
        %v2139 = vadd.f32 0.0, %v2138
        %v2140 = vpop.f32.mrb[0].mxu0
        %2141 = vmatprep.mubr.bf16.mxu0 0
        %2142 = vmatmul.mubr.bf16.gmra.mrb[0].mxu0 %v2047
        %v2143 = vpop.f32.mrb[0].mxu0
        %v2144 = vadd.f32 0.0, %v2143
        %v2145 = vpop.f32.mrb[0].mxu0
        %v2146 = vpop.f32.mrb[0].mxu0
        %v2147 = vadd.f32 0.0, %v2146
        %v2148 = vpop.f32.mrb[0].mxu0
        %2149 = vmatprep.mubr.bf16.mxu0 0
        %2150 = vmatmul.mubr.bf16.gmra.mrb[0].mxu0 %v2050
        %v2151 = vpop.f32.mrb[0].mxu0
        %v2152 = vadd.f32 0.0, %v2151
        %v2153 = vpop.f32.mrb[0].mxu0
        %v2154 = vpop.f32.mrb[0].mxu0
        %v2155 = vadd.f32 0.0, %v2154
        %v2156 = vpop.f32.mrb[0].mxu0
        %2157 = vmatprep.mubr.bf16.mxu0 0
        %2158 = vmatmul.mubr.bf16.gmra.mrb[0].mxu0 %v2053
        %v2159 = vpop.f32.mrb[0].mxu0
        %v2160 = vadd.f32 0.0, %v2159
        %v2161 = vpop.f32.mrb[0].mxu0
        %v2162 = vpop.f32.mrb[0].mxu0
        %v2163 = vadd.f32 0.0, %v2162
        %v2164 = vpop.f32.mrb[0].mxu0
        %2165 = vmatprep.mubr.bf16.mxu0 0
        %2166 = vmatmul.mubr.bf16.gmra.mrb[0].mxu0 %v2056
        %v2167 = vpop.f32.mrb[0].mxu0
        %v2168 = vadd.f32 0.0, %v2167
        %v2169 = vpop.f32.mrb[0].mxu0
        %v2170 = vpop.f32.mrb[0].mxu0
        %v2171 = vadd.f32 0.0, %v2170
        %v2172 = vpop.f32.mrb[0].mxu0
        %2173 = vmatprep.mubr.bf16.mxu0 0
        %2174 = vmatmul.mubr.bf16.gmra.mrb[0].mxu0 %v2059
        %v2175 = vpop.f32.mrb[0].mxu0
        %v2176 = vadd.f32 0.0, %v2175
        %v2177 = vpop.f32.mrb[0].mxu0
        %v2178 = vpop.f32.mrb[0].mxu0
        %v2179 = vadd.f32 0.0, %v2178
        %v2180 = vpop.f32.mrb[0].mxu0
        %2181 = vmatprep.mubr.bf16.mxu0 0
        %2182 = vmatmul.mubr.bf16.gmra.mrb[0].mxu0 %v2062
        %v2183 = vpop.f32.mrb[0].mxu0
        %v2184 = vadd.f32 0.0, %v2183
        %v2185 = vpop.f32.mrb[0].mxu0
        %v2186 = vpop.f32.mrb[0].mxu0
        %v2187 = vadd.f32 0.0, %v2186
        %v2188 = vpop.f32.mrb[0].mxu0
        %2189 = vmatprep.mubr.bf16.mxu0 0
        %2190 = vmatmul.mubr.bf16.gmra.mrb[0].mxu0 %v2065
        %v2191 = vpop.f32.mrb[0].mxu0
        %v2192 = vadd.f32 0.0, %v2191
        %v2193 = vpop.f32.mrb[0].mxu0
        %v2194 = vpop.f32.mrb[0].mxu0
        %v2195 = vadd.f32 0.0, %v2194
        %v2196 = vpop.f32.mrb[0].mxu0
        %2197 = vmatprep.mubr.bf16.mxu0 0
        %2198 = vmatmul.mubr.bf16.gmra.mrb[0].mxu0 %v2068
        %v2199 = vpop.f32.mrb[0].mxu0
        %v2200 = vadd.f32 0.0, %v2199
        %v2201 = vpop.f32.mrb[0].mxu0
        %v2202 = vpop.f32.mrb[0].mxu0
        %v2203 = vadd.f32 0.0, %v2202
        %v2204 = vpop.f32.mrb[0].mxu0
        %2205 = vmatprep.mubr.bf16.mxu0 0
        %2206 = vmatmul.mubr.bf16.gmra.mrb[0].mxu0 %v2071
        %v2207 = vpop.f32.mrb[0].mxu0
        %v2208 = vadd.f32 0.0, %v2207
        %v2209 = vpop.f32.mrb[0].mxu0
        %v2210 = vpop.f32.mrb[0].mxu0
        %v2211 = vadd.f32 0.0, %v2210
        %v2212 = vpop.f32.mrb[0].mxu0
        %2213 = vmatprep.mubr.bf16.mxu0 0
        %2214 = vmatmul.mubr.bf16.gmra.mrb[0].mxu0 %v2074
        %v2215 = vpop.f32.mrb[0].mxu0
        %v2216 = vadd.f32 0.0, %v2215
        %v2217 = vpop.f32.mrb[0].mxu0
        %v2218 = vpop.f32.mrb[0].mxu0
        %v2219 = vadd.f32 0.0, %v2218
        %v2220 = vpop.f32.mrb[0].mxu0
        %2221 = vmatprep.mubr.bf16.mxu0 0
        %2222 = vmatmul.mubr.bf16.gmra.mrb[0].mxu0 %v2077
        %v2223 = vpop.f32.mrb[0].mxu0
        %v2224 = vadd.f32 0.0, %v2223
        %v2225 = vpop.f32.mrb[0].mxu0
        %v2226 = vpop.f32.mrb[0].mxu0
        %v2227 = vadd.f32 0.0, %v2226
        %v2228 = vpop.f32.mrb[0].mxu0
        %2229 = vmatprep.mubr.bf16.mxu0 0
        %2230 = vmatmul.mubr.bf16.gmra.mrb[0].mxu0 %v2080
        %v2231 = vpop.f32.mrb[0].mxu0
        %v2232 = vadd.f32 0.0, %v2231
        %v2233 = vpop.f32.mrb[0].mxu0
        %v2234 = vpop.f32.mrb[0].mxu0
        %v2235 = vadd.f32 0.0, %v2234
        %v2236 = vpop.f32.mrb[0].mxu0
        %2237 = vmatprep.mubr.bf16.mxu0 0
        %2238 = vmatmul.mubr.bf16.gmra.mrb[0].mxu0 %v2083
        %v2239 = vpop.f32.mrb[0].mxu0
        %v2240 = vadd.f32 0.0, %v2239
        %v2241 = vpop.f32.mrb[0].mxu0
        %v2242 = vpop.f32.mrb[0].mxu0
        %v2243 = vadd.f32 0.0, %v2242
        %v2244 = vpop.f32.mrb[0].mxu0
        %2245 = vdwg.mxu0
        %v2246 = vadd.f32 %v1491, %v2120
        %v2247 = vadd.f32 %v1492, %v2123
        %v2248 = vadd.f32 %v1493, %v2128
        %v2249 = vadd.f32 %v1494, %v2131
        %v2250 = vadd.f32 %v1495, %v2136
        %v2251 = vadd.f32 %v1496, %v2139
        %v2252 = vadd.f32 %v1497, %v2144
        %v2253 = vadd.f32 %v1498, %v2147
        %v2254 = vadd.f32 %v1499, %v2152
        %v2255 = vadd.f32 %v1500, %v2155
        %v2256 = vadd.f32 %v1501, %v2160
        %v2257 = vadd.f32 %v1502, %v2163
        %v2258 = vadd.f32 %v1503, %v2168
        %v2259 = vadd.f32 %v1504, %v2171
        %v2260 = vadd.f32 %v1505, %v2176
        %v2261 = vadd.f32 %v1506, %v2179
        %v2262 = vadd.f32 %v1507, %v2184
        %v2263 = vadd.f32 %v1508, %v2187
        %v2264 = vadd.f32 %v1509, %v2192
        %v2265 = vadd.f32 %v1510, %v2195
        %v2266 = vadd.f32 %v1511, %v2200
        %v2267 = vadd.f32 %v1512, %v2203
        %v2268 = vadd.f32 %v1513, %v2208
        %v2269 = vadd.f32 %v1514, %v2211
        %v2270 = vadd.f32 %v1515, %v2216
        %v2271 = vadd.f32 %v1516, %v2219
        %v2272 = vadd.f32 %v1517, %v2224
        %v2273 = vadd.f32 %v1518, %v2227
        %v2274 = vadd.f32 %v1519, %v2232
        %v2275 = vadd.f32 %v1520, %v2235
        %v2276 = vadd.f32 %v1521, %v2240
        %v2277 = vadd.f32 %v1522, %v2243
        %v2279 = vshrl.u32 %v1571, 16
        %v2281 = vrot.slane %v2279, 4
        %v2282 = vshll.u32 %v1571, 16
        %v2284 = vrot.slane %v2282, 5
        %v2285 = vor.u32 %v2281, %v2284
        %v2286 = vrot.slane %v2285, 4
        %v2288 = vshll.u32 %v1572, 16
        %v2290 = vrot.slane %v2288, 5
        %v2291 = vsel %vm1579, %v2286, %v2290
        %v2292 = vshrl.u32 %v1572, 16
        %v2294 = vrot.slane %v2292, 4
        %v2295 = vor.u32 %v2294, %v2290
        %v2296 = vrot.slane %v2295, 4
        %v2298 = vshll.u32 %v1573, 16
        %v2300 = vrot.slane %v2298, 5
        %v2301 = vsel %vm1579, %v2296, %v2300
        %s2302 = scalar_lea.vmem %s1, 96
        %v2303 = vld [vmem:[%s2302] sm:$0xf]
        %v2304 = vld [vmem:[%s2302 + $0x4] sm:$0xf]
        %v2305 = vld [vmem:[%s2302 + $0x8] sm:$0xf]
        %v2306 = vld [vmem:[%s2302 + $0xc] sm:$0xf]
        %v2307 = vld [vmem:[%s2302 + $0x10] sm:$0xf]
        %v2308 = vld [vmem:[%s2302 + $0x14] sm:$0xf]
        %v2309 = vunpack.c.l.b16 %v2291
        %v2310 = vunpack.c.l.b16 %v2301
        %v2311 = vpack.c.b16 %v2310, %v2309
        %v2318 = vunpack.c.l.b16 %v2303
        %v2319 = vunpack.c.l.b16 %v2304
        %v2320 = vunpack.c.l.b16 %v2305
        %v2321 = vunpack.c.l.b16 %v2306
        %v2322 = vunpack.c.l.b16 %v2307
        %v2323 = vunpack.c.l.b16 %v2308
        %v2324 = vpack.c.b16 %v2319, %v2318
        %v2325 = vpack.c.b16 %v2321, %v2320
        %v2326 = vpack.c.b16 %v2323, %v2322
        %v2331 = vsel %vm900, %v2311, 0
        %2333 = vmatprep.subr.bf16.mxu0 0
        %2334 = vmatpush1.bf16.msra.mxu0 %v2324
        %2335 = vmatprep.subr.bf16.mxu0 0
        %2336 = vmatpush1.bf16.msra.mxu0 %v2325
        %2337 = vmatprep.subr.bf16.mxu0 0
        %2338 = vmatpush1.bf16.msra.mxu0 %v2326
        %2339 = vmatprep.subr.bf16.mxu0 0
        %2340 = vmatpush1.bf16.msra.mxu0 0
        %2341 = vmatprep.subr.bf16.mxu0 0
        %2342 = vmatpush1.bf16.msra.mxu0 0
        %2343 = vmatprep.subr.bf16.mxu0 0
        %2344 = vmatpush1.bf16.msra.mxu0 0
        %2345 = vmatprep.subr.bf16.mxu0 0
        %2346 = vmatpush1.bf16.msra.mxu0 0
        %2347 = vmatprep.subr.bf16.mxu0 0
        %2348 = vmatpush1.bf16.msra.mxu0 0
        %2349 = vmatprep.subr.bf16.mxu0 0
        %2350 = vmatpush1.bf16.msra.mxu0 0
        %2351 = vmatprep.subr.bf16.mxu0 0
        %2352 = vmatpush1.bf16.msra.mxu0 0
        %2353 = vmatprep.subr.bf16.mxu0 0
        %2354 = vmatpush1.bf16.msra.mxu0 0
        %2355 = vmatprep.subr.bf16.mxu0 0
        %2356 = vmatpush1.bf16.msra.mxu0 0
        %2357 = vmatprep.subr.bf16.mxu0 0
        %2358 = vmatpush1.bf16.msra.mxu0 0
        %2359 = vmatprep.subr.bf16.mxu0 0
        %2360 = vmatpush1.bf16.msra.mxu0 0
        %2361 = vmatprep.subr.bf16.mxu0 0
        %2362 = vmatpush1.bf16.msra.mxu0 0
        %2363 = vmatprep.subr.bf16.mxu0 0
        %2364 = vmatpush1.bf16.msra.mxu0 0
        %2365 = vmatprep.mubr.bf16.mxu0 0
        %2366 = vmatmul.mubr.bf16.gmra.mrb[0].mxu0 %v2041
        %v2367 = vpop.f32.mrb[0].mxu0
        %v2368 = vadd.f32 0.0, %v2367
        %v2369 = vpop.f32.mrb[0].mxu0
        %v2370 = vpop.f32.mrb[0].mxu0
        %v2371 = vadd.f32 0.0, %v2370
        %v2372 = vpop.f32.mrb[0].mxu0
        %2373 = vmatprep.mubr.bf16.mxu0 0
        %2374 = vmatmul.mubr.bf16.gmra.mrb[0].mxu0 %v2044
        %v2375 = vpop.f32.mrb[0].mxu0
        %v2376 = vadd.f32 0.0, %v2375
        %v2377 = vpop.f32.mrb[0].mxu0
        %v2378 = vpop.f32.mrb[0].mxu0
        %v2379 = vadd.f32 0.0, %v2378
        %v2380 = vpop.f32.mrb[0].mxu0
        %2381 = vmatprep.mubr.bf16.mxu0 0
        %2382 = vmatmul.mubr.bf16.gmra.mrb[0].mxu0 %v2047
        %v2383 = vpop.f32.mrb[0].mxu0
        %v2384 = vadd.f32 0.0, %v2383
        %v2385 = vpop.f32.mrb[0].mxu0
        %v2386 = vpop.f32.mrb[0].mxu0
        %v2387 = vadd.f32 0.0, %v2386
        %v2388 = vpop.f32.mrb[0].mxu0
        %2389 = vmatprep.mubr.bf16.mxu0 0
        %2390 = vmatmul.mubr.bf16.gmra.mrb[0].mxu0 %v2050
        %v2391 = vpop.f32.mrb[0].mxu0
        %v2392 = vadd.f32 0.0, %v2391
        %v2393 = vpop.f32.mrb[0].mxu0
        %v2394 = vpop.f32.mrb[0].mxu0
        %v2395 = vadd.f32 0.0, %v2394
        %v2396 = vpop.f32.mrb[0].mxu0
        %2397 = vmatprep.mubr.bf16.mxu0 0
        %2398 = vmatmul.mubr.bf16.gmra.mrb[0].mxu0 %v2053
        %v2399 = vpop.f32.mrb[0].mxu0
        %v2400 = vadd.f32 0.0, %v2399
        %v2401 = vpop.f32.mrb[0].mxu0
        %v2402 = vpop.f32.mrb[0].mxu0
        %v2403 = vadd.f32 0.0, %v2402
        %v2404 = vpop.f32.mrb[0].mxu0
        %2405 = vmatprep.mubr.bf16.mxu0 0
        %2406 = vmatmul.mubr.bf16.gmra.mrb[0].mxu0 %v2056
        %v2407 = vpop.f32.mrb[0].mxu0
        %v2408 = vadd.f32 0.0, %v2407
        %v2409 = vpop.f32.mrb[0].mxu0
        %v2410 = vpop.f32.mrb[0].mxu0
        %v2411 = vadd.f32 0.0, %v2410
        %v2412 = vpop.f32.mrb[0].mxu0
        %2413 = vmatprep.mubr.bf16.mxu0 0
        %2414 = vmatmul.mubr.bf16.gmra.mrb[0].mxu0 %v2059
        %v2415 = vpop.f32.mrb[0].mxu0
        %v2416 = vadd.f32 0.0, %v2415
        %v2417 = vpop.f32.mrb[0].mxu0
        %v2418 = vpop.f32.mrb[0].mxu0
        %v2419 = vadd.f32 0.0, %v2418
        %v2420 = vpop.f32.mrb[0].mxu0
        %2421 = vmatprep.mubr.bf16.mxu0 0
        %2422 = vmatmul.mubr.bf16.gmra.mrb[0].mxu0 %v2062
        %v2423 = vpop.f32.mrb[0].mxu0
        %v2424 = vadd.f32 0.0, %v2423
        %v2425 = vpop.f32.mrb[0].mxu0
        %v2426 = vpop.f32.mrb[0].mxu0
        %v2427 = vadd.f32 0.0, %v2426
        %v2428 = vpop.f32.mrb[0].mxu0
        %2429 = vmatprep.mubr.bf16.mxu0 0
        %2430 = vmatmul.mubr.bf16.gmra.mrb[0].mxu0 %v2065
        %v2431 = vpop.f32.mrb[0].mxu0
        %v2432 = vadd.f32 0.0, %v2431
        %v2433 = vpop.f32.mrb[0].mxu0
        %v2434 = vpop.f32.mrb[0].mxu0
        %v2435 = vadd.f32 0.0, %v2434
        %v2436 = vpop.f32.mrb[0].mxu0
        %2437 = vmatprep.mubr.bf16.mxu0 0
        %2438 = vmatmul.mubr.bf16.gmra.mrb[0].mxu0 %v2068
        %v2439 = vpop.f32.mrb[0].mxu0
        %v2440 = vadd.f32 0.0, %v2439
        %v2441 = vpop.f32.mrb[0].mxu0
        %v2442 = vpop.f32.mrb[0].mxu0
        %v2443 = vadd.f32 0.0, %v2442
        %v2444 = vpop.f32.mrb[0].mxu0
        %2445 = vmatprep.mubr.bf16.mxu0 0
        %2446 = vmatmul.mubr.bf16.gmra.mrb[0].mxu0 %v2071
        %v2447 = vpop.f32.mrb[0].mxu0
        %v2448 = vadd.f32 0.0, %v2447
        %v2449 = vpop.f32.mrb[0].mxu0
        %v2450 = vpop.f32.mrb[0].mxu0
        %v2451 = vadd.f32 0.0, %v2450
        %v2452 = vpop.f32.mrb[0].mxu0
        %2453 = vmatprep.mubr.bf16.mxu0 0
        %2454 = vmatmul.mubr.bf16.gmra.mrb[0].mxu0 %v2074
        %v2455 = vpop.f32.mrb[0].mxu0
        %v2456 = vadd.f32 0.0, %v2455
        %v2457 = vpop.f32.mrb[0].mxu0
        %v2458 = vpop.f32.mrb[0].mxu0
        %v2459 = vadd.f32 0.0, %v2458
        %v2460 = vpop.f32.mrb[0].mxu0
        %2461 = vmatprep.mubr.bf16.mxu0 0
        %2462 = vmatmul.mubr.bf16.gmra.mrb[0].mxu0 %v2077
        %v2463 = vpop.f32.mrb[0].mxu0
        %v2464 = vadd.f32 0.0, %v2463
        %v2465 = vpop.f32.mrb[0].mxu0
        %v2466 = vpop.f32.mrb[0].mxu0
        %v2467 = vadd.f32 0.0, %v2466
        %v2468 = vpop.f32.mrb[0].mxu0
        %2469 = vmatprep.mubr.bf16.mxu0 0
        %2470 = vmatmul.mubr.bf16.gmra.mrb[0].mxu0 %v2080
        %v2471 = vpop.f32.mrb[0].mxu0
        %v2472 = vadd.f32 0.0, %v2471
        %v2473 = vpop.f32.mrb[0].mxu0
        %v2474 = vpop.f32.mrb[0].mxu0
        %v2475 = vadd.f32 0.0, %v2474
        %v2476 = vpop.f32.mrb[0].mxu0
        %2477 = vmatprep.mubr.bf16.mxu0 0
        %2478 = vmatmul.mubr.bf16.gmra.mrb[0].mxu0 %v2083
        %v2479 = vpop.f32.mrb[0].mxu0
        %v2480 = vadd.f32 0.0, %v2479
        %v2481 = vpop.f32.mrb[0].mxu0
        %v2482 = vpop.f32.mrb[0].mxu0
        %v2483 = vadd.f32 0.0, %v2482
        %v2484 = vpop.f32.mrb[0].mxu0
        %2485 = vmatprep.mubr.bf16.mxu0 0
        %2486 = vmatmul.mubr.bf16.gmra.mrb[0].mxu0 %v2331
        %v2487 = vpop.f32.mrb[0].mxu0
        %v2488 = vadd.f32 0.0, %v2487
        %v2489 = vpop.f32.mrb[0].mxu0
        %v2490 = vpop.f32.mrb[0].mxu0
        %v2491 = vadd.f32 0.0, %v2490
        %v2492 = vpop.f32.mrb[0].mxu0
        %2493 = vdwg.mxu0
        %v2494 = vadd.f32 %v2246, %v2368
        %v2495 = vadd.f32 %v2247, %v2371
        %v2496 = vadd.f32 %v2248, %v2376
        %v2497 = vadd.f32 %v2249, %v2379
        %v2498 = vadd.f32 %v2250, %v2384
        %v2499 = vadd.f32 %v2251, %v2387
        %v2500 = vadd.f32 %v2252, %v2392
        %v2501 = vadd.f32 %v2253, %v2395
        %v2502 = vadd.f32 %v2254, %v2400
        %v2503 = vadd.f32 %v2255, %v2403
        %v2504 = vadd.f32 %v2256, %v2408
        %v2505 = vadd.f32 %v2257, %v2411
        %v2506 = vadd.f32 %v2258, %v2416
        %v2507 = vadd.f32 %v2259, %v2419
        %v2508 = vadd.f32 %v2260, %v2424
        %v2509 = vadd.f32 %v2261, %v2427
        %v2510 = vadd.f32 %v2262, %v2432
        %v2511 = vadd.f32 %v2263, %v2435
        %v2512 = vadd.f32 %v2264, %v2440
        %v2513 = vadd.f32 %v2265, %v2443
        %v2514 = vadd.f32 %v2266, %v2448
        %v2515 = vadd.f32 %v2267, %v2451
        %v2516 = vadd.f32 %v2268, %v2456
        %v2517 = vadd.f32 %v2269, %v2459
        %v2518 = vadd.f32 %v2270, %v2464
        %v2519 = vadd.f32 %v2271, %v2467
        %v2520 = vadd.f32 %v2272, %v2472
        %v2521 = vadd.f32 %v2273, %v2475
        %v2522 = vadd.f32 %v2274, %v2480
        %v2523 = vadd.f32 %v2275, %v2483
        %v2524 = vadd.f32 %v2276, %v2488
        %v2525 = vadd.f32 %v2277, %v2491
        %v2527 = vshrl.u32 %v1574, 16
        %v2529 = vrot.slane %v2527, 4
        %v2530 = vshll.u32 %v1574, 16
        %v2532 = vrot.slane %v2530, 5
        %v2533 = vor.u32 %v2529, %v2532
        %v2534 = vrot.slane %v2533, 4
        %v2536 = vshll.u32 %v1575, 16
        %v2538 = vrot.slane %v2536, 5
        %v2539 = vsel %vm1579, %v2534, %v2538
        %v2540 = vshrl.u32 %v1575, 16
        %v2542 = vrot.slane %v2540, 4
        %v2543 = vor.u32 %v2542, %v2538
        %v2544 = vrot.slane %v2543, 4
        %v2546 = vshll.u32 %v1576, 16
        %v2548 = vrot.slane %v2546, 5
        %v2549 = vsel %vm1579, %v2544, %v2548
        %s2550 = scalar_lea.vmem %s1, 168
        %v2551 = vld [vmem:[%s2550] sm:$0xf]
        %v2552 = vld [vmem:[%s2550 + $0x4] sm:$0xf]
        %v2553 = vld [vmem:[%s2550 + $0x8] sm:$0xf]
        %v2554 = vld [vmem:[%s2550 + $0xc] sm:$0xf]
        %v2555 = vld [vmem:[%s2550 + $0x10] sm:$0xf]
        %v2556 = vld [vmem:[%s2550 + $0x14] sm:$0xf]
        %v2557 = vunpack.c.l.b16 %v2539
        %v2558 = vunpack.c.l.b16 %v2549
        %v2559 = vpack.c.b16 %v2558, %v2557
        %v2566 = vunpack.c.l.b16 %v2551
        %v2567 = vunpack.c.l.b16 %v2552
        %v2568 = vunpack.c.l.b16 %v2553
        %v2569 = vunpack.c.l.b16 %v2554
        %v2570 = vunpack.c.l.b16 %v2555
        %v2571 = vunpack.c.l.b16 %v2556
        %v2572 = vpack.c.b16 %v2567, %v2566
        %v2573 = vpack.c.b16 %v2569, %v2568
        %v2574 = vpack.c.b16 %v2571, %v2570
        %v2579 = vsel %vm900, %v2559, 0
        %2581 = vmatprep.subr.bf16.mxu0 0
        %2582 = vmatpush1.bf16.msra.mxu0 %v2572
        %2583 = vmatprep.subr.bf16.mxu0 0
        %2584 = vmatpush1.bf16.msra.mxu0 %v2573
        %2585 = vmatprep.subr.bf16.mxu0 0
        %2586 = vmatpush1.bf16.msra.mxu0 %v2574
        %2587 = vmatprep.subr.bf16.mxu0 0
        %2588 = vmatpush1.bf16.msra.mxu0 0
        %2589 = vmatprep.subr.bf16.mxu0 0
        %2590 = vmatpush1.bf16.msra.mxu0 0
        %2591 = vmatprep.subr.bf16.mxu0 0
        %2592 = vmatpush1.bf16.msra.mxu0 0
        %2593 = vmatprep.subr.bf16.mxu0 0
        %2594 = vmatpush1.bf16.msra.mxu0 0
        %2595 = vmatprep.subr.bf16.mxu0 0
        %2596 = vmatpush1.bf16.msra.mxu0 0
        %2597 = vmatprep.subr.bf16.mxu0 0
        %2598 = vmatpush1.bf16.msra.mxu0 0
        %2599 = vmatprep.subr.bf16.mxu0 0
        %2600 = vmatpush1.bf16.msra.mxu0 0
        %2601 = vmatprep.subr.bf16.mxu0 0
        %2602 = vmatpush1.bf16.msra.mxu0 0
        %2603 = vmatprep.subr.bf16.mxu0 0
        %2604 = vmatpush1.bf16.msra.mxu0 0
        %2605 = vmatprep.subr.bf16.mxu0 0
        %2606 = vmatpush1.bf16.msra.mxu0 0
        %2607 = vmatprep.subr.bf16.mxu0 0
        %2608 = vmatpush1.bf16.msra.mxu0 0
        %2609 = vmatprep.subr.bf16.mxu0 0
        %2610 = vmatpush1.bf16.msra.mxu0 0
        %2611 = vmatprep.subr.bf16.mxu0 0
        %2612 = vmatpush1.bf16.msra.mxu0 0
        %2613 = vmatprep.mubr.bf16.mxu0 0
        %2614 = vmatmul.mubr.bf16.gmra.mrb[0].mxu0 %v2044
        %v2615 = vpop.f32.mrb[0].mxu0
        %v2616 = vadd.f32 0.0, %v2615
        %v2617 = vpop.f32.mrb[0].mxu0
        %v2618 = vpop.f32.mrb[0].mxu0
        %v2619 = vadd.f32 0.0, %v2618
        %v2620 = vpop.f32.mrb[0].mxu0
        %2621 = vmatprep.mubr.bf16.mxu0 0
        %2622 = vmatmul.mubr.bf16.gmra.mrb[0].mxu0 %v2047
        %v2623 = vpop.f32.mrb[0].mxu0
        %v2624 = vadd.f32 0.0, %v2623
        %v2625 = vpop.f32.mrb[0].mxu0
        %v2626 = vpop.f32.mrb[0].mxu0
        %v2627 = vadd.f32 0.0, %v2626
        %v2628 = vpop.f32.mrb[0].mxu0
        %2629 = vmatprep.mubr.bf16.mxu0 0
        %2630 = vmatmul.mubr.bf16.gmra.mrb[0].mxu0 %v2050
        %v2631 = vpop.f32.mrb[0].mxu0
        %v2632 = vadd.f32 0.0, %v2631
        %v2633 = vpop.f32.mrb[0].mxu0
        %v2634 = vpop.f32.mrb[0].mxu0
        %v2635 = vadd.f32 0.0, %v2634
        %v2636 = vpop.f32.mrb[0].mxu0
        %2637 = vmatprep.mubr.bf16.mxu0 0
        %2638 = vmatmul.mubr.bf16.gmra.mrb[0].mxu0 %v2053
        %v2639 = vpop.f32.mrb[0].mxu0
        %v2640 = vadd.f32 0.0, %v2639
        %v2641 = vpop.f32.mrb[0].mxu0
        %v2642 = vpop.f32.mrb[0].mxu0
        %v2643 = vadd.f32 0.0, %v2642
        %v2644 = vpop.f32.mrb[0].mxu0
        %2645 = vmatprep.mubr.bf16.mxu0 0
        %2646 = vmatmul.mubr.bf16.gmra.mrb[0].mxu0 %v2056
        %v2647 = vpop.f32.mrb[0].mxu0
        %v2648 = vadd.f32 0.0, %v2647
        %v2649 = vpop.f32.mrb[0].mxu0
        %v2650 = vpop.f32.mrb[0].mxu0
        %v2651 = vadd.f32 0.0, %v2650
        %v2652 = vpop.f32.mrb[0].mxu0
        %2653 = vmatprep.mubr.bf16.mxu0 0
        %2654 = vmatmul.mubr.bf16.gmra.mrb[0].mxu0 %v2059
        %v2655 = vpop.f32.mrb[0].mxu0
        %v2656 = vadd.f32 0.0, %v2655
        %v2657 = vpop.f32.mrb[0].mxu0
        %v2658 = vpop.f32.mrb[0].mxu0
        %v2659 = vadd.f32 0.0, %v2658
        %v2660 = vpop.f32.mrb[0].mxu0
        %2661 = vmatprep.mubr.bf16.mxu0 0
        %2662 = vmatmul.mubr.bf16.gmra.mrb[0].mxu0 %v2062
        %v2663 = vpop.f32.mrb[0].mxu0
        %v2664 = vadd.f32 0.0, %v2663
        %v2665 = vpop.f32.mrb[0].mxu0
        %v2666 = vpop.f32.mrb[0].mxu0
        %v2667 = vadd.f32 0.0, %v2666
        %v2668 = vpop.f32.mrb[0].mxu0
        %2669 = vmatprep.mubr.bf16.mxu0 0
        %2670 = vmatmul.mubr.bf16.gmra.mrb[0].mxu0 %v2065
        %v2671 = vpop.f32.mrb[0].mxu0
        %v2672 = vadd.f32 0.0, %v2671
        %v2673 = vpop.f32.mrb[0].mxu0
        %v2674 = vpop.f32.mrb[0].mxu0
        %v2675 = vadd.f32 0.0, %v2674
        %v2676 = vpop.f32.mrb[0].mxu0
        %2677 = vmatprep.mubr.bf16.mxu0 0
        %2678 = vmatmul.mubr.bf16.gmra.mrb[0].mxu0 %v2068
        %v2679 = vpop.f32.mrb[0].mxu0
        %v2680 = vadd.f32 0.0, %v2679
        %v2681 = vpop.f32.mrb[0].mxu0
        %v2682 = vpop.f32.mrb[0].mxu0
        %v2683 = vadd.f32 0.0, %v2682
        %v2684 = vpop.f32.mrb[0].mxu0
        %2685 = vmatprep.mubr.bf16.mxu0 0
        %2686 = vmatmul.mubr.bf16.gmra.mrb[0].mxu0 %v2071
        %v2687 = vpop.f32.mrb[0].mxu0
        %v2688 = vadd.f32 0.0, %v2687
        %v2689 = vpop.f32.mrb[0].mxu0
        %v2690 = vpop.f32.mrb[0].mxu0
        %v2691 = vadd.f32 0.0, %v2690
        %v2692 = vpop.f32.mrb[0].mxu0
        %2693 = vmatprep.mubr.bf16.mxu0 0
        %2694 = vmatmul.mubr.bf16.gmra.mrb[0].mxu0 %v2074
        %v2695 = vpop.f32.mrb[0].mxu0
        %v2696 = vadd.f32 0.0, %v2695
        %v2697 = vpop.f32.mrb[0].mxu0
        %v2698 = vpop.f32.mrb[0].mxu0
        %v2699 = vadd.f32 0.0, %v2698
        %v2700 = vpop.f32.mrb[0].mxu0
        %2701 = vmatprep.mubr.bf16.mxu0 0
        %2702 = vmatmul.mubr.bf16.gmra.mrb[0].mxu0 %v2077
        %v2703 = vpop.f32.mrb[0].mxu0
        %v2704 = vadd.f32 0.0, %v2703
        %v2705 = vpop.f32.mrb[0].mxu0
        %v2706 = vpop.f32.mrb[0].mxu0
        %v2707 = vadd.f32 0.0, %v2706
        %v2708 = vpop.f32.mrb[0].mxu0
        %2709 = vmatprep.mubr.bf16.mxu0 0
        %2710 = vmatmul.mubr.bf16.gmra.mrb[0].mxu0 %v2080
        %v2711 = vpop.f32.mrb[0].mxu0
        %v2712 = vadd.f32 0.0, %v2711
        %v2713 = vpop.f32.mrb[0].mxu0
        %v2714 = vpop.f32.mrb[0].mxu0
        %v2715 = vadd.f32 0.0, %v2714
        %v2716 = vpop.f32.mrb[0].mxu0
        %2717 = vmatprep.mubr.bf16.mxu0 0
        %2718 = vmatmul.mubr.bf16.gmra.mrb[0].mxu0 %v2083
        %v2719 = vpop.f32.mrb[0].mxu0
        %v2720 = vadd.f32 0.0, %v2719
        %v2721 = vpop.f32.mrb[0].mxu0
        %v2722 = vpop.f32.mrb[0].mxu0
        %v2723 = vadd.f32 0.0, %v2722
        %v2724 = vpop.f32.mrb[0].mxu0
        %2725 = vmatprep.mubr.bf16.mxu0 0
        %2726 = vmatmul.mubr.bf16.gmra.mrb[0].mxu0 %v2331
        %v2727 = vpop.f32.mrb[0].mxu0
        %v2728 = vadd.f32 0.0, %v2727
        %v2729 = vpop.f32.mrb[0].mxu0
        %v2730 = vpop.f32.mrb[0].mxu0
        %v2731 = vadd.f32 0.0, %v2730
        %v2732 = vpop.f32.mrb[0].mxu0
        %2733 = vmatprep.mubr.bf16.mxu0 0
        %2734 = vmatmul.mubr.bf16.gmra.mrb[0].mxu0 %v2579
        %v2735 = vpop.f32.mrb[0].mxu0
        %v2736 = vadd.f32 0.0, %v2735
        %v2737 = vpop.f32.mrb[0].mxu0
        %v2738 = vpop.f32.mrb[0].mxu0
        %v2739 = vadd.f32 0.0, %v2738
        %v2740 = vpop.f32.mrb[0].mxu0
        %2741 = vdwg.mxu0
        %v2742 = vadd.f32 %v2494, %v2616
        %v2743 = vadd.f32 %v2495, %v2619
        %v2744 = vadd.f32 %v2496, %v2624
        %v2745 = vadd.f32 %v2497, %v2627
        %v2746 = vadd.f32 %v2498, %v2632
        %v2747 = vadd.f32 %v2499, %v2635
        %v2748 = vadd.f32 %v2500, %v2640
        %v2749 = vadd.f32 %v2501, %v2643
        %v2750 = vadd.f32 %v2502, %v2648
        %v2751 = vadd.f32 %v2503, %v2651
        %v2752 = vadd.f32 %v2504, %v2656
        %v2753 = vadd.f32 %v2505, %v2659
        %v2754 = vadd.f32 %v2506, %v2664
        %v2755 = vadd.f32 %v2507, %v2667
        %v2756 = vadd.f32 %v2508, %v2672
        %v2757 = vadd.f32 %v2509, %v2675
        %v2758 = vadd.f32 %v2510, %v2680
        %v2759 = vadd.f32 %v2511, %v2683
        %v2760 = vadd.f32 %v2512, %v2688
        %v2761 = vadd.f32 %v2513, %v2691
        %v2762 = vadd.f32 %v2514, %v2696
        %v2763 = vadd.f32 %v2515, %v2699
        %v2764 = vadd.f32 %v2516, %v2704
        %v2765 = vadd.f32 %v2517, %v2707
        %v2766 = vadd.f32 %v2518, %v2712
        %v2767 = vadd.f32 %v2519, %v2715
        %v2768 = vadd.f32 %v2520, %v2720
        %v2769 = vadd.f32 %v2521, %v2723
        %v2770 = vadd.f32 %v2522, %v2728
        %v2771 = vadd.f32 %v2523, %v2731
        %v2772 = vadd.f32 %v2524, %v2736
        %v2773 = vadd.f32 %v2525, %v2739
        %v2774 = vld [vmem:[#allocation2] sm:$0xe]
        %v2775 = vld [vmem:[#allocation2 + $0xc] sm:$0xe]
        %v2776 = vld [vmem:[#allocation2 + $0x18] sm:$0xe]
        %v2777 = vld [vmem:[#allocation2 + $0x24] sm:$0xe]
        %v2778 = vld [vmem:[#allocation2 + $0x30] sm:$0xe]
        %v2779 = vld [vmem:[#allocation2 + $0x3c] sm:$0xe]
        %v2780 = vld [vmem:[#allocation2 + $0x48] sm:$0xe]
        %v2781 = vld [vmem:[#allocation2 + $0x54] sm:$0xe]
        %v2782 = vld [vmem:[#allocation2 + $0x60] sm:$0xe]
        %v2783 = vld [vmem:[#allocation2 + $0x6c] sm:$0xe]
        %v2784 = vld [vmem:[#allocation2 + $0x78] sm:$0xe]
        %v2785 = vld [vmem:[#allocation2 + $0x84] sm:$0xe]
        %v2786 = vld [vmem:[#allocation2 + $0x90] sm:$0xe]
        %v2787 = vld [vmem:[#allocation2 + $0x9c] sm:$0xe]
        %v2788 = vld [vmem:[#allocation2 + $0xa8] sm:$0xe]
        %v2789 = vld [vmem:[#allocation2 + $0xb4] sm:$0xe]
        %v2790 = vld [vmem:[#allocation2 + $0xc0] sm:$0xe]
        %v2791 = vld [vmem:[#allocation2 + $0xcc] sm:$0xe]
        %vm2840 = vcmask 1042432
        %vm2841 = vcmask 1046532
        %vm2842 = vmor %vm2840, %vm2841
        %v2843 = vrot.slane %v2774, 5
        %v2844 = vrot.slane %v2843, 4
        %v2845 = vrot.slane %v1524, 5
        %v2846 = vsel %vm2842, %v2844, %v2845
        %v2847 = vrot.slane %v2845, 4
        %v2848 = vrot.slane %v1525, 5
        %v2849 = vsel %vm2842, %v2847, %v2848
        %v2850 = vrot.slane %v2775, 5
        %v2851 = vrot.slane %v2850, 4
        %v2852 = vrot.slane %v1527, 5
        %v2853 = vsel %vm2842, %v2851, %v2852
        %v2854 = vrot.slane %v2852, 4
        %v2855 = vrot.slane %v1528, 5
        %v2856 = vsel %vm2842, %v2854, %v2855
        %v2857 = vrot.slane %v2776, 5
        %v2858 = vrot.slane %v2857, 4
        %v2859 = vrot.slane %v1530, 5
        %v2860 = vsel %vm2842, %v2858, %v2859
        %v2861 = vrot.slane %v2859, 4
        %v2862 = vrot.slane %v1531, 5
        %v2863 = vsel %vm2842, %v2861, %v2862
        %v2864 = vrot.slane %v2777, 5
        %v2865 = vrot.slane %v2864, 4
        %v2866 = vrot.slane %v1533, 5
        %v2867 = vsel %vm2842, %v2865, %v2866
        %v2868 = vrot.slane %v2866, 4
        %v2869 = vrot.slane %v1534, 5
        %v2870 = vsel %vm2842, %v2868, %v2869
        %v2871 = vrot.slane %v2778, 5
        %v2872 = vrot.slane %v2871, 4
        %v2873 = vrot.slane %v1536, 5
        %v2874 = vsel %vm2842, %v2872, %v2873
        %v2875 = vrot.slane %v2873, 4
        %v2876 = vrot.slane %v1537, 5
        %v2877 = vsel %vm2842, %v2875, %v2876
        %v2878 = vrot.slane %v2779, 5
        %v2879 = vrot.slane %v2878, 4
        %v2880 = vrot.slane %v1539, 5
        %v2881 = vsel %vm2842, %v2879, %v2880
        %v2882 = vrot.slane %v2880, 4
        %v2883 = vrot.slane %v1540, 5
        %v2884 = vsel %vm2842, %v2882, %v2883
        %v2885 = vrot.slane %v2780, 5
        %v2886 = vrot.slane %v2885, 4
        %v2887 = vrot.slane %v1542, 5
        %v2888 = vsel %vm2842, %v2886, %v2887
        %v2889 = vrot.slane %v2887, 4
        %v2890 = vrot.slane %v1543, 5
        %v2891 = vsel %vm2842, %v2889, %v2890
        %v2892 = vrot.slane %v2781, 5
        %v2893 = vrot.slane %v2892, 4
        %v2894 = vrot.slane %v1545, 5
        %v2895 = vsel %vm2842, %v2893, %v2894
        %v2896 = vrot.slane %v2894, 4
        %v2897 = vrot.slane %v1546, 5
        %v2898 = vsel %vm2842, %v2896, %v2897
        %v2899 = vrot.slane %v2782, 5
        %v2900 = vrot.slane %v2899, 4
        %v2901 = vrot.slane %v1548, 5
        %v2902 = vsel %vm2842, %v2900, %v2901
        %v2903 = vrot.slane %v2901, 4
        %v2904 = vrot.slane %v1549, 5
        %v2905 = vsel %vm2842, %v2903, %v2904
        %v2906 = vrot.slane %v2783, 5
        %v2907 = vrot.slane %v2906, 4
        %v2908 = vrot.slane %v1551, 5
        %v2909 = vsel %vm2842, %v2907, %v2908
        %v2910 = vrot.slane %v2908, 4
        %v2911 = vrot.slane %v1552, 5
        %v2912 = vsel %vm2842, %v2910, %v2911
        %v2913 = vrot.slane %v2784, 5
        %v2914 = vrot.slane %v2913, 4
        %v2915 = vrot.slane %v1554, 5
        %v2916 = vsel %vm2842, %v2914, %v2915
        %v2917 = vrot.slane %v2915, 4
        %v2918 = vrot.slane %v1555, 5
        %v2919 = vsel %vm2842, %v2917, %v2918
        %v2920 = vrot.slane %v2785, 5
        %v2921 = vrot.slane %v2920, 4
        %v2922 = vrot.slane %v1557, 5
        %v2923 = vsel %vm2842, %v2921, %v2922
        %v2924 = vrot.slane %v2922, 4
        %v2925 = vrot.slane %v1558, 5
        %v2926 = vsel %vm2842, %v2924, %v2925
        %v2927 = vrot.slane %v2786, 5
        %v2928 = vrot.slane %v2927, 4
        %v2929 = vrot.slane %v1560, 5
        %v2930 = vsel %vm2842, %v2928, %v2929
        %v2931 = vrot.slane %v2929, 4
        %v2932 = vrot.slane %v1561, 5
        %v2933 = vsel %vm2842, %v2931, %v2932
        %v2934 = vrot.slane %v2787, 5
        %v2935 = vrot.slane %v2934, 4
        %v2936 = vrot.slane %v1563, 5
        %v2937 = vsel %vm2842, %v2935, %v2936
        %v2938 = vrot.slane %v2936, 4
        %v2939 = vrot.slane %v1564, 5
        %v2940 = vsel %vm2842, %v2938, %v2939
        %v2941 = vrot.slane %v2788, 5
        %v2942 = vrot.slane %v2941, 4
        %v2943 = vrot.slane %v1566, 5
        %v2944 = vsel %vm2842, %v2942, %v2943
        %v2945 = vrot.slane %v2943, 4
        %v2946 = vrot.slane %v1567, 5
        %v2947 = vsel %vm2842, %v2945, %v2946
        %v2948 = vrot.slane %v2789, 5
        %v2949 = vrot.slane %v2948, 4
        %v2950 = vrot.slane %v1569, 5
        %v2951 = vsel %vm2842, %v2949, %v2950
        %v2952 = vrot.slane %v2950, 4
        %v2953 = vrot.slane %v1570, 5
        %v2954 = vsel %vm2842, %v2952, %v2953
        %s2955 = scalar_lea.vmem %s1, 48
        %v2956 = vld [vmem:[%s2955] sm:$0xf]
        %v2957 = vld [vmem:[%s2955 + $0x4] sm:$0xf]
        %v2958 = vld [vmem:[%s2955 + $0x8] sm:$0xf]
        %v2959 = vld [vmem:[%s2955 + $0xc] sm:$0xf]
        %v2960 = vld [vmem:[%s2955 + $0x10] sm:$0xf]
        %v2961 = vld [vmem:[%s2955 + $0x14] sm:$0xf]
        %v2962 = vunpack.c.l.b16 %v2846
        %v2963 = vunpack.c.l.b16 %v2849
        %v2964 = vunpack.c.l.b16 %v2853
        %v2965 = vunpack.c.l.b16 %v2856
        %v2966 = vunpack.c.l.b16 %v2860
        %v2967 = vunpack.c.l.b16 %v2863
        %v2968 = vunpack.c.l.b16 %v2867
        %v2969 = vunpack.c.l.b16 %v2870
        %v2970 = vunpack.c.l.b16 %v2874
        %v2971 = vunpack.c.l.b16 %v2877
        %v2972 = vunpack.c.l.b16 %v2881
        %v2973 = vunpack.c.l.b16 %v2884
        %v2974 = vunpack.c.l.b16 %v2888
        %v2975 = vunpack.c.l.b16 %v2891
        %v2976 = vunpack.c.l.b16 %v2895
        %v2977 = vunpack.c.l.b16 %v2898
        %v2978 = vunpack.c.l.b16 %v2902
        %v2979 = vunpack.c.l.b16 %v2905
        %v2980 = vunpack.c.l.b16 %v2909
        %v2981 = vunpack.c.l.b16 %v2912
        %v2982 = vunpack.c.l.b16 %v2916
        %v2983 = vunpack.c.l.b16 %v2919
        %v2984 = vunpack.c.l.b16 %v2923
        %v2985 = vunpack.c.l.b16 %v2926
        %v2986 = vunpack.c.l.b16 %v2930
        %v2987 = vunpack.c.l.b16 %v2933
        %v2988 = vunpack.c.l.b16 %v2937
        %v2989 = vunpack.c.l.b16 %v2940
        %v2990 = vunpack.c.l.b16 %v2944
        %v2991 = vunpack.c.l.b16 %v2947
        %v2992 = vunpack.c.l.b16 %v2951
        %v2993 = vunpack.c.l.b16 %v2954
        %v2994 = vpack.c.b16 %v2963, %v2962
        %v2995 = vpack.c.b16 %v2965, %v2964
        %v2996 = vpack.c.b16 %v2967, %v2966
        %v2997 = vpack.c.b16 %v2969, %v2968
        %v2998 = vpack.c.b16 %v2971, %v2970
        %v2999 = vpack.c.b16 %v2973, %v2972
        %v3000 = vpack.c.b16 %v2975, %v2974
        %v3001 = vpack.c.b16 %v2977, %v2976
        %v3002 = vpack.c.b16 %v2979, %v2978
        %v3003 = vpack.c.b16 %v2981, %v2980
        %v3004 = vpack.c.b16 %v2983, %v2982
        %v3005 = vpack.c.b16 %v2985, %v2984
        %v3006 = vpack.c.b16 %v2987, %v2986
        %v3007 = vpack.c.b16 %v2989, %v2988
        %v3008 = vpack.c.b16 %v2991, %v2990
        %v3009 = vpack.c.b16 %v2993, %v2992
        %v3016 = vunpack.c.l.b16 %v2956
        %v3017 = vunpack.c.l.b16 %v2957
        %v3018 = vunpack.c.l.b16 %v2958
        %v3019 = vunpack.c.l.b16 %v2959
        %v3020 = vunpack.c.l.b16 %v2960
        %v3021 = vunpack.c.l.b16 %v2961
        %v3022 = vpack.c.b16 %v3017, %v3016
        %v3023 = vpack.c.b16 %v3019, %v3018
        %v3024 = vpack.c.b16 %v3021, %v3020
        %v3029 = vsel %vm900, %v2994, 0
        %v3032 = vsel %vm900, %v2995, 0
        %v3035 = vsel %vm900, %v2996, 0
        %v3038 = vsel %vm900, %v2997, 0
        %v3041 = vsel %vm900, %v2998, 0
        %v3044 = vsel %vm900, %v2999, 0
        %v3047 = vsel %vm900, %v3000, 0
        %v3050 = vsel %vm900, %v3001, 0
        %v3053 = vsel %vm900, %v3002, 0
        %v3056 = vsel %vm900, %v3003, 0
        %v3059 = vsel %vm900, %v3004, 0
        %v3062 = vsel %vm900, %v3005, 0
        %v3065 = vsel %vm900, %v3006, 0
        %v3068 = vsel %vm900, %v3007, 0
        %v3071 = vsel %vm900, %v3008, 0
        %v3074 = vsel %vm900, %v3009, 0
        %3076 = vmatprep.subr.bf16.mxu0 0
        %3077 = vmatpush1.bf16.msra.mxu0 %v3022
        %3078 = vmatprep.subr.bf16.mxu0 0
        %3079 = vmatpush1.bf16.msra.mxu0 %v3023
        %3080 = vmatprep.subr.bf16.mxu0 0
        %3081 = vmatpush1.bf16.msra.mxu0 %v3024
        %3082 = vmatprep.subr.bf16.mxu0 0
        %3083 = vmatpush1.bf16.msra.mxu0 0
        %3084 = vmatprep.subr.bf16.mxu0 0
        %3085 = vmatpush1.bf16.msra.mxu0 0
        %3086 = vmatprep.subr.bf16.mxu0 0
        %3087 = vmatpush1.bf16.msra.mxu0 0
        %3088 = vmatprep.subr.bf16.mxu0 0
        %3089 = vmatpush1.bf16.msra.mxu0 0
        %3090 = vmatprep.subr.bf16.mxu0 0
        %3091 = vmatpush1.bf16.msra.mxu0 0
        %3092 = vmatprep.subr.bf16.mxu0 0
        %3093 = vmatpush1.bf16.msra.mxu0 0
        %3094 = vmatprep.subr.bf16.mxu0 0
        %3095 = vmatpush1.bf16.msra.mxu0 0
        %3096 = vmatprep.subr.bf16.mxu0 0
        %3097 = vmatpush1.bf16.msra.mxu0 0
        %3098 = vmatprep.subr.bf16.mxu0 0
        %3099 = vmatpush1.bf16.msra.mxu0 0
        %3100 = vmatprep.subr.bf16.mxu0 0
        %3101 = vmatpush1.bf16.msra.mxu0 0
        %3102 = vmatprep.subr.bf16.mxu0 0
        %3103 = vmatpush1.bf16.msra.mxu0 0
        %3104 = vmatprep.subr.bf16.mxu0 0
        %3105 = vmatpush1.bf16.msra.mxu0 0
        %3106 = vmatprep.subr.bf16.mxu0 0
        %3107 = vmatpush1.bf16.msra.mxu0 0
        %3108 = vmatprep.mubr.bf16.mxu0 0
        %3109 = vmatmul.mubr.bf16.gmra.mrb[0].mxu0 %v3029
        %v3110 = vpop.f32.mrb[0].mxu0
        %v3111 = vadd.f32 0.0, %v3110
        %v3112 = vpop.f32.mrb[0].mxu0
        %v3113 = vpop.f32.mrb[0].mxu0
        %v3114 = vadd.f32 0.0, %v3113
        %v3115 = vpop.f32.mrb[0].mxu0
        %3116 = vmatprep.mubr.bf16.mxu0 0
        %3117 = vmatmul.mubr.bf16.gmra.mrb[0].mxu0 %v3032
        %v3118 = vpop.f32.mrb[0].mxu0
        %v3119 = vadd.f32 0.0, %v3118
        %v3120 = vpop.f32.mrb[0].mxu0
        %v3121 = vpop.f32.mrb[0].mxu0
        %v3122 = vadd.f32 0.0, %v3121
        %v3123 = vpop.f32.mrb[0].mxu0
        %3124 = vmatprep.mubr.bf16.mxu0 0
        %3125 = vmatmul.mubr.bf16.gmra.mrb[0].mxu0 %v3035
        %v3126 = vpop.f32.mrb[0].mxu0
        %v3127 = vadd.f32 0.0, %v3126
        %v3128 = vpop.f32.mrb[0].mxu0
        %v3129 = vpop.f32.mrb[0].mxu0
        %v3130 = vadd.f32 0.0, %v3129
        %v3131 = vpop.f32.mrb[0].mxu0
        %3132 = vmatprep.mubr.bf16.mxu0 0
        %3133 = vmatmul.mubr.bf16.gmra.mrb[0].mxu0 %v3038
        %v3134 = vpop.f32.mrb[0].mxu0
        %v3135 = vadd.f32 0.0, %v3134
        %v3136 = vpop.f32.mrb[0].mxu0
        %v3137 = vpop.f32.mrb[0].mxu0
        %v3138 = vadd.f32 0.0, %v3137
        %v3139 = vpop.f32.mrb[0].mxu0
        %3140 = vmatprep.mubr.bf16.mxu0 0
        %3141 = vmatmul.mubr.bf16.gmra.mrb[0].mxu0 %v3041
        %v3142 = vpop.f32.mrb[0].mxu0
        %v3143 = vadd.f32 0.0, %v3142
        %v3144 = vpop.f32.mrb[0].mxu0
        %v3145 = vpop.f32.mrb[0].mxu0
        %v3146 = vadd.f32 0.0, %v3145
        %v3147 = vpop.f32.mrb[0].mxu0
        %3148 = vmatprep.mubr.bf16.mxu0 0
        %3149 = vmatmul.mubr.bf16.gmra.mrb[0].mxu0 %v3044
        %v3150 = vpop.f32.mrb[0].mxu0
        %v3151 = vadd.f32 0.0, %v3150
        %v3152 = vpop.f32.mrb[0].mxu0
        %v3153 = vpop.f32.mrb[0].mxu0
        %v3154 = vadd.f32 0.0, %v3153
        %v3155 = vpop.f32.mrb[0].mxu0
        %3156 = vmatprep.mubr.bf16.mxu0 0
        %3157 = vmatmul.mubr.bf16.gmra.mrb[0].mxu0 %v3047
        %v3158 = vpop.f32.mrb[0].mxu0
        %v3159 = vadd.f32 0.0, %v3158
        %v3160 = vpop.f32.mrb[0].mxu0
        %v3161 = vpop.f32.mrb[0].mxu0
        %v3162 = vadd.f32 0.0, %v3161
        %v3163 = vpop.f32.mrb[0].mxu0
        %3164 = vmatprep.mubr.bf16.mxu0 0
        %3165 = vmatmul.mubr.bf16.gmra.mrb[0].mxu0 %v3050
        %v3166 = vpop.f32.mrb[0].mxu0
        %v3167 = vadd.f32 0.0, %v3166
        %v3168 = vpop.f32.mrb[0].mxu0
        %v3169 = vpop.f32.mrb[0].mxu0
        %v3170 = vadd.f32 0.0, %v3169
        %v3171 = vpop.f32.mrb[0].mxu0
        %3172 = vmatprep.mubr.bf16.mxu0 0
        %3173 = vmatmul.mubr.bf16.gmra.mrb[0].mxu0 %v3053
        %v3174 = vpop.f32.mrb[0].mxu0
        %v3175 = vadd.f32 0.0, %v3174
        %v3176 = vpop.f32.mrb[0].mxu0
        %v3177 = vpop.f32.mrb[0].mxu0
        %v3178 = vadd.f32 0.0, %v3177
        %v3179 = vpop.f32.mrb[0].mxu0
        %3180 = vmatprep.mubr.bf16.mxu0 0
        %3181 = vmatmul.mubr.bf16.gmra.mrb[0].mxu0 %v3056
        %v3182 = vpop.f32.mrb[0].mxu0
        %v3183 = vadd.f32 0.0, %v3182
        %v3184 = vpop.f32.mrb[0].mxu0
        %v3185 = vpop.f32.mrb[0].mxu0
        %v3186 = vadd.f32 0.0, %v3185
        %v3187 = vpop.f32.mrb[0].mxu0
        %3188 = vmatprep.mubr.bf16.mxu0 0
        %3189 = vmatmul.mubr.bf16.gmra.mrb[0].mxu0 %v3059
        %v3190 = vpop.f32.mrb[0].mxu0
        %v3191 = vadd.f32 0.0, %v3190
        %v3192 = vpop.f32.mrb[0].mxu0
        %v3193 = vpop.f32.mrb[0].mxu0
        %v3194 = vadd.f32 0.0, %v3193
        %v3195 = vpop.f32.mrb[0].mxu0
        %3196 = vmatprep.mubr.bf16.mxu0 0
        %3197 = vmatmul.mubr.bf16.gmra.mrb[0].mxu0 %v3062
        %v3198 = vpop.f32.mrb[0].mxu0
        %v3199 = vadd.f32 0.0, %v3198
        %v3200 = vpop.f32.mrb[0].mxu0
        %v3201 = vpop.f32.mrb[0].mxu0
        %v3202 = vadd.f32 0.0, %v3201
        %v3203 = vpop.f32.mrb[0].mxu0
        %3204 = vmatprep.mubr.bf16.mxu0 0
        %3205 = vmatmul.mubr.bf16.gmra.mrb[0].mxu0 %v3065
        %v3206 = vpop.f32.mrb[0].mxu0
        %v3207 = vadd.f32 0.0, %v3206
        %v3208 = vpop.f32.mrb[0].mxu0
        %v3209 = vpop.f32.mrb[0].mxu0
        %v3210 = vadd.f32 0.0, %v3209
        %v3211 = vpop.f32.mrb[0].mxu0
        %3212 = vmatprep.mubr.bf16.mxu0 0
        %3213 = vmatmul.mubr.bf16.gmra.mrb[0].mxu0 %v3068
        %v3214 = vpop.f32.mrb[0].mxu0
        %v3215 = vadd.f32 0.0, %v3214
        %v3216 = vpop.f32.mrb[0].mxu0
        %v3217 = vpop.f32.mrb[0].mxu0
        %v3218 = vadd.f32 0.0, %v3217
        %v3219 = vpop.f32.mrb[0].mxu0
        %3220 = vmatprep.mubr.bf16.mxu0 0
        %3221 = vmatmul.mubr.bf16.gmra.mrb[0].mxu0 %v3071
        %v3222 = vpop.f32.mrb[0].mxu0
        %v3223 = vadd.f32 0.0, %v3222
        %v3224 = vpop.f32.mrb[0].mxu0
        %v3225 = vpop.f32.mrb[0].mxu0
        %v3226 = vadd.f32 0.0, %v3225
        %v3227 = vpop.f32.mrb[0].mxu0
        %3228 = vmatprep.mubr.bf16.mxu0 0
        %3229 = vmatmul.mubr.bf16.gmra.mrb[0].mxu0 %v3074
        %v3230 = vpop.f32.mrb[0].mxu0
        %v3231 = vadd.f32 0.0, %v3230
        %v3232 = vpop.f32.mrb[0].mxu0
        %v3233 = vpop.f32.mrb[0].mxu0
        %v3234 = vadd.f32 0.0, %v3233
        %v3235 = vpop.f32.mrb[0].mxu0
        %3236 = vdwg.mxu0
        %v3237 = vadd.f32 %v2742, %v3111
        %v3238 = vadd.f32 %v2743, %v3114
        %v3239 = vadd.f32 %v2744, %v3119
        %v3240 = vadd.f32 %v2745, %v3122
        %v3241 = vadd.f32 %v2746, %v3127
        %v3242 = vadd.f32 %v2747, %v3130
        %v3243 = vadd.f32 %v2748, %v3135
        %v3244 = vadd.f32 %v2749, %v3138
        %v3245 = vadd.f32 %v2750, %v3143
        %v3246 = vadd.f32 %v2751, %v3146
        %v3247 = vadd.f32 %v2752, %v3151
        %v3248 = vadd.f32 %v2753, %v3154
        %v3249 = vadd.f32 %v2754, %v3159
        %v3250 = vadd.f32 %v2755, %v3162
        %v3251 = vadd.f32 %v2756, %v3167
        %v3252 = vadd.f32 %v2757, %v3170
        %v3253 = vadd.f32 %v2758, %v3175
        %v3254 = vadd.f32 %v2759, %v3178
        %v3255 = vadd.f32 %v2760, %v3183
        %v3256 = vadd.f32 %v2761, %v3186
        %v3257 = vadd.f32 %v2762, %v3191
        %v3258 = vadd.f32 %v2763, %v3194
        %v3259 = vadd.f32 %v2764, %v3199
        %v3260 = vadd.f32 %v2765, %v3202
        %v3261 = vadd.f32 %v2766, %v3207
        %v3262 = vadd.f32 %v2767, %v3210
        %v3263 = vadd.f32 %v2768, %v3215
        %v3264 = vadd.f32 %v2769, %v3218
        %v3265 = vadd.f32 %v2770, %v3223
        %v3266 = vadd.f32 %v2771, %v3226
        %v3267 = vadd.f32 %v2772, %v3231
        %v3268 = vadd.f32 %v2773, %v3234
        %v3272 = vrot.slane %v2790, 5
        %v3273 = vrot.slane %v3272, 4
        %v3274 = vrot.slane %v1572, 5
        %v3275 = vsel %vm2842, %v3273, %v3274
        %v3276 = vrot.slane %v3274, 4
        %v3277 = vrot.slane %v1573, 5
        %v3278 = vsel %vm2842, %v3276, %v3277
        %s3279 = scalar_lea.vmem %s1, 120
        %v3280 = vld [vmem:[%s3279] sm:$0xf]
        %v3281 = vld [vmem:[%s3279 + $0x4] sm:$0xf]
        %v3282 = vld [vmem:[%s3279 + $0x8] sm:$0xf]
        %v3283 = vld [vmem:[%s3279 + $0xc] sm:$0xf]
        %v3284 = vld [vmem:[%s3279 + $0x10] sm:$0xf]
        %v3285 = vld [vmem:[%s3279 + $0x14] sm:$0xf]
        %v3286 = vunpack.c.l.b16 %v3275
        %v3287 = vunpack.c.l.b16 %v3278
        %v3288 = vpack.c.b16 %v3287, %v3286
        %v3295 = vunpack.c.l.b16 %v3280
        %v3296 = vunpack.c.l.b16 %v3281
        %v3297 = vunpack.c.l.b16 %v3282
        %v3298 = vunpack.c.l.b16 %v3283
        %v3299 = vunpack.c.l.b16 %v3284
        %v3300 = vunpack.c.l.b16 %v3285
        %v3301 = vpack.c.b16 %v3296, %v3295
        %v3302 = vpack.c.b16 %v3298, %v3297
        %v3303 = vpack.c.b16 %v3300, %v3299
        %v3308 = vsel %vm900, %v3288, 0
        %3310 = vmatprep.subr.bf16.mxu0 0
        %3311 = vmatpush1.bf16.msra.mxu0 %v3301
        %3312 = vmatprep.subr.bf16.mxu0 0
        %3313 = vmatpush1.bf16.msra.mxu0 %v3302
        %3314 = vmatprep.subr.bf16.mxu0 0
        %3315 = vmatpush1.bf16.msra.mxu0 %v3303
        %3316 = vmatprep.subr.bf16.mxu0 0
        %3317 = vmatpush1.bf16.msra.mxu0 0
        %3318 = vmatprep.subr.bf16.mxu0 0
        %3319 = vmatpush1.bf16.msra.mxu0 0
        %3320 = vmatprep.subr.bf16.mxu0 0
        %3321 = vmatpush1.bf16.msra.mxu0 0
        %3322 = vmatprep.subr.bf16.mxu0 0
        %3323 = vmatpush1.bf16.msra.mxu0 0
        %3324 = vmatprep.subr.bf16.mxu0 0
        %3325 = vmatpush1.bf16.msra.mxu0 0
        %3326 = vmatprep.subr.bf16.mxu0 0
        %3327 = vmatpush1.bf16.msra.mxu0 0
        %3328 = vmatprep.subr.bf16.mxu0 0
        %3329 = vmatpush1.bf16.msra.mxu0 0
        %3330 = vmatprep.subr.bf16.mxu0 0
        %3331 = vmatpush1.bf16.msra.mxu0 0
        %3332 = vmatprep.subr.bf16.mxu0 0
        %3333 = vmatpush1.bf16.msra.mxu0 0
        %3334 = vmatprep.subr.bf16.mxu0 0
        %3335 = vmatpush1.bf16.msra.mxu0 0
        %3336 = vmatprep.subr.bf16.mxu0 0
        %3337 = vmatpush1.bf16.msra.mxu0 0
        %3338 = vmatprep.subr.bf16.mxu0 0
        %3339 = vmatpush1.bf16.msra.mxu0 0
        %3340 = vmatprep.subr.bf16.mxu0 0
        %3341 = vmatpush1.bf16.msra.mxu0 0
        %3342 = vmatprep.mubr.bf16.mxu0 0
        %3343 = vmatmul.mubr.bf16.gmra.mrb[0].mxu0 %v3032
        %v3344 = vpop.f32.mrb[0].mxu0
        %v3345 = vadd.f32 0.0, %v3344
        %v3346 = vpop.f32.mrb[0].mxu0
        %v3347 = vpop.f32.mrb[0].mxu0
        %v3348 = vadd.f32 0.0, %v3347
        %v3349 = vpop.f32.mrb[0].mxu0
        %3350 = vmatprep.mubr.bf16.mxu0 0
        %3351 = vmatmul.mubr.bf16.gmra.mrb[0].mxu0 %v3035
        %v3352 = vpop.f32.mrb[0].mxu0
        %v3353 = vadd.f32 0.0, %v3352
        %v3354 = vpop.f32.mrb[0].mxu0
        %v3355 = vpop.f32.mrb[0].mxu0
        %v3356 = vadd.f32 0.0, %v3355
        %v3357 = vpop.f32.mrb[0].mxu0
        %3358 = vmatprep.mubr.bf16.mxu0 0
        %3359 = vmatmul.mubr.bf16.gmra.mrb[0].mxu0 %v3038
        %v3360 = vpop.f32.mrb[0].mxu0
        %v3361 = vadd.f32 0.0, %v3360
        %v3362 = vpop.f32.mrb[0].mxu0
        %v3363 = vpop.f32.mrb[0].mxu0
        %v3364 = vadd.f32 0.0, %v3363
        %v3365 = vpop.f32.mrb[0].mxu0
        %3366 = vmatprep.mubr.bf16.mxu0 0
        %3367 = vmatmul.mubr.bf16.gmra.mrb[0].mxu0 %v3041
        %v3368 = vpop.f32.mrb[0].mxu0
        %v3369 = vadd.f32 0.0, %v3368
        %v3370 = vpop.f32.mrb[0].mxu0
        %v3371 = vpop.f32.mrb[0].mxu0
        %v3372 = vadd.f32 0.0, %v3371
        %v3373 = vpop.f32.mrb[0].mxu0
        %3374 = vmatprep.mubr.bf16.mxu0 0
        %3375 = vmatmul.mubr.bf16.gmra.mrb[0].mxu0 %v3044
        %v3376 = vpop.f32.mrb[0].mxu0
        %v3377 = vadd.f32 0.0, %v3376
        %v3378 = vpop.f32.mrb[0].mxu0
        %v3379 = vpop.f32.mrb[0].mxu0
        %v3380 = vadd.f32 0.0, %v3379
        %v3381 = vpop.f32.mrb[0].mxu0
        %3382 = vmatprep.mubr.bf16.mxu0 0
        %3383 = vmatmul.mubr.bf16.gmra.mrb[0].mxu0 %v3047
        %v3384 = vpop.f32.mrb[0].mxu0
        %v3385 = vadd.f32 0.0, %v3384
        %v3386 = vpop.f32.mrb[0].mxu0
        %v3387 = vpop.f32.mrb[0].mxu0
        %v3388 = vadd.f32 0.0, %v3387
        %v3389 = vpop.f32.mrb[0].mxu0
        %3390 = vmatprep.mubr.bf16.mxu0 0
        %3391 = vmatmul.mubr.bf16.gmra.mrb[0].mxu0 %v3050
        %v3392 = vpop.f32.mrb[0].mxu0
        %v3393 = vadd.f32 0.0, %v3392
        %v3394 = vpop.f32.mrb[0].mxu0
        %v3395 = vpop.f32.mrb[0].mxu0
        %v3396 = vadd.f32 0.0, %v3395
        %v3397 = vpop.f32.mrb[0].mxu0
        %3398 = vmatprep.mubr.bf16.mxu0 0
        %3399 = vmatmul.mubr.bf16.gmra.mrb[0].mxu0 %v3053
        %v3400 = vpop.f32.mrb[0].mxu0
        %v3401 = vadd.f32 0.0, %v3400
        %v3402 = vpop.f32.mrb[0].mxu0
        %v3403 = vpop.f32.mrb[0].mxu0
        %v3404 = vadd.f32 0.0, %v3403
        %v3405 = vpop.f32.mrb[0].mxu0
        %3406 = vmatprep.mubr.bf16.mxu0 0
        %3407 = vmatmul.mubr.bf16.gmra.mrb[0].mxu0 %v3056
        %v3408 = vpop.f32.mrb[0].mxu0
        %v3409 = vadd.f32 0.0, %v3408
        %v3410 = vpop.f32.mrb[0].mxu0
        %v3411 = vpop.f32.mrb[0].mxu0
        %v3412 = vadd.f32 0.0, %v3411
        %v3413 = vpop.f32.mrb[0].mxu0
        %3414 = vmatprep.mubr.bf16.mxu0 0
        %3415 = vmatmul.mubr.bf16.gmra.mrb[0].mxu0 %v3059
        %v3416 = vpop.f32.mrb[0].mxu0
        %v3417 = vadd.f32 0.0, %v3416
        %v3418 = vpop.f32.mrb[0].mxu0
        %v3419 = vpop.f32.mrb[0].mxu0
        %v3420 = vadd.f32 0.0, %v3419
        %v3421 = vpop.f32.mrb[0].mxu0
        %3422 = vmatprep.mubr.bf16.mxu0 0
        %3423 = vmatmul.mubr.bf16.gmra.mrb[0].mxu0 %v3062
        %v3424 = vpop.f32.mrb[0].mxu0
        %v3425 = vadd.f32 0.0, %v3424
        %v3426 = vpop.f32.mrb[0].mxu0
        %v3427 = vpop.f32.mrb[0].mxu0
        %v3428 = vadd.f32 0.0, %v3427
        %v3429 = vpop.f32.mrb[0].mxu0
        %3430 = vmatprep.mubr.bf16.mxu0 0
        %3431 = vmatmul.mubr.bf16.gmra.mrb[0].mxu0 %v3065
        %v3432 = vpop.f32.mrb[0].mxu0
        %v3433 = vadd.f32 0.0, %v3432
        %v3434 = vpop.f32.mrb[0].mxu0
        %v3435 = vpop.f32.mrb[0].mxu0
        %v3436 = vadd.f32 0.0, %v3435
        %v3437 = vpop.f32.mrb[0].mxu0
        %3438 = vmatprep.mubr.bf16.mxu0 0
        %3439 = vmatmul.mubr.bf16.gmra.mrb[0].mxu0 %v3068
        %v3440 = vpop.f32.mrb[0].mxu0
        %v3441 = vadd.f32 0.0, %v3440
        %v3442 = vpop.f32.mrb[0].mxu0
        %v3443 = vpop.f32.mrb[0].mxu0
        %v3444 = vadd.f32 0.0, %v3443
        %v3445 = vpop.f32.mrb[0].mxu0
        %3446 = vmatprep.mubr.bf16.mxu0 0
        %3447 = vmatmul.mubr.bf16.gmra.mrb[0].mxu0 %v3071
        %v3448 = vpop.f32.mrb[0].mxu0
        %v3449 = vadd.f32 0.0, %v3448
        %v3450 = vpop.f32.mrb[0].mxu0
        %v3451 = vpop.f32.mrb[0].mxu0
        %v3452 = vadd.f32 0.0, %v3451
        %v3453 = vpop.f32.mrb[0].mxu0
        %3454 = vmatprep.mubr.bf16.mxu0 0
        %3455 = vmatmul.mubr.bf16.gmra.mrb[0].mxu0 %v3074
        %v3456 = vpop.f32.mrb[0].mxu0
        %v3457 = vadd.f32 0.0, %v3456
        %v3458 = vpop.f32.mrb[0].mxu0
        %v3459 = vpop.f32.mrb[0].mxu0
        %v3460 = vadd.f32 0.0, %v3459
        %v3461 = vpop.f32.mrb[0].mxu0
        %3462 = vmatprep.mubr.bf16.mxu0 0
        %3463 = vmatmul.mubr.bf16.gmra.mrb[0].mxu0 %v3308
        %v3464 = vpop.f32.mrb[0].mxu0
        %v3465 = vadd.f32 0.0, %v3464
        %v3466 = vpop.f32.mrb[0].mxu0
        %v3467 = vpop.f32.mrb[0].mxu0
        %v3468 = vadd.f32 0.0, %v3467
        %v3469 = vpop.f32.mrb[0].mxu0
        %3470 = vdwg.mxu0
        %v3471 = vadd.f32 %v3237, %v3345
        %v3472 = vadd.f32 %v3238, %v3348
        %v3473 = vadd.f32 %v3239, %v3353
        %v3474 = vadd.f32 %v3240, %v3356
        %v3475 = vadd.f32 %v3241, %v3361
        %v3476 = vadd.f32 %v3242, %v3364
        %v3477 = vadd.f32 %v3243, %v3369
        %v3478 = vadd.f32 %v3244, %v3372
        %v3479 = vadd.f32 %v3245, %v3377
        %v3480 = vadd.f32 %v3246, %v3380
        %v3481 = vadd.f32 %v3247, %v3385
        %v3482 = vadd.f32 %v3248, %v3388
        %v3483 = vadd.f32 %v3249, %v3393
        %v3484 = vadd.f32 %v3250, %v3396
        %v3485 = vadd.f32 %v3251, %v3401
        %v3486 = vadd.f32 %v3252, %v3404
        %v3487 = vadd.f32 %v3253, %v3409
        %v3488 = vadd.f32 %v3254, %v3412
        %v3489 = vadd.f32 %v3255, %v3417
        %v3490 = vadd.f32 %v3256, %v3420
        %v3491 = vadd.f32 %v3257, %v3425
        %v3492 = vadd.f32 %v3258, %v3428
        %v3493 = vadd.f32 %v3259, %v3433
        %v3494 = vadd.f32 %v3260, %v3436
        %v3495 = vadd.f32 %v3261, %v3441
        %v3496 = vadd.f32 %v3262, %v3444
        %v3497 = vadd.f32 %v3263, %v3449
        %v3498 = vadd.f32 %v3264, %v3452
        %v3499 = vadd.f32 %v3265, %v3457
        %v3500 = vadd.f32 %v3266, %v3460
        %v3501 = vadd.f32 %v3267, %v3465
        %v3502 = vadd.f32 %v3268, %v3468
        %v3506 = vrot.slane %v2791, 5
        %v3507 = vrot.slane %v3506, 4
        %v3508 = vrot.slane %v1575, 5
        %v3509 = vsel %vm2842, %v3507, %v3508
        %v3510 = vrot.slane %v3508, 4
        %v3511 = vrot.slane %v1576, 5
        %v3512 = vsel %vm2842, %v3510, %v3511
        %s3513 = scalar_lea.vmem %s1, 192
        %v3514 = vld [vmem:[%s3513] sm:$0xf]
        %v3515 = vld [vmem:[%s3513 + $0x4] sm:$0xf]
        %v3516 = vld [vmem:[%s3513 + $0x8] sm:$0xf]
        %v3517 = vld [vmem:[%s3513 + $0xc] sm:$0xf]
        %v3518 = vld [vmem:[%s3513 + $0x10] sm:$0xf]
        %v3519 = vld [vmem:[%s3513 + $0x14] sm:$0xf]
        %v3520 = vunpack.c.l.b16 %v3509
        %v3521 = vunpack.c.l.b16 %v3512
        %v3522 = vpack.c.b16 %v3521, %v3520
        %v3529 = vunpack.c.l.b16 %v3514
        %v3530 = vunpack.c.l.b16 %v3515
        %v3531 = vunpack.c.l.b16 %v3516
        %v3532 = vunpack.c.l.b16 %v3517
        %v3533 = vunpack.c.l.b16 %v3518
        %v3534 = vunpack.c.l.b16 %v3519
        %v3535 = vpack.c.b16 %v3530, %v3529
        %v3536 = vpack.c.b16 %v3532, %v3531
        %v3537 = vpack.c.b16 %v3534, %v3533
        %v3542 = vsel %vm900, %v3522, 0
        %3544 = vmatprep.subr.bf16.mxu0 0
        %3545 = vmatpush1.bf16.msra.mxu0 %v3535
        %3546 = vmatprep.subr.bf16.mxu0 0
        %3547 = vmatpush1.bf16.msra.mxu0 %v3536
        %3548 = vmatprep.subr.bf16.mxu0 0
        %3549 = vmatpush1.bf16.msra.mxu0 %v3537
        %3550 = vmatprep.subr.bf16.mxu0 0
        %3551 = vmatpush1.bf16.msra.mxu0 0
        %3552 = vmatprep.subr.bf16.mxu0 0
        %3553 = vmatpush1.bf16.msra.mxu0 0
        %3554 = vmatprep.subr.bf16.mxu0 0
        %3555 = vmatpush1.bf16.msra.mxu0 0
        %3556 = vmatprep.subr.bf16.mxu0 0
        %3557 = vmatpush1.bf16.msra.mxu0 0
        %3558 = vmatprep.subr.bf16.mxu0 0
        %3559 = vmatpush1.bf16.msra.mxu0 0
        %3560 = vmatprep.subr.bf16.mxu0 0
        %3561 = vmatpush1.bf16.msra.mxu0 0
        %3562 = vmatprep.subr.bf16.mxu0 0
        %3563 = vmatpush1.bf16.msra.mxu0 0
        %3564 = vmatprep.subr.bf16.mxu0 0
        %3565 = vmatpush1.bf16.msra.mxu0 0
        %3566 = vmatprep.subr.bf16.mxu0 0
        %3567 = vmatpush1.bf16.msra.mxu0 0
        %3568 = vmatprep.subr.bf16.mxu0 0
        %3569 = vmatpush1.bf16.msra.mxu0 0
        %3570 = vmatprep.subr.bf16.mxu0 0
        %3571 = vmatpush1.bf16.msra.mxu0 0
        %3572 = vmatprep.subr.bf16.mxu0 0
        %3573 = vmatpush1.bf16.msra.mxu0 0
        %3574 = vmatprep.subr.bf16.mxu0 0
        %3575 = vmatpush1.bf16.msra.mxu0 0
        %3576 = vmatprep.mubr.bf16.mxu0 0
        %3577 = vmatmul.mubr.bf16.gmra.mrb[0].mxu0 %v3035
        %v3578 = vpop.f32.mrb[0].mxu0
        %v3579 = vadd.f32 0.0, %v3578
        %v3580 = vpop.f32.mrb[0].mxu0
        %v3581 = vpop.f32.mrb[0].mxu0
        %v3582 = vadd.f32 0.0, %v3581
        %v3583 = vpop.f32.mrb[0].mxu0
        %3584 = vmatprep.mubr.bf16.mxu0 0
        %3585 = vmatmul.mubr.bf16.gmra.mrb[0].mxu0 %v3038
        %v3586 = vpop.f32.mrb[0].mxu0
        %v3587 = vadd.f32 0.0, %v3586
        %v3588 = vpop.f32.mrb[0].mxu0
        %v3589 = vpop.f32.mrb[0].mxu0
        %v3590 = vadd.f32 0.0, %v3589
        %v3591 = vpop.f32.mrb[0].mxu0
        %3592 = vmatprep.mubr.bf16.mxu0 0
        %3593 = vmatmul.mubr.bf16.gmra.mrb[0].mxu0 %v3041
        %v3594 = vpop.f32.mrb[0].mxu0
        %v3595 = vadd.f32 0.0, %v3594
        %v3596 = vpop.f32.mrb[0].mxu0
        %v3597 = vpop.f32.mrb[0].mxu0
        %v3598 = vadd.f32 0.0, %v3597
        %v3599 = vpop.f32.mrb[0].mxu0
        %3600 = vmatprep.mubr.bf16.mxu0 0
        %3601 = vmatmul.mubr.bf16.gmra.mrb[0].mxu0 %v3044
        %v3602 = vpop.f32.mrb[0].mxu0
        %v3603 = vadd.f32 0.0, %v3602
        %v3604 = vpop.f32.mrb[0].mxu0
        %v3605 = vpop.f32.mrb[0].mxu0
        %v3606 = vadd.f32 0.0, %v3605
        %v3607 = vpop.f32.mrb[0].mxu0
        %3608 = vmatprep.mubr.bf16.mxu0 0
        %3609 = vmatmul.mubr.bf16.gmra.mrb[0].mxu0 %v3047
        %v3610 = vpop.f32.mrb[0].mxu0
        %v3611 = vadd.f32 0.0, %v3610
        %v3612 = vpop.f32.mrb[0].mxu0
        %v3613 = vpop.f32.mrb[0].mxu0
        %v3614 = vadd.f32 0.0, %v3613
        %v3615 = vpop.f32.mrb[0].mxu0
        %3616 = vmatprep.mubr.bf16.mxu0 0
        %3617 = vmatmul.mubr.bf16.gmra.mrb[0].mxu0 %v3050
        %v3618 = vpop.f32.mrb[0].mxu0
        %v3619 = vadd.f32 0.0, %v3618
        %v3620 = vpop.f32.mrb[0].mxu0
        %v3621 = vpop.f32.mrb[0].mxu0
        %v3622 = vadd.f32 0.0, %v3621
        %v3623 = vpop.f32.mrb[0].mxu0
        %3624 = vmatprep.mubr.bf16.mxu0 0
        %3625 = vmatmul.mubr.bf16.gmra.mrb[0].mxu0 %v3053
        %v3626 = vpop.f32.mrb[0].mxu0
        %v3627 = vadd.f32 0.0, %v3626
        %v3628 = vpop.f32.mrb[0].mxu0
        %v3629 = vpop.f32.mrb[0].mxu0
        %v3630 = vadd.f32 0.0, %v3629
        %v3631 = vpop.f32.mrb[0].mxu0
        %3632 = vmatprep.mubr.bf16.mxu0 0
        %3633 = vmatmul.mubr.bf16.gmra.mrb[0].mxu0 %v3056
        %v3634 = vpop.f32.mrb[0].mxu0
        %v3635 = vadd.f32 0.0, %v3634
        %v3636 = vpop.f32.mrb[0].mxu0
        %v3637 = vpop.f32.mrb[0].mxu0
        %v3638 = vadd.f32 0.0, %v3637
        %v3639 = vpop.f32.mrb[0].mxu0
        %3640 = vmatprep.mubr.bf16.mxu0 0
        %3641 = vmatmul.mubr.bf16.gmra.mrb[0].mxu0 %v3059
        %v3642 = vpop.f32.mrb[0].mxu0
        %v3643 = vadd.f32 0.0, %v3642
        %v3644 = vpop.f32.mrb[0].mxu0
        %v3645 = vpop.f32.mrb[0].mxu0
        %v3646 = vadd.f32 0.0, %v3645
        %v3647 = vpop.f32.mrb[0].mxu0
        %3648 = vmatprep.mubr.bf16.mxu0 0
        %3649 = vmatmul.mubr.bf16.gmra.mrb[0].mxu0 %v3062
        %v3650 = vpop.f32.mrb[0].mxu0
        %v3651 = vadd.f32 0.0, %v3650
        %v3652 = vpop.f32.mrb[0].mxu0
        %v3653 = vpop.f32.mrb[0].mxu0
        %v3654 = vadd.f32 0.0, %v3653
        %v3655 = vpop.f32.mrb[0].mxu0
        %3656 = vmatprep.mubr.bf16.mxu0 0
        %3657 = vmatmul.mubr.bf16.gmra.mrb[0].mxu0 %v3065
        %v3658 = vpop.f32.mrb[0].mxu0
        %v3659 = vadd.f32 0.0, %v3658
        %v3660 = vpop.f32.mrb[0].mxu0
        %v3661 = vpop.f32.mrb[0].mxu0
        %v3662 = vadd.f32 0.0, %v3661
        %v3663 = vpop.f32.mrb[0].mxu0
        %3664 = vmatprep.mubr.bf16.mxu0 0
        %3665 = vmatmul.mubr.bf16.gmra.mrb[0].mxu0 %v3068
        %v3666 = vpop.f32.mrb[0].mxu0
        %v3667 = vadd.f32 0.0, %v3666
        %v3668 = vpop.f32.mrb[0].mxu0
        %v3669 = vpop.f32.mrb[0].mxu0
        %v3670 = vadd.f32 0.0, %v3669
        %v3671 = vpop.f32.mrb[0].mxu0
        %3672 = vmatprep.mubr.bf16.mxu0 0
        %3673 = vmatmul.mubr.bf16.gmra.mrb[0].mxu0 %v3071
        %v3674 = vpop.f32.mrb[0].mxu0
        %v3675 = vadd.f32 0.0, %v3674
        %v3676 = vpop.f32.mrb[0].mxu0
        %v3677 = vpop.f32.mrb[0].mxu0
        %v3678 = vadd.f32 0.0, %v3677
        %v3679 = vpop.f32.mrb[0].mxu0
        %3680 = vmatprep.mubr.bf16.mxu0 0
        %3681 = vmatmul.mubr.bf16.gmra.mrb[0].mxu0 %v3074
        %v3682 = vpop.f32.mrb[0].mxu0
        %v3683 = vadd.f32 0.0, %v3682
        %v3684 = vpop.f32.mrb[0].mxu0
        %v3685 = vpop.f32.mrb[0].mxu0
        %v3686 = vadd.f32 0.0, %v3685
        %v3687 = vpop.f32.mrb[0].mxu0
        %3688 = vmatprep.mubr.bf16.mxu0 0
        %3689 = vmatmul.mubr.bf16.gmra.mrb[0].mxu0 %v3308
        %v3690 = vpop.f32.mrb[0].mxu0
        %v3691 = vadd.f32 0.0, %v3690
        %v3692 = vpop.f32.mrb[0].mxu0
        %v3693 = vpop.f32.mrb[0].mxu0
        %v3694 = vadd.f32 0.0, %v3693
        %v3695 = vpop.f32.mrb[0].mxu0
        %3696 = vmatprep.mubr.bf16.mxu0 0
        %3697 = vmatmul.mubr.bf16.gmra.mrb[0].mxu0 %v3542
        %v3698 = vpop.f32.mrb[0].mxu0
        %v3699 = vadd.f32 0.0, %v3698
        %v3700 = vpop.f32.mrb[0].mxu0
        %v3701 = vpop.f32.mrb[0].mxu0
        %v3702 = vadd.f32 0.0, %v3701
        %v3703 = vpop.f32.mrb[0].mxu0
        %3704 = vdwg.mxu0
        %v3705 = vadd.f32 %v3471, %v3579
        %v3706 = vadd.f32 %v3472, %v3582
        %v3707 = vadd.f32 %v3473, %v3587
        %v3708 = vadd.f32 %v3474, %v3590
        %v3709 = vadd.f32 %v3475, %v3595
        %v3710 = vadd.f32 %v3476, %v3598
        %v3711 = vadd.f32 %v3477, %v3603
        %v3712 = vadd.f32 %v3478, %v3606
        %v3713 = vadd.f32 %v3479, %v3611
        %v3714 = vadd.f32 %v3480, %v3614
        %v3715 = vadd.f32 %v3481, %v3619
        %v3716 = vadd.f32 %v3482, %v3622
        %v3717 = vadd.f32 %v3483, %v3627
        %v3718 = vadd.f32 %v3484, %v3630
        %v3719 = vadd.f32 %v3485, %v3635
        %v3720 = vadd.f32 %v3486, %v3638
        %v3721 = vadd.f32 %v3487, %v3643
        %v3722 = vadd.f32 %v3488, %v3646
        %v3723 = vadd.f32 %v3489, %v3651
        %v3724 = vadd.f32 %v3490, %v3654
        %v3725 = vadd.f32 %v3491, %v3659
        %v3726 = vadd.f32 %v3492, %v3662
        %v3727 = vadd.f32 %v3493, %v3667
        %v3728 = vadd.f32 %v3494, %v3670
        %v3729 = vadd.f32 %v3495, %v3675
        %v3730 = vadd.f32 %v3496, %v3678
        %v3731 = vadd.f32 %v3497, %v3683
        %v3732 = vadd.f32 %v3498, %v3686
        %v3733 = vadd.f32 %v3499, %v3691
        %v3734 = vadd.f32 %v3500, %v3694
        %v3735 = vadd.f32 %v3501, %v3699
        %v3736 = vadd.f32 %v3502, %v3702
        %v3737 = vld [vmem:[%s2] sm:$0x1]
        %v3739 = vlaneseq
        %v3740 = vshrl.u32 %v3739, 7
        %v3741 = vsub.s32 0, %v3740
        %v3742 = vrot.slane %v3737, %v3741
        %v3744 = vadd.f32 %v3705, %v3742
        %v3745 = vadd.f32 %v3706, %v3742
        %v3746 = vadd.f32 %v3707, %v3742
        %v3747 = vadd.f32 %v3708, %v3742
        %v3748 = vadd.f32 %v3709, %v3742
        %v3749 = vadd.f32 %v3710, %v3742
        %v3750 = vadd.f32 %v3711, %v3742
        %v3751 = vadd.f32 %v3712, %v3742
        %v3752 = vadd.f32 %v3713, %v3742
        %v3753 = vadd.f32 %v3714, %v3742
        %v3754 = vadd.f32 %v3715, %v3742
        %v3755 = vadd.f32 %v3716, %v3742
        %v3756 = vadd.f32 %v3717, %v3742
        %v3757 = vadd.f32 %v3718, %v3742
        %v3758 = vadd.f32 %v3719, %v3742
        %v3759 = vadd.f32 %v3720, %v3742
        %v3760 = vadd.f32 %v3721, %v3742
        %v3761 = vadd.f32 %v3722, %v3742
        %v3762 = vadd.f32 %v3723, %v3742
        %v3763 = vadd.f32 %v3724, %v3742
        %v3764 = vadd.f32 %v3725, %v3742
        %v3765 = vadd.f32 %v3726, %v3742
        %v3766 = vadd.f32 %v3727, %v3742
        %v3767 = vadd.f32 %v3728, %v3742
        %v3768 = vadd.f32 %v3729, %v3742
        %v3769 = vadd.f32 %v3730, %v3742
        %v3770 = vadd.f32 %v3731, %v3742
        %v3771 = vadd.f32 %v3732, %v3742
        %v3772 = vadd.f32 %v3733, %v3742
        %v3773 = vadd.f32 %v3734, %v3742
        %v3774 = vadd.f32 %v3735, %v3742
        %v3775 = vadd.f32 %v3736, %v3742
        %v3776 = vmax.f32 %v3744, 0.0
        %v3777 = vmax.f32 %v3745, 0.0
        %v3778 = vmax.f32 %v3746, 0.0
        %v3779 = vmax.f32 %v3747, 0.0
        %v3780 = vmax.f32 %v3748, 0.0
        %v3781 = vmax.f32 %v3749, 0.0
        %v3782 = vmax.f32 %v3750, 0.0
        %v3783 = vmax.f32 %v3751, 0.0
        %v3784 = vmax.f32 %v3752, 0.0
        %v3785 = vmax.f32 %v3753, 0.0
        %v3786 = vmax.f32 %v3754, 0.0
        %v3787 = vmax.f32 %v3755, 0.0
        %v3788 = vmax.f32 %v3756, 0.0
        %v3789 = vmax.f32 %v3757, 0.0
        %v3790 = vmax.f32 %v3758, 0.0
        %v3791 = vmax.f32 %v3759, 0.0
        %v3792 = vmax.f32 %v3760, 0.0
        %v3793 = vmax.f32 %v3761, 0.0
        %v3794 = vmax.f32 %v3762, 0.0
        %v3795 = vmax.f32 %v3763, 0.0
        %v3796 = vmax.f32 %v3764, 0.0
        %v3797 = vmax.f32 %v3765, 0.0
        %v3798 = vmax.f32 %v3766, 0.0
        %v3799 = vmax.f32 %v3767, 0.0
        %v3800 = vmax.f32 %v3768, 0.0
        %v3801 = vmax.f32 %v3769, 0.0
        %v3802 = vmax.f32 %v3770, 0.0
        %v3803 = vmax.f32 %v3771, 0.0
        %v3804 = vmax.f32 %v3772, 0.0
        %v3805 = vmax.f32 %v3773, 0.0
        %v3806 = vmax.f32 %v3774, 0.0
        %v3807 = vmax.f32 %v3775, 0.0
        %v3808 = vpack.c.bf16 %v3777, %v3776
        %v3809 = vpack.c.bf16 %v3779, %v3778
        %v3810 = vpack.c.bf16 %v3781, %v3780
        %v3811 = vpack.c.bf16 %v3783, %v3782
        %v3812 = vpack.c.bf16 %v3785, %v3784
        %v3813 = vpack.c.bf16 %v3787, %v3786
        %v3814 = vpack.c.bf16 %v3789, %v3788
        %v3815 = vpack.c.bf16 %v3791, %v3790
        %v3816 = vpack.c.bf16 %v3793, %v3792
        %v3817 = vpack.c.bf16 %v3795, %v3794
        %v3818 = vpack.c.bf16 %v3797, %v3796
        %v3819 = vpack.c.bf16 %v3799, %v3798
        %v3820 = vpack.c.bf16 %v3801, %v3800
        %v3821 = vpack.c.bf16 %v3803, %v3802
        %v3822 = vpack.c.bf16 %v3805, %v3804
        %v3823 = vpack.c.bf16 %v3807, %v3806
        %v3824 = vld [vmem:[%s3] sm:$0xf]
        %v3825 = vld [vmem:[%s3 + $0x4] sm:$0xf]
        %v3826 = vld [vmem:[%s3 + $0x8] sm:$0xf]
        %v3827 = vld [vmem:[%s3 + $0xc] sm:$0xf]
        %v3828 = vld [vmem:[%s3 + $0x10] sm:$0xf]
        %v3829 = vld [vmem:[%s3 + $0x14] sm:$0xf]
        %v3830 = vld [vmem:[%s3 + $0x18] sm:$0xf]
        %v3831 = vld [vmem:[%s3 + $0x1c] sm:$0xf]
        %v3832 = vld [vmem:[%s3 + $0x20] sm:$0xf]
        %v3833 = vld [vmem:[%s3 + $0x24] sm:$0xf]
        %v3834 = vld [vmem:[%s3 + $0x28] sm:$0xf]
        %v3835 = vld [vmem:[%s3 + $0x2c] sm:$0xf]
        %v3836 = vld [vmem:[%s4] sm:$0x1]
        %v3838 = vlaneseq
        %v3839 = vshrl.u32 %v3838, 7
        %v3840 = vsub.s32 0, %v3839
        %v3841 = vrot.slane %v3836, %v3840
        %v3855 = vunpack.c.l.b16 %v3824
        %v3856 = vunpack.c.l.b16 %v3825
        %v3857 = vunpack.c.l.b16 %v3826
        %v3858 = vunpack.c.l.b16 %v3827
        %v3859 = vunpack.c.l.b16 %v3828
        %v3860 = vunpack.c.l.b16 %v3829
        %v3861 = vunpack.c.l.b16 %v3830
        %v3862 = vunpack.c.l.b16 %v3831
        %v3863 = vunpack.c.l.b16 %v3832
        %v3864 = vunpack.c.l.b16 %v3833
        %v3865 = vunpack.c.l.b16 %v3834
        %v3866 = vunpack.c.l.b16 %v3835
        %v3867 = vpack.c.b16 %v3856, %v3855
        %v3868 = vpack.c.b16 %v3858, %v3857
        %v3869 = vpack.c.b16 %v3860, %v3859
        %v3870 = vpack.c.b16 %v3862, %v3861
        %v3871 = vpack.c.b16 %v3864, %v3863
        %v3872 = vpack.c.b16 %v3866, %v3865
        %vm3879 = vcmask 785408
        %v3881 = vsel %vm3879, %v3808, 0
        %v3884 = vsel %vm3879, %v3809, 0
        %v3887 = vsel %vm3879, %v3810, 0
        %v3890 = vsel %vm3879, %v3811, 0
        %v3893 = vsel %vm3879, %v3812, 0
        %v3896 = vsel %vm3879, %v3813, 0
        %v3899 = vsel %vm3879, %v3814, 0
        %v3902 = vsel %vm3879, %v3815, 0
        %v3905 = vsel %vm3879, %v3816, 0
        %v3908 = vsel %vm3879, %v3817, 0
        %v3911 = vsel %vm3879, %v3818, 0
        %v3914 = vsel %vm3879, %v3819, 0
        %v3917 = vsel %vm3879, %v3820, 0
        %v3920 = vsel %vm3879, %v3821, 0
        %v3923 = vsel %vm3879, %v3822, 0
        %v3926 = vsel %vm3879, %v3823, 0
        %3928 = vmatprep.subr.bf16.mxu0 0
        %3929 = vmatpush1.bf16.msra.mxu0 %v3867
        %3930 = vmatprep.subr.bf16.mxu0 0
        %3931 = vmatpush1.bf16.msra.mxu0 %v3868
        %3932 = vmatprep.subr.bf16.mxu0 0
        %3933 = vmatpush1.bf16.msra.mxu0 %v3869
        %3934 = vmatprep.subr.bf16.mxu0 0
        %3935 = vmatpush1.bf16.msra.mxu0 %v3870
        %3936 = vmatprep.subr.bf16.mxu0 0
        %3937 = vmatpush1.bf16.msra.mxu0 %v3871
        %3938 = vmatprep.subr.bf16.mxu0 0
        %3939 = vmatpush1.bf16.msra.mxu0 %v3872
        %3940 = vmatprep.subr.bf16.mxu0 0
        %3941 = vmatpush1.bf16.msra.mxu0 0
        %3942 = vmatprep.subr.bf16.mxu0 0
        %3943 = vmatpush1.bf16.msra.mxu0 0
        %3944 = vmatprep.subr.bf16.mxu0 0
        %3945 = vmatpush1.bf16.msra.mxu0 0
        %3946 = vmatprep.subr.bf16.mxu0 0
        %3947 = vmatpush1.bf16.msra.mxu0 0
        %3948 = vmatprep.subr.bf16.mxu0 0
        %3949 = vmatpush1.bf16.msra.mxu0 0
        %3950 = vmatprep.subr.bf16.mxu0 0
        %3951 = vmatpush1.bf16.msra.mxu0 0
        %3952 = vmatprep.subr.bf16.mxu0 0
        %3953 = vmatpush1.bf16.msra.mxu0 0
        %3954 = vmatprep.subr.bf16.mxu0 0
        %3955 = vmatpush1.bf16.msra.mxu0 0
        %3956 = vmatprep.subr.bf16.mxu0 0
        %3957 = vmatpush1.bf16.msra.mxu0 0
        %3958 = vmatprep.subr.bf16.mxu0 0
        %3959 = vmatpush1.bf16.msra.mxu0 0
        %3960 = vmatprep.mubr.bf16.mxu0 0
        %3961 = vmatmul.mubr.bf16.gmra.mrb[0].mxu0 %v3881
        %v3962 = vpop.f32.mrb[0].mxu0
        %v3963 = vadd.f32 %v3841, %v3962
        %v3964 = vpop.f32.mrb[0].mxu0
        %v3965 = vpop.f32.mrb[0].mxu0
        %v3966 = vadd.f32 %v3841, %v3965
        %v3967 = vpop.f32.mrb[0].mxu0
        %3968 = vmatprep.mubr.bf16.mxu0 0
        %3969 = vmatmul.mubr.bf16.gmra.mrb[0].mxu0 %v3884
        %v3970 = vpop.f32.mrb[0].mxu0
        %v3971 = vadd.f32 %v3841, %v3970
        %v3972 = vpop.f32.mrb[0].mxu0
        %v3973 = vpop.f32.mrb[0].mxu0
        %v3974 = vadd.f32 %v3841, %v3973
        %v3975 = vpop.f32.mrb[0].mxu0
        %3976 = vmatprep.mubr.bf16.mxu0 0
        %3977 = vmatmul.mubr.bf16.gmra.mrb[0].mxu0 %v3887
        %v3978 = vpop.f32.mrb[0].mxu0
        %v3979 = vadd.f32 %v3841, %v3978
        %v3980 = vpop.f32.mrb[0].mxu0
        %v3981 = vpop.f32.mrb[0].mxu0
        %v3982 = vadd.f32 %v3841, %v3981
        %v3983 = vpop.f32.mrb[0].mxu0
        %3984 = vmatprep.mubr.bf16.mxu0 0
        %3985 = vmatmul.mubr.bf16.gmra.mrb[0].mxu0 %v3890
        %v3986 = vpop.f32.mrb[0].mxu0
        %v3987 = vadd.f32 %v3841, %v3986
        %v3988 = vpop.f32.mrb[0].mxu0
        %v3989 = vpop.f32.mrb[0].mxu0
        %v3990 = vadd.f32 %v3841, %v3989
        %v3991 = vpop.f32.mrb[0].mxu0
        %3992 = vmatprep.mubr.bf16.mxu0 0
        %3993 = vmatmul.mubr.bf16.gmra.mrb[0].mxu0 %v3893
        %v3994 = vpop.f32.mrb[0].mxu0
        %v3995 = vadd.f32 %v3841, %v3994
        %v3996 = vpop.f32.mrb[0].mxu0
        %v3997 = vpop.f32.mrb[0].mxu0
        %v3998 = vadd.f32 %v3841, %v3997
        %v3999 = vpop.f32.mrb[0].mxu0
        %4000 = vmatprep.mubr.bf16.mxu0 0
        %4001 = vmatmul.mubr.bf16.gmra.mrb[0].mxu0 %v3896
        %v4002 = vpop.f32.mrb[0].mxu0
        %v4003 = vadd.f32 %v3841, %v4002
        %v4004 = vpop.f32.mrb[0].mxu0
        %v4005 = vpop.f32.mrb[0].mxu0
        %v4006 = vadd.f32 %v3841, %v4005
        %v4007 = vpop.f32.mrb[0].mxu0
        %4008 = vmatprep.mubr.bf16.mxu0 0
        %4009 = vmatmul.mubr.bf16.gmra.mrb[0].mxu0 %v3899
        %v4010 = vpop.f32.mrb[0].mxu0
        %v4011 = vadd.f32 %v3841, %v4010
        %v4012 = vpop.f32.mrb[0].mxu0
        %v4013 = vpop.f32.mrb[0].mxu0
        %v4014 = vadd.f32 %v3841, %v4013
        %v4015 = vpop.f32.mrb[0].mxu0
        %4016 = vmatprep.mubr.bf16.mxu0 0
        %4017 = vmatmul.mubr.bf16.gmra.mrb[0].mxu0 %v3902
        %v4018 = vpop.f32.mrb[0].mxu0
        %v4019 = vadd.f32 %v3841, %v4018
        %v4020 = vpop.f32.mrb[0].mxu0
        %v4021 = vpop.f32.mrb[0].mxu0
        %v4022 = vadd.f32 %v3841, %v4021
        %v4023 = vpop.f32.mrb[0].mxu0
        %4024 = vmatprep.mubr.bf16.mxu0 0
        %4025 = vmatmul.mubr.bf16.gmra.mrb[0].mxu0 %v3905
        %v4026 = vpop.f32.mrb[0].mxu0
        %v4027 = vadd.f32 %v3841, %v4026
        %v4028 = vpop.f32.mrb[0].mxu0
        %v4029 = vpop.f32.mrb[0].mxu0
        %v4030 = vadd.f32 %v3841, %v4029
        %v4031 = vpop.f32.mrb[0].mxu0
        %4032 = vmatprep.mubr.bf16.mxu0 0
        %4033 = vmatmul.mubr.bf16.gmra.mrb[0].mxu0 %v3908
        %v4034 = vpop.f32.mrb[0].mxu0
        %v4035 = vadd.f32 %v3841, %v4034
        %v4036 = vpop.f32.mrb[0].mxu0
        %v4037 = vpop.f32.mrb[0].mxu0
        %v4038 = vadd.f32 %v3841, %v4037
        %v4039 = vpop.f32.mrb[0].mxu0
        %4040 = vmatprep.mubr.bf16.mxu0 0
        %4041 = vmatmul.mubr.bf16.gmra.mrb[0].mxu0 %v3911
        %v4042 = vpop.f32.mrb[0].mxu0
        %v4043 = vadd.f32 %v3841, %v4042
        %v4044 = vpop.f32.mrb[0].mxu0
        %v4045 = vpop.f32.mrb[0].mxu0
        %v4046 = vadd.f32 %v3841, %v4045
        %v4047 = vpop.f32.mrb[0].mxu0
        %4048 = vmatprep.mubr.bf16.mxu0 0
        %4049 = vmatmul.mubr.bf16.gmra.mrb[0].mxu0 %v3914
        %v4050 = vpop.f32.mrb[0].mxu0
        %v4051 = vadd.f32 %v3841, %v4050
        %v4052 = vpop.f32.mrb[0].mxu0
        %v4053 = vpop.f32.mrb[0].mxu0
        %v4054 = vadd.f32 %v3841, %v4053
        %v4055 = vpop.f32.mrb[0].mxu0
        %4056 = vmatprep.mubr.bf16.mxu0 0
        %4057 = vmatmul.mubr.bf16.gmra.mrb[0].mxu0 %v3917
        %v4058 = vpop.f32.mrb[0].mxu0
        %v4059 = vadd.f32 %v3841, %v4058
        %v4060 = vpop.f32.mrb[0].mxu0
        %v4061 = vpop.f32.mrb[0].mxu0
        %v4062 = vadd.f32 %v3841, %v4061
        %v4063 = vpop.f32.mrb[0].mxu0
        %4064 = vmatprep.mubr.bf16.mxu0 0
        %4065 = vmatmul.mubr.bf16.gmra.mrb[0].mxu0 %v3920
        %v4066 = vpop.f32.mrb[0].mxu0
        %v4067 = vadd.f32 %v3841, %v4066
        %v4068 = vpop.f32.mrb[0].mxu0
        %v4069 = vpop.f32.mrb[0].mxu0
        %v4070 = vadd.f32 %v3841, %v4069
        %v4071 = vpop.f32.mrb[0].mxu0
        %4072 = vmatprep.mubr.bf16.mxu0 0
        %4073 = vmatmul.mubr.bf16.gmra.mrb[0].mxu0 %v3923
        %v4074 = vpop.f32.mrb[0].mxu0
        %v4075 = vadd.f32 %v3841, %v4074
        %v4076 = vpop.f32.mrb[0].mxu0
        %v4077 = vpop.f32.mrb[0].mxu0
        %v4078 = vadd.f32 %v3841, %v4077
        %v4079 = vpop.f32.mrb[0].mxu0
        %4080 = vmatprep.mubr.bf16.mxu0 0
        %4081 = vmatmul.mubr.bf16.gmra.mrb[0].mxu0 %v3926
        %v4082 = vpop.f32.mrb[0].mxu0
        %v4083 = vadd.f32 %v3841, %v4082
        %v4084 = vpop.f32.mrb[0].mxu0
        %v4085 = vpop.f32.mrb[0].mxu0
        %v4086 = vadd.f32 %v3841, %v4085
        %v4087 = vpop.f32.mrb[0].mxu0
        %4088 = vdwg.mxu0
        %v4089 = vmax.f32 %v3963, 0.0
        %v4090 = vmax.f32 %v3966, 0.0
        %v4091 = vmax.f32 %v3971, 0.0
        %v4092 = vmax.f32 %v3974, 0.0
        %v4093 = vmax.f32 %v3979, 0.0
        %v4094 = vmax.f32 %v3982, 0.0
        %v4095 = vmax.f32 %v3987, 0.0
        %v4096 = vmax.f32 %v3990, 0.0
        %v4097 = vmax.f32 %v3995, 0.0
        %v4098 = vmax.f32 %v3998, 0.0
        %v4099 = vmax.f32 %v4003, 0.0
        %v4100 = vmax.f32 %v4006, 0.0
        %v4101 = vmax.f32 %v4011, 0.0
        %v4102 = vmax.f32 %v4014, 0.0
        %v4103 = vmax.f32 %v4019, 0.0
        %v4104 = vmax.f32 %v4022, 0.0
        %v4105 = vmax.f32 %v4027, 0.0
        %v4106 = vmax.f32 %v4030, 0.0
        %v4107 = vmax.f32 %v4035, 0.0
        %v4108 = vmax.f32 %v4038, 0.0
        %v4109 = vmax.f32 %v4043, 0.0
        %v4110 = vmax.f32 %v4046, 0.0
        %v4111 = vmax.f32 %v4051, 0.0
        %v4112 = vmax.f32 %v4054, 0.0
        %v4113 = vmax.f32 %v4059, 0.0
        %v4114 = vmax.f32 %v4062, 0.0
        %v4115 = vmax.f32 %v4067, 0.0
        %v4116 = vmax.f32 %v4070, 0.0
        %v4117 = vmax.f32 %v4075, 0.0
        %v4118 = vmax.f32 %v4078, 0.0
        %v4119 = vmax.f32 %v4083, 0.0
        %v4120 = vmax.f32 %v4086, 0.0
        %4121 = vst.msk [vmem:[%s217] sm:$0xff] %vm900, %v4089
        %4122 = vst.msk [vmem:[%s217 + $0x8] sm:$0xff] %vm900, %v4090
        %4123 = vst.msk [vmem:[%s217 + $0x10] sm:$0xff] %vm900, %v4091
        %4124 = vst.msk [vmem:[%s217 + $0x18] sm:$0xff] %vm900, %v4092
        %4125 = vst.msk [vmem:[%s217 + $0x20] sm:$0xff] %vm900, %v4093
        %4126 = vst.msk [vmem:[%s217 + $0x28] sm:$0xff] %vm900, %v4094
        %4127 = vst.msk [vmem:[%s217 + $0x30] sm:$0xff] %vm900, %v4095
        %4128 = vst.msk [vmem:[%s217 + $0x38] sm:$0xff] %vm900, %v4096
        %4129 = vst.msk [vmem:[%s217 + $0x40] sm:$0xff] %vm900, %v4097
        %4130 = vst.msk [vmem:[%s217 + $0x48] sm:$0xff] %vm900, %v4098
        %4131 = vst.msk [vmem:[%s217 + $0x50] sm:$0xff] %vm900, %v4099
        %4132 = vst.msk [vmem:[%s217 + $0x58] sm:$0xff] %vm900, %v4100
        %4133 = vst.msk [vmem:[%s217 + $0x60] sm:$0xff] %vm900, %v4101
        %4134 = vst.msk [vmem:[%s217 + $0x68] sm:$0xff] %vm900, %v4102
        %4135 = vst.msk [vmem:[%s217 + $0x70] sm:$0xff] %vm900, %v4103
        %4136 = vst.msk [vmem:[%s217 + $0x78] sm:$0xff] %vm900, %v4104
        %4137 = vst.msk [vmem:[%s217 + $0x80] sm:$0xff] %vm900, %v4105
        %4138 = vst.msk [vmem:[%s217 + $0x88] sm:$0xff] %vm900, %v4106
        %4139 = vst.msk [vmem:[%s217 + $0x90] sm:$0xff] %vm900, %v4107
        %4140 = vst.msk [vmem:[%s217 + $0x98] sm:$0xff] %vm900, %v4108
        %4141 = vst.msk [vmem:[%s217 + $0xa0] sm:$0xff] %vm900, %v4109
        %4142 = vst.msk [vmem:[%s217 + $0xa8] sm:$0xff] %vm900, %v4110
        %4143 = vst.msk [vmem:[%s217 + $0xb0] sm:$0xff] %vm900, %v4111
        %4144 = vst.msk [vmem:[%s217 + $0xb8] sm:$0xff] %vm900, %v4112
        %4145 = vst.msk [vmem:[%s217 + $0xc0] sm:$0xff] %vm900, %v4113
        %4146 = vst.msk [vmem:[%s217 + $0xc8] sm:$0xff] %vm900, %v4114
        %4147 = vst.msk [vmem:[%s217 + $0xd0] sm:$0xff] %vm900, %v4115
        %4148 = vst.msk [vmem:[%s217 + $0xd8] sm:$0xff] %vm900, %v4116
        %4149 = vst.msk [vmem:[%s217 + $0xe0] sm:$0xff] %vm900, %v4117
        %4150 = vst.msk [vmem:[%s217 + $0xe8] sm:$0xff] %vm900, %v4118
        %4151 = vst.msk [vmem:[%s217 + $0xf0] sm:$0xff] %vm900, %v4119
        %4152 = vst.msk [vmem:[%s217 + $0xf8] sm:$0xff] %vm900, %v4120
        %s4153 = sand.u32 %s137, 1
        %s4154 = scalar_lea.sflag [#allocation4], %s4153
        %s4155 = sand.u32 %s137, 1
        %s4156 = smul.addr %s4155, 256
        %s4157 = scalar_lea.vmem [#allocation3], %s4156
        // Predicated region
        $region41: #{adaptive_feature_block.1} parent=39 // pred_check
          %p4158 = pneg %p147
        $region42: #{adaptive_feature_block.1} parent=39 // pred_check_branch
          %4160 = sbr.rel (%p4158) target = $region44
        $region43: #{adaptive_feature_block.1} parent=39 // pred_region
          %s4162 = ssub.s32 4096, 4096
          %4163 = vsyncadd %s4154, %s4162
          %s4164 = smul.addr %s19, 32
          %s4165 = smul.addr %s4164, 128
          %s4166 = scalar_lea.hbm %s5, %s4165
          %s4167 = sshll.u32 %s4157, 4
          %s4168 = int_to_ptr.vmem [resolvable:$true] %s4167
          %4173 = dma.vmem_to_hbm [thread:$0]  %s4168, 4096, %s4166, %s4154, 128, 128, 8
        $region44: #{adaptive_feature_block.1} parent=39 // pred_fallthru
          _
      $region40: #{adaptive_feature_block.1} parent=5 // pred_fallthru
        _
      %p4174 = scmp.le.s32.totalorder 2, %s14
      // Predicated region
      $region45: #{adaptive_feature_block.1} parent=5 // pred_check
        %p4175 = pneg %p4174
      $region46: #{adaptive_feature_block.1} parent=5 // pred_check_branch
        %4177 = sbr.rel (%p4175) target = $region48
      $region47: #{adaptive_feature_block.1} parent=5 // pred_region
        %s4178 = ssub.s32 %s14, 2
        // Predicated region
        $region49: #{adaptive_feature_block.1} parent=47 // pred_check
          %p4179 = pneg %p153
        $region50: #{adaptive_feature_block.1} parent=47 // pred_check_branch
          %4181 = sbr.rel (%p4179) target = $region52
        $region51: #{adaptive_feature_block.1} parent=47 // pred_region
          %s4182 = sand.u32 %s138, 1
          %s4183 = scalar_lea.sflag [#allocation4], %s4182
          %s4184 = sand.u32 %s138, 1
          %s4185 = smul.addr %s4184, 256
          %s4186 = scalar_lea.vmem [#allocation3], %s4185
          %4187 = dma.done %s4183, 4096
        $region52: #{adaptive_feature_block.1} parent=47 // pred_fallthru
          _
      $region48: #{adaptive_feature_block.1} parent=5 // pred_fallthru
        _
    $region6: #{adaptive_feature_block.1} parent=1 // loop_footer
      %s18 = sadd.s32 1, %s14
    $region7: #{adaptive_feature_block.1} parent=1 // loop_footer_branch
      %13 = sbr.rel target = $region3
    $region8: #{adaptive_feature_block.1} parent=1 // loop_exit
      _
    %4188 = vsyncpa [#allocation4], 1
    %s4189 = scalar_lea.sflag [#allocation4], 1
    %4190 = vsyncpa %s4189, 1

</llo_original>
